<compile_context>
chip_gen: v7x
topology: tpu7x:2x2x1
jax: 0.10.0
libtpu: 0.0.40
codegen_flags: <defaults>
</compile_context>

<pallas_src>
import functools

import jax
import jax.numpy as jnp
from jax.experimental import pallas as pl
from jax.experimental.pallas import tpu as pltpu


def _mlp_kernel(x_ref, w1_ref, b1_ref, w2_ref, b2_ref,
                w3_ref, b3_ref, w4_ref, b4_ref, o_ref):
    """Fused 4-layer MLP: (Linear+ReLU) x3 -> Linear.

    Matmuls run in bf16 on the MXU with f32 accumulation; bias/ReLU in f32.
    """
    x = x_ref[...].astype(jnp.bfloat16)

    h = jnp.dot(x, w1_ref[...], preferred_element_type=jnp.float32) + b1_ref[...]
    h = jnp.maximum(h, 0.0)

    h = jnp.dot(h.astype(jnp.bfloat16), w2_ref[...],
                preferred_element_type=jnp.float32) + b2_ref[...]
    h = jnp.maximum(h, 0.0)

    h = jnp.dot(h.astype(jnp.bfloat16), w3_ref[...],
                preferred_element_type=jnp.float32) + b3_ref[...]
    h = jnp.maximum(h, 0.0)

    out = jnp.dot(h.astype(jnp.bfloat16), w4_ref[...],
                  preferred_element_type=jnp.float32) + b4_ref[...]
    o_ref[...] = out.astype(o_ref.dtype)


@functools.partial(jax.jit, static_argnames=("batch_tile",))
def forward_net_forward(x, params, *, batch_tile=256):
    """Run the ForwardNet MLP with a single fused Pallas kernel.

    x: [B, state_dim + act_dim] float32
    params: dict with w1..w4 ([in, out], float32) and b1..b4 ([1, out], float32).
    returns: [B, state_dim] float32
    """
    # Weights to bf16 once (MXU-native); biases stay f32 for the f32 bias-add.
    w1 = params["w1"].astype(jnp.bfloat16)
    w2 = params["w2"].astype(jnp.bfloat16)
    w3 = params["w3"].astype(jnp.bfloat16)
    w4 = params["w4"].astype(jnp.bfloat16)
    b1, b2, b3, b4 = params["b1"], params["b2"], params["b3"], params["b4"]

    B, in_dim = x.shape
    hid = w1.shape[1]
    out_dim = w4.shape[1]

    # Pad the output feature dim to a lane-dense multiple of 128 so output
    # stores are unmasked; sliced back after the kernel.
    out_pad = pl.cdiv(out_dim, 128) * 128
    if out_pad != out_dim:
        w4 = jnp.pad(w4, ((0, 0), (0, out_pad - out_dim)))
        b4 = jnp.pad(b4, ((0, 0), (0, out_pad - out_dim)))

    # Pad batch so any B works with the large batch tile; padded rows are
    # just extra (wasted) compute and are sliced off afterwards.
    n_tiles = pl.cdiv(B, batch_tile)
    B_pad = n_tiles * batch_tile
    if B_pad != B:
        x = jnp.pad(x, ((0, B_pad - B), (0, 0)))

    grid = (n_tiles,)

    # Weights / biases: full-array blocks, grid-invariant (block index 0).
    def full2d(shape):
        return pl.BlockSpec(shape, lambda i: (0, 0))

    in_specs = [
        pl.BlockSpec((batch_tile, in_dim), lambda i: (i, 0)),   # x tile
        full2d((in_dim, hid)), full2d((1, hid)),                # layer 1
        full2d((hid, hid)),    full2d((1, hid)),                # layer 2
        full2d((hid, hid)),    full2d((1, hid)),                # layer 3
        full2d((hid, out_pad)), full2d((1, out_pad)),           # layer 4
    ]
    out_specs = pl.BlockSpec((batch_tile, out_pad), lambda i: (i, 0))

    out = pl.pallas_call(
        _mlp_kernel,
        out_shape=jax.ShapeDtypeStruct((B_pad, out_pad), jnp.float32),
        grid_spec=pl.GridSpec(
            grid=grid,
            in_specs=in_specs,
            out_specs=out_specs,
        ),
        compiler_params=pltpu.CompilerParams(
            dimension_semantics=("parallel",),
        ),
    )(x, w1, b1, w2, b2, w3, b3, w4, b4)

    return out[:B, :out_dim]


def init_forward_net_params(key, state_dim, act_dim, hidden=512):
    """Deterministic init mimicking PyTorch nn.Linear default
    (uniform in +/- 1/sqrt(fan_in)), stored as [in, out] matrices."""
    input_dim = state_dim + act_dim
    dims = [(input_dim, hidden), (hidden, hidden), (hidden, hidden),
            (hidden, state_dim)]
    params = {}
    for idx, (fan_in, fan_out) in enumerate(dims, start=1):
        key, kw, kb = jax.random.split(key, 3)
        bound = 1.0 / jnp.sqrt(jnp.float32(fan_in))
        params[f"w{idx}"] = jax.random.uniform(
            kw, (fan_in, fan_out), jnp.float32, minval=-bound, maxval=bound)
        params[f"b{idx}"] = jax.random.uniform(
            kb, (1, fan_out), jnp.float32, minval=-bound, maxval=bound)
    return params


def _reference_forward(x, params):
    """JAX reference mirroring the kernel's numerics (bf16 matmul, f32 acc)."""
    def lin(h, w, b):
        return jnp.dot(h.astype(jnp.bfloat16), w.astype(jnp.bfloat16),
                       preferred_element_type=jnp.float32) + b
    h = jnp.maximum(lin(x, params["w1"], params["b1"]), 0.0)
    h = jnp.maximum(lin(h, params["w2"], params["b2"]), 0.0)
    h = jnp.maximum(lin(h, params["w3"], params["b3"]), 0.0)
    return lin(h, params["w4"], params["b4"])


if __name__ == "__main__":
    state_dim, act_dim = 16, 4
    batch = 8  # small demo batch; wrapper pads to the 256-row batch tile

    key = jax.random.PRNGKey(0)
    key, kx = jax.random.split(key)
    params = init_forward_net_params(key, state_dim, act_dim)
    x = jax.random.normal(kx, (batch, state_dim + act_dim), jnp.float32)

    out = forward_net_forward(x, params)
    out = jax.block_until_ready(out)

    ref = _reference_forward(x, params)
    assert out.shape == (batch, state_dim), out.shape
    assert jnp.allclose(out, ref, atol=2e-2, rtol=2e-2), "mismatch vs JAX reference"

    print("KERNEL_OK")
</pallas_src>

<mosaic_0001>
module attributes {stable_mosaic.version = 11 : i64} {
  func.func @_mlp_kernel(%arg0: i32, %arg1: memref<256x20xf32, #tpu.memory_space<vmem>>, %arg2: memref<20x512xbf16, #tpu.memory_space<vmem>>, %arg3: memref<1x512xf32, #tpu.memory_space<vmem>>, %arg4: memref<512x512xbf16, #tpu.memory_space<vmem>>, %arg5: memref<1x512xf32, #tpu.memory_space<vmem>>, %arg6: memref<512x512xbf16, #tpu.memory_space<vmem>>, %arg7: memref<1x512xf32, #tpu.memory_space<vmem>>, %arg8: memref<512x128xbf16, #tpu.memory_space<vmem>>, %arg9: memref<1x128xf32, #tpu.memory_space<vmem>>, %arg10: memref<256x128xf32, #tpu.memory_space<vmem>>) attributes {dimension_semantics = [#tpu.dimension_semantics<parallel>], iteration_bounds = array<i64: 1>, scalar_prefetch = 0 : i64, scratch_operands = 0 : i64, tpu.core_type = #tpu.core_type<tc>, window_params = [{transform_indices = @transform_0, window_bounds = array<i64: 256, 20>}, {pipeline_mode = #tpu.pipeline_mode<synchronous>, transform_indices = @transform_1, window_bounds = array<i64: 20, 512>}, {pipeline_mode = #tpu.pipeline_mode<synchronous>, transform_indices = @transform_2, window_bounds = array<i64: 1, 512>}, {pipeline_mode = #tpu.pipeline_mode<synchronous>, transform_indices = @transform_3, window_bounds = array<i64: 512, 512>}, {pipeline_mode = #tpu.pipeline_mode<synchronous>, transform_indices = @transform_4, window_bounds = array<i64: 1, 512>}, {pipeline_mode = #tpu.pipeline_mode<synchronous>, transform_indices = @transform_5, window_bounds = array<i64: 512, 512>}, {pipeline_mode = #tpu.pipeline_mode<synchronous>, transform_indices = @transform_6, window_bounds = array<i64: 1, 512>}, {pipeline_mode = #tpu.pipeline_mode<synchronous>, transform_indices = @transform_7, window_bounds = array<i64: 512, 128>}, {pipeline_mode = #tpu.pipeline_mode<synchronous>, transform_indices = @transform_8, window_bounds = array<i64: 1, 128>}, {transform_indices = @transform_9, window_bounds = array<i64: 256, 128>}]} {
    %c0 = arith.constant 0 : index
    %c0_0 = arith.constant 0 : index
    %0 = vector.load %arg1[%c0, %c0_0] : memref<256x20xf32, #tpu.memory_space<vmem>>, vector<256x20xf32>
    %1 = arith.truncf %0 : vector<256x20xf32> to vector<256x20xbf16>
    %c0_1 = arith.constant 0 : index
    %c0_2 = arith.constant 0 : index
    %2 = vector.load %arg2[%c0_1, %c0_2] : memref<20x512xbf16, #tpu.memory_space<vmem>>, vector<20x512xbf16>
    %cst = arith.constant dense<0.000000e+00> : vector<256x512xf32>
    %3 = tpu.matmul %1, %2, %cst {dimension_numbers = #tpu.dot_dimension_numbers<[1], [0], [0], [1], [0, 0, 1, 1], [], []>} : vector<256x20xbf16>, vector<20x512xbf16>, vector<256x512xf32> -> vector<256x512xf32>
    %c0_3 = arith.constant 0 : index
    %c0_4 = arith.constant 0 : index
    %4 = vector.load %arg3[%c0_3, %c0_4] : memref<1x512xf32, #tpu.memory_space<vmem>>, vector<1x512xf32>
    %5 = vector.broadcast %4 : vector<1x512xf32> to vector<256x512xf32>
    %6 = arith.addf %3, %5 : vector<256x512xf32>
    %cst_5 = arith.constant 0.000000e+00 : f32
    %7 = vector.broadcast %cst_5 : f32 to vector<256x512xf32>
    %8 = arith.maximumf %6, %7 : vector<256x512xf32>
    %9 = arith.truncf %8 : vector<256x512xf32> to vector<256x512xbf16>
    %c0_6 = arith.constant 0 : index
    %c0_7 = arith.constant 0 : index
    %10 = vector.load %arg4[%c0_6, %c0_7] : memref<512x512xbf16, #tpu.memory_space<vmem>>, vector<512x512xbf16>
    %cst_8 = arith.constant dense<0.000000e+00> : vector<256x512xf32>
    %11 = tpu.matmul %9, %10, %cst_8 {dimension_numbers = #tpu.dot_dimension_numbers<[1], [0], [0], [1], [0, 0, 1, 1], [], []>} : vector<256x512xbf16>, vector<512x512xbf16>, vector<256x512xf32> -> vector<256x512xf32>
    %c0_9 = arith.constant 0 : index
    %c0_10 = arith.constant 0 : index
    %12 = vector.load %arg5[%c0_9, %c0_10] : memref<1x512xf32, #tpu.memory_space<vmem>>, vector<1x512xf32>
    %13 = vector.broadcast %12 : vector<1x512xf32> to vector<256x512xf32>
    %14 = arith.addf %11, %13 : vector<256x512xf32>
    %cst_11 = arith.constant 0.000000e+00 : f32
    %15 = vector.broadcast %cst_11 : f32 to vector<256x512xf32>
    %16 = arith.maximumf %14, %15 : vector<256x512xf32>
    %17 = arith.truncf %16 : vector<256x512xf32> to vector<256x512xbf16>
    %c0_12 = arith.constant 0 : index
    %c0_13 = arith.constant 0 : index
    %18 = vector.load %arg6[%c0_12, %c0_13] : memref<512x512xbf16, #tpu.memory_space<vmem>>, vector<512x512xbf16>
    %cst_14 = arith.constant dense<0.000000e+00> : vector<256x512xf32>
    %19 = tpu.matmul %17, %18, %cst_14 {dimension_numbers = #tpu.dot_dimension_numbers<[1], [0], [0], [1], [0, 0, 1, 1], [], []>} : vector<256x512xbf16>, vector<512x512xbf16>, vector<256x512xf32> -> vector<256x512xf32>
    %c0_15 = arith.constant 0 : index
    %c0_16 = arith.constant 0 : index
    %20 = vector.load %arg7[%c0_15, %c0_16] : memref<1x512xf32, #tpu.memory_space<vmem>>, vector<1x512xf32>
    %21 = vector.broadcast %20 : vector<1x512xf32> to vector<256x512xf32>
    %22 = arith.addf %19, %21 : vector<256x512xf32>
    %cst_17 = arith.constant 0.000000e+00 : f32
    %23 = vector.broadcast %cst_17 : f32 to vector<256x512xf32>
    %24 = arith.maximumf %22, %23 : vector<256x512xf32>
    %25 = arith.truncf %24 : vector<256x512xf32> to vector<256x512xbf16>
    %c0_18 = arith.constant 0 : index
    %c0_19 = arith.constant 0 : index
    %26 = vector.load %arg8[%c0_18, %c0_19] : memref<512x128xbf16, #tpu.memory_space<vmem>>, vector<512x128xbf16>
    %cst_20 = arith.constant dense<0.000000e+00> : vector<256x128xf32>
    %27 = tpu.matmul %25, %26, %cst_20 {dimension_numbers = #tpu.dot_dimension_numbers<[1], [0], [0], [1], [0, 0, 1, 1], [], []>} : vector<256x512xbf16>, vector<512x128xbf16>, vector<256x128xf32> -> vector<256x128xf32>
    %c0_21 = arith.constant 0 : index
    %c0_22 = arith.constant 0 : index
    %28 = vector.load %arg9[%c0_21, %c0_22] : memref<1x128xf32, #tpu.memory_space<vmem>>, vector<1x128xf32>
    %29 = vector.broadcast %28 : vector<1x128xf32> to vector<256x128xf32>
    %30 = arith.addf %27, %29 : vector<256x128xf32>
    %c0_23 = arith.constant 0 : index
    %c0_24 = arith.constant 0 : index
    %31 = vector.load %arg10[%c0_23, %c0_24] : memref<256x128xf32, #tpu.memory_space<vmem>>, vector<256x128xf32>
    tpu.vector_store %arg10[%c0_23, %c0_24], %30 {strides = array<i32>} : memref<256x128xf32, #tpu.memory_space<vmem>>, vector<256x128xf32>,
    return
  }
  func.func @transform_0(%arg0: i32) -> (i32, i32) {
    %c0_i32 = arith.constant 0 : i32
    %c0_i32_0 = arith.constant 0 : i32
    return %arg0, %c0_i32 : i32, i32
  }
  func.func @transform_1(%arg0: i32) -> (i32, i32) {
    %c0_i32 = arith.constant 0 : i32
    %c0_i32_0 = arith.constant 0 : i32
    %c0_i32_1 = arith.constant 0 : i32
    return %c0_i32, %c0_i32_0 : i32, i32
  }
  func.func @transform_2(%arg0: i32) -> (i32, i32) {
    %c0_i32 = arith.constant 0 : i32
    %c0_i32_0 = arith.constant 0 : i32
    %c0_i32_1 = arith.constant 0 : i32
    return %c0_i32, %c0_i32_0 : i32, i32
  }
  func.func @transform_3(%arg0: i32) -> (i32, i32) {
    %c0_i32 = arith.constant 0 : i32
    %c0_i32_0 = arith.constant 0 : i32
    %c0_i32_1 = arith.constant 0 : i32
    return %c0_i32, %c0_i32_0 : i32, i32
  }
  func.func @transform_4(%arg0: i32) -> (i32, i32) {
    %c0_i32 = arith.constant 0 : i32
    %c0_i32_0 = arith.constant 0 : i32
    %c0_i32_1 = arith.constant 0 : i32
    return %c0_i32, %c0_i32_0 : i32, i32
  }
  func.func @transform_5(%arg0: i32) -> (i32, i32) {
    %c0_i32 = arith.constant 0 : i32
    %c0_i32_0 = arith.constant 0 : i32
    %c0_i32_1 = arith.constant 0 : i32
    return %c0_i32, %c0_i32_0 : i32, i32
  }
  func.func @transform_6(%arg0: i32) -> (i32, i32) {
    %c0_i32 = arith.constant 0 : i32
    %c0_i32_0 = arith.constant 0 : i32
    %c0_i32_1 = arith.constant 0 : i32
    return %c0_i32, %c0_i32_0 : i32, i32
  }
  func.func @transform_7(%arg0: i32) -> (i32, i32) {
    %c0_i32 = arith.constant 0 : i32
    %c0_i32_0 = arith.constant 0 : i32
    %c0_i32_1 = arith.constant 0 : i32
    return %c0_i32, %c0_i32_0 : i32, i32
  }
  func.func @transform_8(%arg0: i32) -> (i32, i32) {
    %c0_i32 = arith.constant 0 : i32
    %c0_i32_0 = arith.constant 0 : i32
    %c0_i32_1 = arith.constant 0 : i32
    return %c0_i32, %c0_i32_0 : i32, i32
  }
  func.func @transform_9(%arg0: i32) -> (i32, i32) {
    %c0_i32 = arith.constant 0 : i32
    %c0_i32_0 = arith.constant 0 : i32
    return %arg0, %c0_i32 : i32, i32
  }
}

</mosaic_0001>

<llo_original>
// kernel: forward_net_forward.1
$region0: #{forward_net_forward.1}
  #allocation0 [shape = 'u32[]', space=smem, size = 0x4, offset = 0x4, fixed_abs, tag = 'smem constant byte address 0x4 - core index']
  #allocation1 [shape = 'u32[144,128]{1,0:T(1,128)}', space=vmem, size = 0x12000, scoped, tag = 'internal scratch']
  %s0 = inlined_call_operand.vmem [shape: f32[256,20], index: 0, kind: input, shape index: {}]
  %s1 = inlined_call_operand.vmem [shape: bf16[20,512], index: 1, kind: input, shape index: {}]
  %s2 = inlined_call_operand.vmem [shape: f32[1,512], index: 2, kind: input, shape index: {}]
  %s3 = inlined_call_operand.vmem [shape: bf16[512,512], index: 3, kind: input, shape index: {}]
  %s4 = inlined_call_operand.vmem [shape: f32[1,512], index: 4, kind: input, shape index: {}]
  %s5 = inlined_call_operand.vmem [shape: bf16[512,512], index: 5, kind: input, shape index: {}]
  %s6 = inlined_call_operand.vmem [shape: f32[1,512], index: 6, kind: input, shape index: {}]
  %s7 = inlined_call_operand.vmem [shape: bf16[512,128], index: 7, kind: input, shape index: {}]
  %s8 = inlined_call_operand.vmem [shape: f32[1,128], index: 8, kind: input, shape index: {}]
  %s9 = inlined_call_operand.vmem [shape: f32[256,128], index: 9, kind: output, shape index: {}]
  %s10 = sld [smem:[#allocation0]]
  $region46: #{forward_net_forward.1} parent=0
    _
  %s12 = ssub.s32 1, %s10
  %s13 = scalar_select 0, %s12, %s10
  // Predicated region
  $region2: #{forward_net_forward.1} parent=0 // pred_check
    _
  $region3: #{forward_net_forward.1} parent=0 // pred_check_branch
    %15 = sbr.rel (0) target = $region5
  $region4: #{forward_net_forward.1} parent=0 // pred_region
    _
  $region5: #{forward_net_forward.1} parent=0 // pred_fallthru
    _
  // Predicated region
  $region6: #{forward_net_forward.1} parent=0 // pred_check
    _
  $region7: #{forward_net_forward.1} parent=0 // pred_check_branch
    %17 = sbr.rel (0) target = $region9
  $region8: #{forward_net_forward.1} parent=0 // pred_region
    _
  $region9: #{forward_net_forward.1} parent=0 // pred_fallthru
    _
  // Predicated region
  $region10: #{forward_net_forward.1} parent=0 // pred_check
    _
  $region11: #{forward_net_forward.1} parent=0 // pred_check_branch
    %19 = sbr.rel (0) target = $region13
  $region12: #{forward_net_forward.1} parent=0 // pred_region
    _
  $region13: #{forward_net_forward.1} parent=0 // pred_fallthru
    _
  // Predicated region
  $region14: #{forward_net_forward.1} parent=0 // pred_check
    _
  $region15: #{forward_net_forward.1} parent=0 // pred_check_branch
    %21 = sbr.rel (0) target = $region17
  $region16: #{forward_net_forward.1} parent=0 // pred_region
    _
  $region17: #{forward_net_forward.1} parent=0 // pred_fallthru
    _
  // Predicated region
  $region18: #{forward_net_forward.1} parent=0 // pred_check
    _
  $region19: #{forward_net_forward.1} parent=0 // pred_check_branch
    %23 = sbr.rel (0) target = $region21
  $region20: #{forward_net_forward.1} parent=0 // pred_region
    _
  $region21: #{forward_net_forward.1} parent=0 // pred_fallthru
    _
  // Predicated region
  $region22: #{forward_net_forward.1} parent=0 // pred_check
    _
  $region23: #{forward_net_forward.1} parent=0 // pred_check_branch
    %25 = sbr.rel (0) target = $region25
  $region24: #{forward_net_forward.1} parent=0 // pred_region
    _
  $region25: #{forward_net_forward.1} parent=0 // pred_fallthru
    _
  // Predicated region
  $region26: #{forward_net_forward.1} parent=0 // pred_check
    _
  $region27: #{forward_net_forward.1} parent=0 // pred_check_branch
    %27 = sbr.rel (0) target = $region29
  $region28: #{forward_net_forward.1} parent=0 // pred_region
    _
  $region29: #{forward_net_forward.1} parent=0 // pred_fallthru
    _
  // Predicated region
  $region30: #{forward_net_forward.1} parent=0 // pred_check
    _
  $region31: #{forward_net_forward.1} parent=0 // pred_check_branch
    %29 = sbr.rel (0) target = $region33
  $region32: #{forward_net_forward.1} parent=0 // pred_region
    _
  $region33: #{forward_net_forward.1} parent=0 // pred_fallthru
    _
  // Predicated region
  $region34: #{forward_net_forward.1} parent=0 // pred_check
    _
  $region35: #{forward_net_forward.1} parent=0 // pred_check_branch
    %31 = sbr.rel (0) target = $region37
  $region36: #{forward_net_forward.1} parent=0 // pred_region
    _
  $region37: #{forward_net_forward.1} parent=0 // pred_fallthru
    _
  %v33 = vld [vmem:[%s0] sm:$0xff]
  %v34 = vld [vmem:[%s0 + $0x8] sm:$0xff]
  %v35 = vld [vmem:[%s0 + $0x10] sm:$0xff]
  %v36 = vld [vmem:[%s0 + $0x18] sm:$0xff]
  %v37 = vld [vmem:[%s0 + $0x20] sm:$0xff]
  %v38 = vld [vmem:[%s0 + $0x28] sm:$0xff]
  %v39 = vld [vmem:[%s0 + $0x30] sm:$0xff]
  %v40 = vld [vmem:[%s0 + $0x38] sm:$0xff]
  %v41 = vld [vmem:[%s0 + $0x40] sm:$0xff]
  %v42 = vld [vmem:[%s0 + $0x48] sm:$0xff]
  %v43 = vld [vmem:[%s0 + $0x50] sm:$0xff]
  %v44 = vld [vmem:[%s0 + $0x58] sm:$0xff]
  %v45 = vld [vmem:[%s0 + $0x60] sm:$0xff]
  %v46 = vld [vmem:[%s0 + $0x68] sm:$0xff]
  %v47 = vld [vmem:[%s0 + $0x70] sm:$0xff]
  %v48 = vld [vmem:[%s0 + $0x78] sm:$0xff]
  %v49 = vld [vmem:[%s0 + $0x80] sm:$0xff]
  %v50 = vld [vmem:[%s0 + $0x88] sm:$0xff]
  %v51 = vld [vmem:[%s0 + $0x90] sm:$0xff]
  %v52 = vld [vmem:[%s0 + $0x98] sm:$0xff]
  %v53 = vld [vmem:[%s0 + $0xa0] sm:$0xff]
  %v54 = vld [vmem:[%s0 + $0xa8] sm:$0xff]
  %v55 = vld [vmem:[%s0 + $0xb0] sm:$0xff]
  %v56 = vld [vmem:[%s0 + $0xb8] sm:$0xff]
  %v57 = vld [vmem:[%s0 + $0xc0] sm:$0xff]
  %v58 = vld [vmem:[%s0 + $0xc8] sm:$0xff]
  %v59 = vld [vmem:[%s0 + $0xd0] sm:$0xff]
  %v60 = vld [vmem:[%s0 + $0xd8] sm:$0xff]
  %v61 = vld [vmem:[%s0 + $0xe0] sm:$0xff]
  %v62 = vld [vmem:[%s0 + $0xe8] sm:$0xff]
  %v63 = vld [vmem:[%s0 + $0xf0] sm:$0xff]
  %v64 = vld [vmem:[%s0 + $0xf8] sm:$0xff]
  %v65 = vpack.c.bf16 %v34, %v33
  %v66 = vpack.c.bf16 %v36, %v35
  %v67 = vpack.c.bf16 %v38, %v37
  %v68 = vpack.c.bf16 %v40, %v39
  %v69 = vpack.c.bf16 %v42, %v41
  %v70 = vpack.c.bf16 %v44, %v43
  %v71 = vpack.c.bf16 %v46, %v45
  %v72 = vpack.c.bf16 %v48, %v47
  %v73 = vpack.c.bf16 %v50, %v49
  %v74 = vpack.c.bf16 %v52, %v51
  %v75 = vpack.c.bf16 %v54, %v53
  %v76 = vpack.c.bf16 %v56, %v55
  %v77 = vpack.c.bf16 %v58, %v57
  %v78 = vpack.c.bf16 %v60, %v59
  %v79 = vpack.c.bf16 %v62, %v61
  %v80 = vpack.c.bf16 %v64, %v63
  %v81 = vld [vmem:[%s1] sm:$0xff]
  %v82 = vld [vmem:[%s1 + $0x8] sm:$0xff]
  %v83 = vld [vmem:[%s1 + $0x10] sm:$0xff]
  %v84 = vld [vmem:[%s1 + $0x18] sm:$0xff]
  %v85 = vld [vmem:[%s1 + $0x20] sm:$0x33]
  %v86 = vld [vmem:[%s1 + $0x28] sm:$0x33]
  %v87 = vld [vmem:[%s2] sm:$0xf]
  %v89 = vlaneseq
  %v90 = vshrl.u32 %v89, 7
  %v91 = vsub.s32 0, %v90
  %v92 = vrot.slane %v87, %v91
  %v93 = vlaneseq
  %v94 = vshrl.u32 %v93, 7
  %v95 = vsub.s32 1, %v94
  %v96 = vrot.slane %v87, %v95
  %v97 = vlaneseq
  %v98 = vshrl.u32 %v97, 7
  %v99 = vsub.s32 2, %v98
  %v100 = vrot.slane %v87, %v99
  %v101 = vlaneseq
  %v102 = vshrl.u32 %v101, 7
  %v103 = vsub.s32 3, %v102
  %v104 = vrot.slane %v87, %v103
  %v115 = vunpack.c.l.b16 %v81
  %v116 = vunpack.c.h.b16 %v81
  %v117 = vunpack.c.l.b16 %v82
  %v118 = vunpack.c.h.b16 %v82
  %v119 = vunpack.c.l.b16 %v83
  %v120 = vunpack.c.h.b16 %v83
  %v121 = vunpack.c.l.b16 %v84
  %v122 = vunpack.c.h.b16 %v84
  %v123 = vunpack.c.l.b16 %v85
  %v124 = vunpack.c.h.b16 %v85
  %v125 = vunpack.c.l.b16 %v86
  %v126 = vunpack.c.h.b16 %v86
  %v127 = vpack.c.b16 %v119, %v115
  %v128 = vpack.c.b16 %v120, %v116
  %v129 = vpack.c.b16 %v121, %v117
  %v130 = vpack.c.b16 %v122, %v118
  %v131 = vpack.c.b16 %v123, %v123
  %v132 = vpack.c.b16 %v124, %v124
  %v133 = vpack.c.b16 %v125, %v125
  %v134 = vpack.c.b16 %v126, %v126
  %vm139 = vcmask 162816
  %v141 = vsel %vm139, %v65, 0
  %v144 = vsel %vm139, %v66, 0
  %v147 = vsel %vm139, %v67, 0
  %v150 = vsel %vm139, %v68, 0
  %v153 = vsel %vm139, %v69, 0
  %v156 = vsel %vm139, %v70, 0
  %v159 = vsel %vm139, %v71, 0
  %v162 = vsel %vm139, %v72, 0
  %v165 = vsel %vm139, %v73, 0
  %v168 = vsel %vm139, %v74, 0
  %v171 = vsel %vm139, %v75, 0
  %v174 = vsel %vm139, %v76, 0
  %v177 = vsel %vm139, %v77, 0
  %v180 = vsel %vm139, %v78, 0
  %v183 = vsel %vm139, %v79, 0
  %v186 = vsel %vm139, %v80, 0
  %vm188 = vcmask 1041408
  %v190 = vsel %vm188, %v131, 0
  %v193 = vsel %vm188, %v132, 0
  %v196 = vsel %vm188, %v133, 0
  %v199 = vsel %vm188, %v134, 0
  %201 = vmatprep.subr.bf16.mxu0 %v128
  %202 = vmatpush1.bf16.msra.mxu0 %v127
  %203 = vmatprep.subr.bf16.mxu0 %v193
  %204 = vmatpush1.bf16.msra.mxu0 %v190
  %205 = vmatprep.subr.bf16.mxu0 0
  %206 = vmatpush1.bf16.msra.mxu0 0
  %207 = vmatprep.subr.bf16.mxu0 0
  %208 = vmatpush1.bf16.msra.mxu0 0
  %209 = vmatprep.subr.bf16.mxu0 0
  %210 = vmatpush1.bf16.msra.mxu0 0
  %211 = vmatprep.subr.bf16.mxu0 0
  %212 = vmatpush1.bf16.msra.mxu0 0
  %213 = vmatprep.subr.bf16.mxu0 0
  %214 = vmatpush1.bf16.msra.mxu0 0
  %215 = vmatprep.subr.bf16.mxu0 0
  %216 = vmatpush1.bf16.msra.mxu0 0
  %217 = vmatprep.subr.bf16.mxu0 0
  %218 = vmatpush1.bf16.msra.mxu0 0
  %219 = vmatprep.subr.bf16.mxu0 0
  %220 = vmatpush1.bf16.msra.mxu0 0
  %221 = vmatprep.subr.bf16.mxu0 0
  %222 = vmatpush1.bf16.msra.mxu0 0
  %223 = vmatprep.subr.bf16.mxu0 0
  %224 = vmatpush1.bf16.msra.mxu0 0
  %225 = vmatprep.subr.bf16.mxu0 0
  %226 = vmatpush1.bf16.msra.mxu0 0
  %227 = vmatprep.subr.bf16.mxu0 0
  %228 = vmatpush1.bf16.msra.mxu0 0
  %229 = vmatprep.subr.bf16.mxu0 0
  %230 = vmatpush1.bf16.msra.mxu0 0
  %231 = vmatprep.subr.bf16.mxu0 0
  %232 = vmatpush1.bf16.msra.mxu0 0
  %233 = vmatprep.mubr.bf16.mxu0 0
  %234 = vmatmul.mubr.bf16.gmra.mrb[0].mxu0 %v141
  %v235 = vpop.f32.mrb[0].mxu0
  %v236 = vadd.f32 %v92, %v235
  %v237 = vpop.f32.mrb[0].mxu0
  %v238 = vadd.f32 %v96, %v237
  %v239 = vpop.f32.mrb[0].mxu0
  %v240 = vadd.f32 %v92, %v239
  %v241 = vpop.f32.mrb[0].mxu0
  %v242 = vadd.f32 %v96, %v241
  %243 = vmatprep.mubr.bf16.mxu0 0
  %244 = vmatmul.mubr.bf16.gmra.mrb[0].mxu0 %v144
  %v245 = vpop.f32.mrb[0].mxu0
  %v246 = vadd.f32 %v92, %v245
  %v247 = vpop.f32.mrb[0].mxu0
  %v248 = vadd.f32 %v96, %v247
  %v249 = vpop.f32.mrb[0].mxu0
  %v250 = vadd.f32 %v92, %v249
  %v251 = vpop.f32.mrb[0].mxu0
  %v252 = vadd.f32 %v96, %v251
  %253 = vmatprep.mubr.bf16.mxu0 0
  %254 = vmatmul.mubr.bf16.gmra.mrb[0].mxu0 %v147
  %v255 = vpop.f32.mrb[0].mxu0
  %v256 = vadd.f32 %v92, %v255
  %v257 = vpop.f32.mrb[0].mxu0
  %v258 = vadd.f32 %v96, %v257
  %v259 = vpop.f32.mrb[0].mxu0
  %v260 = vadd.f32 %v92, %v259
  %v261 = vpop.f32.mrb[0].mxu0
  %v262 = vadd.f32 %v96, %v261
  %263 = vmatprep.mubr.bf16.mxu0 0
  %264 = vmatmul.mubr.bf16.gmra.mrb[0].mxu0 %v150
  %v265 = vpop.f32.mrb[0].mxu0
  %v266 = vadd.f32 %v92, %v265
  %v267 = vpop.f32.mrb[0].mxu0
  %v268 = vadd.f32 %v96, %v267
  %v269 = vpop.f32.mrb[0].mxu0
  %v270 = vadd.f32 %v92, %v269
  %v271 = vpop.f32.mrb[0].mxu0
  %v272 = vadd.f32 %v96, %v271
  %273 = vmatprep.mubr.bf16.mxu0 0
  %274 = vmatmul.mubr.bf16.gmra.mrb[0].mxu0 %v153
  %v275 = vpop.f32.mrb[0].mxu0
  %v276 = vadd.f32 %v92, %v275
  %v277 = vpop.f32.mrb[0].mxu0
  %v278 = vadd.f32 %v96, %v277
  %v279 = vpop.f32.mrb[0].mxu0
  %v280 = vadd.f32 %v92, %v279
  %v281 = vpop.f32.mrb[0].mxu0
  %v282 = vadd.f32 %v96, %v281
  %283 = vmatprep.mubr.bf16.mxu0 0
  %284 = vmatmul.mubr.bf16.gmra.mrb[0].mxu0 %v156
  %v285 = vpop.f32.mrb[0].mxu0
  %v286 = vadd.f32 %v92, %v285
  %v287 = vpop.f32.mrb[0].mxu0
  %v288 = vadd.f32 %v96, %v287
  %v289 = vpop.f32.mrb[0].mxu0
  %v290 = vadd.f32 %v92, %v289
  %v291 = vpop.f32.mrb[0].mxu0
  %v292 = vadd.f32 %v96, %v291
  %293 = vmatprep.mubr.bf16.mxu0 0
  %294 = vmatmul.mubr.bf16.gmra.mrb[0].mxu0 %v159
  %v295 = vpop.f32.mrb[0].mxu0
  %v296 = vadd.f32 %v92, %v295
  %v297 = vpop.f32.mrb[0].mxu0
  %v298 = vadd.f32 %v96, %v297
  %v299 = vpop.f32.mrb[0].mxu0
  %v300 = vadd.f32 %v92, %v299
  %v301 = vpop.f32.mrb[0].mxu0
  %v302 = vadd.f32 %v96, %v301
  %303 = vmatprep.mubr.bf16.mxu0 0
  %304 = vmatmul.mubr.bf16.gmra.mrb[0].mxu0 %v162
  %v305 = vpop.f32.mrb[0].mxu0
  %v306 = vadd.f32 %v92, %v305
  %v307 = vpop.f32.mrb[0].mxu0
  %v308 = vadd.f32 %v96, %v307
  %v309 = vpop.f32.mrb[0].mxu0
  %v310 = vadd.f32 %v92, %v309
  %v311 = vpop.f32.mrb[0].mxu0
  %v312 = vadd.f32 %v96, %v311
  %313 = vmatprep.mubr.bf16.mxu0 0
  %314 = vmatmul.mubr.bf16.gmra.mrb[0].mxu0 %v165
  %v315 = vpop.f32.mrb[0].mxu0
  %v316 = vadd.f32 %v92, %v315
  %v317 = vpop.f32.mrb[0].mxu0
  %v318 = vadd.f32 %v96, %v317
  %v319 = vpop.f32.mrb[0].mxu0
  %v320 = vadd.f32 %v92, %v319
  %v321 = vpop.f32.mrb[0].mxu0
  %v322 = vadd.f32 %v96, %v321
  %323 = vmatprep.mubr.bf16.mxu0 0
  %324 = vmatmul.mubr.bf16.gmra.mrb[0].mxu0 %v168
  %v325 = vpop.f32.mrb[0].mxu0
  %v326 = vadd.f32 %v92, %v325
  %v327 = vpop.f32.mrb[0].mxu0
  %v328 = vadd.f32 %v96, %v327
  %v329 = vpop.f32.mrb[0].mxu0
  %v330 = vadd.f32 %v92, %v329
  %v331 = vpop.f32.mrb[0].mxu0
  %v332 = vadd.f32 %v96, %v331
  %333 = vmatprep.mubr.bf16.mxu0 0
  %334 = vmatmul.mubr.bf16.gmra.mrb[0].mxu0 %v171
  %v335 = vpop.f32.mrb[0].mxu0
  %v336 = vadd.f32 %v92, %v335
  %v337 = vpop.f32.mrb[0].mxu0
  %v338 = vadd.f32 %v96, %v337
  %v339 = vpop.f32.mrb[0].mxu0
  %v340 = vadd.f32 %v92, %v339
  %v341 = vpop.f32.mrb[0].mxu0
  %v342 = vadd.f32 %v96, %v341
  %343 = vmatprep.mubr.bf16.mxu0 0
  %344 = vmatmul.mubr.bf16.gmra.mrb[0].mxu0 %v174
  %v345 = vpop.f32.mrb[0].mxu0
  %v346 = vadd.f32 %v92, %v345
  %v347 = vpop.f32.mrb[0].mxu0
  %v348 = vadd.f32 %v96, %v347
  %v349 = vpop.f32.mrb[0].mxu0
  %v350 = vadd.f32 %v92, %v349
  %v351 = vpop.f32.mrb[0].mxu0
  %v352 = vadd.f32 %v96, %v351
  %353 = vmatprep.mubr.bf16.mxu0 0
  %354 = vmatmul.mubr.bf16.gmra.mrb[0].mxu0 %v177
  %v355 = vpop.f32.mrb[0].mxu0
  %v356 = vadd.f32 %v92, %v355
  %v357 = vpop.f32.mrb[0].mxu0
  %v358 = vadd.f32 %v96, %v357
  %v359 = vpop.f32.mrb[0].mxu0
  %v360 = vadd.f32 %v92, %v359
  %v361 = vpop.f32.mrb[0].mxu0
  %v362 = vadd.f32 %v96, %v361
  %363 = vmatprep.mubr.bf16.mxu0 0
  %364 = vmatmul.mubr.bf16.gmra.mrb[0].mxu0 %v180
  %v365 = vpop.f32.mrb[0].mxu0
  %v366 = vadd.f32 %v92, %v365
  %v367 = vpop.f32.mrb[0].mxu0
  %v368 = vadd.f32 %v96, %v367
  %v369 = vpop.f32.mrb[0].mxu0
  %v370 = vadd.f32 %v92, %v369
  %v371 = vpop.f32.mrb[0].mxu0
  %v372 = vadd.f32 %v96, %v371
  %373 = vmatprep.mubr.bf16.mxu0 0
  %374 = vmatmul.mubr.bf16.gmra.mrb[0].mxu0 %v183
  %v375 = vpop.f32.mrb[0].mxu0
  %v376 = vadd.f32 %v92, %v375
  %v377 = vpop.f32.mrb[0].mxu0
  %v378 = vadd.f32 %v96, %v377
  %v379 = vpop.f32.mrb[0].mxu0
  %v380 = vadd.f32 %v92, %v379
  %v381 = vpop.f32.mrb[0].mxu0
  %v382 = vadd.f32 %v96, %v381
  %383 = vmatprep.mubr.bf16.mxu0 0
  %384 = vmatmul.mubr.bf16.gmra.mrb[0].mxu0 %v186
  %v385 = vpop.f32.mrb[0].mxu0
  %v386 = vadd.f32 %v92, %v385
  %v387 = vpop.f32.mrb[0].mxu0
  %v388 = vadd.f32 %v96, %v387
  %v389 = vpop.f32.mrb[0].mxu0
  %v390 = vadd.f32 %v92, %v389
  %v391 = vpop.f32.mrb[0].mxu0
  %v392 = vadd.f32 %v96, %v391
  %393 = vdwg.mxu0
  %394 = vmatprep.subr.bf16.mxu0 %v130
  %395 = vmatpush1.bf16.msra.mxu0 %v129
  %396 = vmatprep.subr.bf16.mxu0 %v199
  %397 = vmatpush1.bf16.msra.mxu0 %v196
  %398 = vmatprep.subr.bf16.mxu0 0
  %399 = vmatpush1.bf16.msra.mxu0 0
  %400 = vmatprep.subr.bf16.mxu0 0
  %401 = vmatpush1.bf16.msra.mxu0 0
  %402 = vmatprep.subr.bf16.mxu0 0
  %403 = vmatpush1.bf16.msra.mxu0 0
  %404 = vmatprep.subr.bf16.mxu0 0
  %405 = vmatpush1.bf16.msra.mxu0 0
  %406 = vmatprep.subr.bf16.mxu0 0
  %407 = vmatpush1.bf16.msra.mxu0 0
  %408 = vmatprep.subr.bf16.mxu0 0
  %409 = vmatpush1.bf16.msra.mxu0 0
  %410 = vmatprep.subr.bf16.mxu0 0
  %411 = vmatpush1.bf16.msra.mxu0 0
  %412 = vmatprep.subr.bf16.mxu0 0
  %413 = vmatpush1.bf16.msra.mxu0 0
  %414 = vmatprep.subr.bf16.mxu0 0
  %415 = vmatpush1.bf16.msra.mxu0 0
  %416 = vmatprep.subr.bf16.mxu0 0
  %417 = vmatpush1.bf16.msra.mxu0 0
  %418 = vmatprep.subr.bf16.mxu0 0
  %419 = vmatpush1.bf16.msra.mxu0 0
  %420 = vmatprep.subr.bf16.mxu0 0
  %421 = vmatpush1.bf16.msra.mxu0 0
  %422 = vmatprep.subr.bf16.mxu0 0
  %423 = vmatpush1.bf16.msra.mxu0 0
  %424 = vmatprep.subr.bf16.mxu0 0
  %425 = vmatpush1.bf16.msra.mxu0 0
  %426 = vmatprep.mubr.bf16.mxu0 0
  %427 = vmatmul.mubr.bf16.gmra.mrb[0].mxu0 %v141
  %v428 = vpop.f32.mrb[0].mxu0
  %v429 = vadd.f32 %v100, %v428
  %v430 = vpop.f32.mrb[0].mxu0
  %v431 = vadd.f32 %v104, %v430
  %v432 = vpop.f32.mrb[0].mxu0
  %v433 = vadd.f32 %v100, %v432
  %v434 = vpop.f32.mrb[0].mxu0
  %v435 = vadd.f32 %v104, %v434
  %436 = vmatprep.mubr.bf16.mxu0 0
  %437 = vmatmul.mubr.bf16.gmra.mrb[0].mxu0 %v144
  %v438 = vpop.f32.mrb[0].mxu0
  %v439 = vadd.f32 %v100, %v438
  %v440 = vpop.f32.mrb[0].mxu0
  %v441 = vadd.f32 %v104, %v440
  %v442 = vpop.f32.mrb[0].mxu0
  %v443 = vadd.f32 %v100, %v442
  %v444 = vpop.f32.mrb[0].mxu0
  %v445 = vadd.f32 %v104, %v444
  %446 = vmatprep.mubr.bf16.mxu0 0
  %447 = vmatmul.mubr.bf16.gmra.mrb[0].mxu0 %v147
  %v448 = vpop.f32.mrb[0].mxu0
  %v449 = vadd.f32 %v100, %v448
  %v450 = vpop.f32.mrb[0].mxu0
  %v451 = vadd.f32 %v104, %v450
  %v452 = vpop.f32.mrb[0].mxu0
  %v453 = vadd.f32 %v100, %v452
  %v454 = vpop.f32.mrb[0].mxu0
  %v455 = vadd.f32 %v104, %v454
  %456 = vmatprep.mubr.bf16.mxu0 0
  %457 = vmatmul.mubr.bf16.gmra.mrb[0].mxu0 %v150
  %v458 = vpop.f32.mrb[0].mxu0
  %v459 = vadd.f32 %v100, %v458
  %v460 = vpop.f32.mrb[0].mxu0
  %v461 = vadd.f32 %v104, %v460
  %v462 = vpop.f32.mrb[0].mxu0
  %v463 = vadd.f32 %v100, %v462
  %v464 = vpop.f32.mrb[0].mxu0
  %v465 = vadd.f32 %v104, %v464
  %466 = vmatprep.mubr.bf16.mxu0 0
  %467 = vmatmul.mubr.bf16.gmra.mrb[0].mxu0 %v153
  %v468 = vpop.f32.mrb[0].mxu0
  %v469 = vadd.f32 %v100, %v468
  %v470 = vpop.f32.mrb[0].mxu0
  %v471 = vadd.f32 %v104, %v470
  %v472 = vpop.f32.mrb[0].mxu0
  %v473 = vadd.f32 %v100, %v472
  %v474 = vpop.f32.mrb[0].mxu0
  %v475 = vadd.f32 %v104, %v474
  %476 = vmatprep.mubr.bf16.mxu0 0
  %477 = vmatmul.mubr.bf16.gmra.mrb[0].mxu0 %v156
  %v478 = vpop.f32.mrb[0].mxu0
  %v479 = vadd.f32 %v100, %v478
  %v480 = vpop.f32.mrb[0].mxu0
  %v481 = vadd.f32 %v104, %v480
  %v482 = vpop.f32.mrb[0].mxu0
  %v483 = vadd.f32 %v100, %v482
  %v484 = vpop.f32.mrb[0].mxu0
  %v485 = vadd.f32 %v104, %v484
  %486 = vmatprep.mubr.bf16.mxu0 0
  %487 = vmatmul.mubr.bf16.gmra.mrb[0].mxu0 %v159
  %v488 = vpop.f32.mrb[0].mxu0
  %v489 = vadd.f32 %v100, %v488
  %v490 = vpop.f32.mrb[0].mxu0
  %v491 = vadd.f32 %v104, %v490
  %v492 = vpop.f32.mrb[0].mxu0
  %v493 = vadd.f32 %v100, %v492
  %v494 = vpop.f32.mrb[0].mxu0
  %v495 = vadd.f32 %v104, %v494
  %496 = vmatprep.mubr.bf16.mxu0 0
  %497 = vmatmul.mubr.bf16.gmra.mrb[0].mxu0 %v162
  %v498 = vpop.f32.mrb[0].mxu0
  %v499 = vadd.f32 %v100, %v498
  %v500 = vpop.f32.mrb[0].mxu0
  %v501 = vadd.f32 %v104, %v500
  %v502 = vpop.f32.mrb[0].mxu0
  %v503 = vadd.f32 %v100, %v502
  %v504 = vpop.f32.mrb[0].mxu0
  %v505 = vadd.f32 %v104, %v504
  %506 = vmatprep.mubr.bf16.mxu0 0
  %507 = vmatmul.mubr.bf16.gmra.mrb[0].mxu0 %v165
  %v508 = vpop.f32.mrb[0].mxu0
  %v509 = vadd.f32 %v100, %v508
  %v510 = vpop.f32.mrb[0].mxu0
  %v511 = vadd.f32 %v104, %v510
  %v512 = vpop.f32.mrb[0].mxu0
  %v513 = vadd.f32 %v100, %v512
  %v514 = vpop.f32.mrb[0].mxu0
  %v515 = vadd.f32 %v104, %v514
  %516 = vmatprep.mubr.bf16.mxu0 0
  %517 = vmatmul.mubr.bf16.gmra.mrb[0].mxu0 %v168
  %v518 = vpop.f32.mrb[0].mxu0
  %v519 = vadd.f32 %v100, %v518
  %v520 = vpop.f32.mrb[0].mxu0
  %v521 = vadd.f32 %v104, %v520
  %v522 = vpop.f32.mrb[0].mxu0
  %v523 = vadd.f32 %v100, %v522
  %v524 = vpop.f32.mrb[0].mxu0
  %v525 = vadd.f32 %v104, %v524
  %526 = vmatprep.mubr.bf16.mxu0 0
  %527 = vmatmul.mubr.bf16.gmra.mrb[0].mxu0 %v171
  %v528 = vpop.f32.mrb[0].mxu0
  %v529 = vadd.f32 %v100, %v528
  %v530 = vpop.f32.mrb[0].mxu0
  %v531 = vadd.f32 %v104, %v530
  %v532 = vpop.f32.mrb[0].mxu0
  %v533 = vadd.f32 %v100, %v532
  %v534 = vpop.f32.mrb[0].mxu0
  %v535 = vadd.f32 %v104, %v534
  %536 = vmatprep.mubr.bf16.mxu0 0
  %537 = vmatmul.mubr.bf16.gmra.mrb[0].mxu0 %v174
  %v538 = vpop.f32.mrb[0].mxu0
  %v539 = vadd.f32 %v100, %v538
  %v540 = vpop.f32.mrb[0].mxu0
  %v541 = vadd.f32 %v104, %v540
  %v542 = vpop.f32.mrb[0].mxu0
  %v543 = vadd.f32 %v100, %v542
  %v544 = vpop.f32.mrb[0].mxu0
  %v545 = vadd.f32 %v104, %v544
  %546 = vmatprep.mubr.bf16.mxu0 0
  %547 = vmatmul.mubr.bf16.gmra.mrb[0].mxu0 %v177
  %v548 = vpop.f32.mrb[0].mxu0
  %v549 = vadd.f32 %v100, %v548
  %v550 = vpop.f32.mrb[0].mxu0
  %v551 = vadd.f32 %v104, %v550
  %v552 = vpop.f32.mrb[0].mxu0
  %v553 = vadd.f32 %v100, %v552
  %v554 = vpop.f32.mrb[0].mxu0
  %v555 = vadd.f32 %v104, %v554
  %556 = vmatprep.mubr.bf16.mxu0 0
  %557 = vmatmul.mubr.bf16.gmra.mrb[0].mxu0 %v180
  %v558 = vpop.f32.mrb[0].mxu0
  %v559 = vadd.f32 %v100, %v558
  %v560 = vpop.f32.mrb[0].mxu0
  %v561 = vadd.f32 %v104, %v560
  %v562 = vpop.f32.mrb[0].mxu0
  %v563 = vadd.f32 %v100, %v562
  %v564 = vpop.f32.mrb[0].mxu0
  %v565 = vadd.f32 %v104, %v564
  %566 = vmatprep.mubr.bf16.mxu0 0
  %567 = vmatmul.mubr.bf16.gmra.mrb[0].mxu0 %v183
  %v568 = vpop.f32.mrb[0].mxu0
  %v569 = vadd.f32 %v100, %v568
  %v570 = vpop.f32.mrb[0].mxu0
  %v571 = vadd.f32 %v104, %v570
  %v572 = vpop.f32.mrb[0].mxu0
  %v573 = vadd.f32 %v100, %v572
  %v574 = vpop.f32.mrb[0].mxu0
  %v575 = vadd.f32 %v104, %v574
  %576 = vmatprep.mubr.bf16.mxu0 0
  %577 = vmatmul.mubr.bf16.gmra.mrb[0].mxu0 %v186
  %v578 = vpop.f32.mrb[0].mxu0
  %v579 = vadd.f32 %v100, %v578
  %v580 = vpop.f32.mrb[0].mxu0
  %v581 = vadd.f32 %v104, %v580
  %v582 = vpop.f32.mrb[0].mxu0
  %v583 = vadd.f32 %v100, %v582
  %v584 = vpop.f32.mrb[0].mxu0
  %v585 = vadd.f32 %v104, %v584
  %586 = vdwg.mxu0
  %v587 = vmax.f32 %v236, 0.0
  %v588 = vmax.f32 %v238, 0.0
  %v589 = vmax.f32 %v429, 0.0
  %v590 = vmax.f32 %v431, 0.0
  %v591 = vmax.f32 %v240, 0.0
  %v592 = vmax.f32 %v242, 0.0
  %v593 = vmax.f32 %v433, 0.0
  %v594 = vmax.f32 %v435, 0.0
  %v595 = vmax.f32 %v246, 0.0
  %v596 = vmax.f32 %v248, 0.0
  %v597 = vmax.f32 %v439, 0.0
  %v598 = vmax.f32 %v441, 0.0
  %v599 = vmax.f32 %v250, 0.0
  %v600 = vmax.f32 %v252, 0.0
  %v601 = vmax.f32 %v443, 0.0
  %v602 = vmax.f32 %v445, 0.0
  %v603 = vmax.f32 %v256, 0.0
  %v604 = vmax.f32 %v258, 0.0
  %v605 = vmax.f32 %v449, 0.0
  %v606 = vmax.f32 %v451, 0.0
  %v607 = vmax.f32 %v260, 0.0
  %v608 = vmax.f32 %v262, 0.0
  %v609 = vmax.f32 %v453, 0.0
  %v610 = vmax.f32 %v455, 0.0
  %v611 = vmax.f32 %v266, 0.0
  %v612 = vmax.f32 %v268, 0.0
  %v613 = vmax.f32 %v459, 0.0
  %v614 = vmax.f32 %v461, 0.0
  %v615 = vmax.f32 %v270, 0.0
  %v616 = vmax.f32 %v272, 0.0
  %v617 = vmax.f32 %v463, 0.0
  %v618 = vmax.f32 %v465, 0.0
  %v619 = vmax.f32 %v276, 0.0
  %v620 = vmax.f32 %v278, 0.0
  %v621 = vmax.f32 %v469, 0.0
  %v622 = vmax.f32 %v471, 0.0
  %v623 = vmax.f32 %v280, 0.0
  %v624 = vmax.f32 %v282, 0.0
  %v625 = vmax.f32 %v473, 0.0
  %v626 = vmax.f32 %v475, 0.0
  %v627 = vmax.f32 %v286, 0.0
  %v628 = vmax.f32 %v288, 0.0
  %v629 = vmax.f32 %v479, 0.0
  %v630 = vmax.f32 %v481, 0.0
  %v631 = vmax.f32 %v290, 0.0
  %v632 = vmax.f32 %v292, 0.0
  %v633 = vmax.f32 %v483, 0.0
  %v634 = vmax.f32 %v485, 0.0
  %v635 = vmax.f32 %v296, 0.0
  %v636 = vmax.f32 %v298, 0.0
  %v637 = vmax.f32 %v489, 0.0
  %v638 = vmax.f32 %v491, 0.0
  %v639 = vmax.f32 %v300, 0.0
  %v640 = vmax.f32 %v302, 0.0
  %v641 = vmax.f32 %v493, 0.0
  %v642 = vmax.f32 %v495, 0.0
  %v643 = vmax.f32 %v306, 0.0
  %v644 = vmax.f32 %v308, 0.0
  %v645 = vmax.f32 %v499, 0.0
  %v646 = vmax.f32 %v501, 0.0
  %v647 = vmax.f32 %v310, 0.0
  %v648 = vmax.f32 %v312, 0.0
  %v649 = vmax.f32 %v503, 0.0
  %v650 = vmax.f32 %v505, 0.0
  %v651 = vmax.f32 %v316, 0.0
  %v652 = vmax.f32 %v318, 0.0
  %v653 = vmax.f32 %v509, 0.0
  %v654 = vmax.f32 %v511, 0.0
  %v655 = vmax.f32 %v320, 0.0
  %v656 = vmax.f32 %v322, 0.0
  %v657 = vmax.f32 %v513, 0.0
  %v658 = vmax.f32 %v515, 0.0
  %v659 = vmax.f32 %v326, 0.0
  %v660 = vmax.f32 %v328, 0.0
  %v661 = vmax.f32 %v519, 0.0
  %v662 = vmax.f32 %v521, 0.0
  %v663 = vmax.f32 %v330, 0.0
  %v664 = vmax.f32 %v332, 0.0
  %v665 = vmax.f32 %v523, 0.0
  %v666 = vmax.f32 %v525, 0.0
  %v667 = vmax.f32 %v336, 0.0
  %v668 = vmax.f32 %v338, 0.0
  %v669 = vmax.f32 %v529, 0.0
  %v670 = vmax.f32 %v531, 0.0
  %v671 = vmax.f32 %v340, 0.0
  %v672 = vmax.f32 %v342, 0.0
  %v673 = vmax.f32 %v533, 0.0
  %v674 = vmax.f32 %v535, 0.0
  %v675 = vmax.f32 %v346, 0.0
  %v676 = vmax.f32 %v348, 0.0
  %v677 = vmax.f32 %v539, 0.0
  %v678 = vmax.f32 %v541, 0.0
  %v679 = vmax.f32 %v350, 0.0
  %v680 = vmax.f32 %v352, 0.0
  %v681 = vmax.f32 %v543, 0.0
  %v682 = vmax.f32 %v545, 0.0
  %v683 = vmax.f32 %v356, 0.0
  %v684 = vmax.f32 %v358, 0.0
  %v685 = vmax.f32 %v549, 0.0
  %v686 = vmax.f32 %v551, 0.0
  %v687 = vmax.f32 %v360, 0.0
  %v688 = vmax.f32 %v362, 0.0
  %v689 = vmax.f32 %v553, 0.0
  %v690 = vmax.f32 %v555, 0.0
  %v691 = vmax.f32 %v366, 0.0
  %v692 = vmax.f32 %v368, 0.0
  %v693 = vmax.f32 %v559, 0.0
  %v694 = vmax.f32 %v561, 0.0
  %v695 = vmax.f32 %v370, 0.0
  %v696 = vmax.f32 %v372, 0.0
  %v697 = vmax.f32 %v563, 0.0
  %v698 = vmax.f32 %v565, 0.0
  %v699 = vmax.f32 %v376, 0.0
  %v700 = vmax.f32 %v378, 0.0
  %v701 = vmax.f32 %v569, 0.0
  %v702 = vmax.f32 %v571, 0.0
  %v703 = vmax.f32 %v380, 0.0
  %v704 = vmax.f32 %v382, 0.0
  %v705 = vmax.f32 %v573, 0.0
  %v706 = vmax.f32 %v575, 0.0
  %v707 = vmax.f32 %v386, 0.0
  %v708 = vmax.f32 %v388, 0.0
  %v709 = vmax.f32 %v579, 0.0
  %v710 = vmax.f32 %v581, 0.0
  %v711 = vmax.f32 %v390, 0.0
  %v712 = vmax.f32 %v392, 0.0
  %v713 = vmax.f32 %v583, 0.0
  %v714 = vmax.f32 %v585, 0.0
  %v715 = vpack.c.bf16 %v591, %v587
  %v716 = vpack.c.bf16 %v592, %v588
  %v717 = vpack.c.bf16 %v593, %v589
  %v718 = vpack.c.bf16 %v594, %v590
  %v719 = vpack.c.bf16 %v599, %v595
  %v720 = vpack.c.bf16 %v600, %v596
  %v721 = vpack.c.bf16 %v601, %v597
  %v722 = vpack.c.bf16 %v602, %v598
  %v723 = vpack.c.bf16 %v607, %v603
  %v724 = vpack.c.bf16 %v608, %v604
  %v725 = vpack.c.bf16 %v609, %v605
  %v726 = vpack.c.bf16 %v610, %v606
  %v727 = vpack.c.bf16 %v615, %v611
  %v728 = vpack.c.bf16 %v616, %v612
  %v729 = vpack.c.bf16 %v617, %v613
  %v730 = vpack.c.bf16 %v618, %v614
  %v731 = vpack.c.bf16 %v623, %v619
  %v732 = vpack.c.bf16 %v624, %v620
  %v733 = vpack.c.bf16 %v625, %v621
  %v734 = vpack.c.bf16 %v626, %v622
  %v735 = vpack.c.bf16 %v631, %v627
  %v736 = vpack.c.bf16 %v632, %v628
  %v737 = vpack.c.bf16 %v633, %v629
  %v738 = vpack.c.bf16 %v634, %v630
  %v739 = vpack.c.bf16 %v639, %v635
  %v740 = vpack.c.bf16 %v640, %v636
  %v741 = vpack.c.bf16 %v641, %v637
  %v742 = vpack.c.bf16 %v642, %v638
  %v743 = vpack.c.bf16 %v647, %v643
  %v744 = vpack.c.bf16 %v648, %v644
  %v745 = vpack.c.bf16 %v649, %v645
  %v746 = vpack.c.bf16 %v650, %v646
  %v747 = vpack.c.bf16 %v655, %v651
  %v748 = vpack.c.bf16 %v656, %v652
  %v749 = vpack.c.bf16 %v657, %v653
  %v750 = vpack.c.bf16 %v658, %v654
  %v751 = vpack.c.bf16 %v663, %v659
  %v752 = vpack.c.bf16 %v664, %v660
  %v753 = vpack.c.bf16 %v665, %v661
  %v754 = vpack.c.bf16 %v666, %v662
  %v755 = vpack.c.bf16 %v671, %v667
  %v756 = vpack.c.bf16 %v672, %v668
  %v757 = vpack.c.bf16 %v673, %v669
  %v758 = vpack.c.bf16 %v674, %v670
  %v759 = vpack.c.bf16 %v679, %v675
  %v760 = vpack.c.bf16 %v680, %v676
  %v761 = vpack.c.bf16 %v681, %v677
  %v762 = vpack.c.bf16 %v682, %v678
  %v763 = vpack.c.bf16 %v687, %v683
  %v764 = vpack.c.bf16 %v688, %v684
  %v765 = vpack.c.bf16 %v689, %v685
  %v766 = vpack.c.bf16 %v690, %v686
  %v767 = vpack.c.bf16 %v695, %v691
  %v768 = vpack.c.bf16 %v696, %v692
  %v769 = vpack.c.bf16 %v697, %v693
  %v770 = vpack.c.bf16 %v698, %v694
  %v771 = vpack.c.bf16 %v703, %v699
  %v772 = vpack.c.bf16 %v704, %v700
  %v773 = vpack.c.bf16 %v705, %v701
  %v774 = vpack.c.bf16 %v706, %v702
  %v775 = vpack.c.bf16 %v711, %v707
  %v776 = vpack.c.bf16 %v712, %v708
  %v777 = vpack.c.bf16 %v713, %v709
  %v778 = vpack.c.bf16 %v714, %v710
  %v779 = vld [vmem:[%s3] sm:$0xff]
  %v780 = vld [vmem:[%s3 + $0x8] sm:$0xff]
  %v781 = vld [vmem:[%s3 + $0x10] sm:$0xff]
  %v782 = vld [vmem:[%s3 + $0x18] sm:$0xff]
  %v783 = vld [vmem:[%s3 + $0x20] sm:$0xff]
  %v784 = vld [vmem:[%s3 + $0x28] sm:$0xff]
  %v785 = vld [vmem:[%s3 + $0x30] sm:$0xff]
  %v786 = vld [vmem:[%s3 + $0x38] sm:$0xff]
  %v787 = vld [vmem:[%s3 + $0x40] sm:$0xff]
  %v788 = vld [vmem:[%s3 + $0x48] sm:$0xff]
  %v789 = vld [vmem:[%s3 + $0x50] sm:$0xff]
  %v790 = vld [vmem:[%s3 + $0x58] sm:$0xff]
  %v791 = vld [vmem:[%s3 + $0x60] sm:$0xff]
  %v792 = vld [vmem:[%s3 + $0x68] sm:$0xff]
  %v793 = vld [vmem:[%s3 + $0x70] sm:$0xff]
  %v794 = vld [vmem:[%s3 + $0x78] sm:$0xff]
  %v795 = vld [vmem:[%s3 + $0x80] sm:$0xff]
  %v796 = vld [vmem:[%s3 + $0x88] sm:$0xff]
  %v797 = vld [vmem:[%s3 + $0x90] sm:$0xff]
  %v798 = vld [vmem:[%s3 + $0x98] sm:$0xff]
  %v799 = vld [vmem:[%s3 + $0xa0] sm:$0xff]
  %v800 = vld [vmem:[%s3 + $0xa8] sm:$0xff]
  %v801 = vld [vmem:[%s3 + $0xb0] sm:$0xff]
  %v802 = vld [vmem:[%s3 + $0xb8] sm:$0xff]
  %v803 = vld [vmem:[%s3 + $0xc0] sm:$0xff]
  %v804 = vld [vmem:[%s3 + $0xc8] sm:$0xff]
  %v805 = vld [vmem:[%s3 + $0xd0] sm:$0xff]
  %v806 = vld [vmem:[%s3 + $0xd8] sm:$0xff]
  %v807 = vld [vmem:[%s3 + $0xe0] sm:$0xff]
  %v808 = vld [vmem:[%s3 + $0xe8] sm:$0xff]
  %v809 = vld [vmem:[%s3 + $0xf0] sm:$0xff]
  %v810 = vld [vmem:[%s3 + $0xf8] sm:$0xff]
  %v811 = vld [vmem:[%s3 + $0x100] sm:$0xff]
  %v812 = vld [vmem:[%s3 + $0x108] sm:$0xff]
  %v813 = vld [vmem:[%s3 + $0x110] sm:$0xff]
  %v814 = vld [vmem:[%s3 + $0x118] sm:$0xff]
  %v815 = vld [vmem:[%s3 + $0x120] sm:$0xff]
  %v816 = vld [vmem:[%s3 + $0x128] sm:$0xff]
  %v817 = vld [vmem:[%s3 + $0x130] sm:$0xff]
  %v818 = vld [vmem:[%s3 + $0x138] sm:$0xff]
  %v819 = vld [vmem:[%s3 + $0x140] sm:$0xff]
  %v820 = vld [vmem:[%s3 + $0x148] sm:$0xff]
  %v821 = vld [vmem:[%s3 + $0x150] sm:$0xff]
  %v822 = vld [vmem:[%s3 + $0x158] sm:$0xff]
  %v823 = vld [vmem:[%s3 + $0x160] sm:$0xff]
  %v824 = vld [vmem:[%s3 + $0x168] sm:$0xff]
  %v825 = vld [vmem:[%s3 + $0x170] sm:$0xff]
  %v826 = vld [vmem:[%s3 + $0x178] sm:$0xff]
  %v827 = vld [vmem:[%s3 + $0x180] sm:$0xff]
  %v828 = vld [vmem:[%s3 + $0x188] sm:$0xff]
  %v829 = vld [vmem:[%s3 + $0x190] sm:$0xff]
  %v830 = vld [vmem:[%s3 + $0x198] sm:$0xff]
  %v831 = vld [vmem:[%s3 + $0x1a0] sm:$0xff]
  %v832 = vld [vmem:[%s3 + $0x1a8] sm:$0xff]
  %v833 = vld [vmem:[%s3 + $0x1b0] sm:$0xff]
  %v834 = vld [vmem:[%s3 + $0x1b8] sm:$0xff]
  %v835 = vld [vmem:[%s3 + $0x1c0] sm:$0xff]
  %v836 = vld [vmem:[%s3 + $0x1c8] sm:$0xff]
  %v837 = vld [vmem:[%s3 + $0x1d0] sm:$0xff]
  %v838 = vld [vmem:[%s3 + $0x1d8] sm:$0xff]
  %v839 = vld [vmem:[%s3 + $0x1e0] sm:$0xff]
  %v840 = vld [vmem:[%s3 + $0x1e8] sm:$0xff]
  %v841 = vld [vmem:[%s3 + $0x1f0] sm:$0xff]
  %v842 = vld [vmem:[%s3 + $0x1f8] sm:$0xff]
  %v843 = vld [vmem:[%s3 + $0x200] sm:$0xff]
  %v844 = vld [vmem:[%s3 + $0x208] sm:$0xff]
  %v845 = vld [vmem:[%s3 + $0x210] sm:$0xff]
  %v846 = vld [vmem:[%s3 + $0x218] sm:$0xff]
  %v847 = vld [vmem:[%s3 + $0x220] sm:$0xff]
  %v848 = vld [vmem:[%s3 + $0x228] sm:$0xff]
  %v849 = vld [vmem:[%s3 + $0x230] sm:$0xff]
  %v850 = vld [vmem:[%s3 + $0x238] sm:$0xff]
  %v851 = vld [vmem:[%s3 + $0x240] sm:$0xff]
  %v852 = vld [vmem:[%s3 + $0x248] sm:$0xff]
  %v853 = vld [vmem:[%s3 + $0x250] sm:$0xff]
  %v854 = vld [vmem:[%s3 + $0x258] sm:$0xff]
  %v855 = vld [vmem:[%s3 + $0x260] sm:$0xff]
  %v856 = vld [vmem:[%s3 + $0x268] sm:$0xff]
  %v857 = vld [vmem:[%s3 + $0x270] sm:$0xff]
  %v858 = vld [vmem:[%s3 + $0x278] sm:$0xff]
  %v859 = vld [vmem:[%s3 + $0x280] sm:$0xff]
  %v860 = vld [vmem:[%s3 + $0x288] sm:$0xff]
  %v861 = vld [vmem:[%s3 + $0x290] sm:$0xff]
  %v862 = vld [vmem:[%s3 + $0x298] sm:$0xff]
  %v863 = vld [vmem:[%s3 + $0x2a0] sm:$0xff]
  %v864 = vld [vmem:[%s3 + $0x2a8] sm:$0xff]
  %v865 = vld [vmem:[%s3 + $0x2b0] sm:$0xff]
  %v866 = vld [vmem:[%s3 + $0x2b8] sm:$0xff]
  %v867 = vld [vmem:[%s3 + $0x2c0] sm:$0xff]
  %v868 = vld [vmem:[%s3 + $0x2c8] sm:$0xff]
  %v869 = vld [vmem:[%s3 + $0x2d0] sm:$0xff]
  %v870 = vld [vmem:[%s3 + $0x2d8] sm:$0xff]
  %v871 = vld [vmem:[%s3 + $0x2e0] sm:$0xff]
  %v872 = vld [vmem:[%s3 + $0x2e8] sm:$0xff]
  %v873 = vld [vmem:[%s3 + $0x2f0] sm:$0xff]
  %v874 = vld [vmem:[%s3 + $0x2f8] sm:$0xff]
  %v875 = vld [vmem:[%s3 + $0x300] sm:$0xff]
  %v876 = vld [vmem:[%s3 + $0x308] sm:$0xff]
  %v877 = vld [vmem:[%s3 + $0x310] sm:$0xff]
  %v878 = vld [vmem:[%s3 + $0x318] sm:$0xff]
  %v879 = vld [vmem:[%s3 + $0x320] sm:$0xff]
  %v880 = vld [vmem:[%s3 + $0x328] sm:$0xff]
  %v881 = vld [vmem:[%s3 + $0x330] sm:$0xff]
  %v882 = vld [vmem:[%s3 + $0x338] sm:$0xff]
  %v883 = vld [vmem:[%s3 + $0x340] sm:$0xff]
  %v884 = vld [vmem:[%s3 + $0x348] sm:$0xff]
  %v885 = vld [vmem:[%s3 + $0x350] sm:$0xff]
  %v886 = vld [vmem:[%s3 + $0x358] sm:$0xff]
  %v887 = vld [vmem:[%s3 + $0x360] sm:$0xff]
  %v888 = vld [vmem:[%s3 + $0x368] sm:$0xff]
  %v889 = vld [vmem:[%s3 + $0x370] sm:$0xff]
  %v890 = vld [vmem:[%s3 + $0x378] sm:$0xff]
  %v891 = vld [vmem:[%s3 + $0x380] sm:$0xff]
  %v892 = vld [vmem:[%s3 + $0x388] sm:$0xff]
  %v893 = vld [vmem:[%s3 + $0x390] sm:$0xff]
  %v894 = vld [vmem:[%s3 + $0x398] sm:$0xff]
  %v895 = vld [vmem:[%s3 + $0x3a0] sm:$0xff]
  %v896 = vld [vmem:[%s3 + $0x3a8] sm:$0xff]
  %v897 = vld [vmem:[%s3 + $0x3b0] sm:$0xff]
  %v898 = vld [vmem:[%s3 + $0x3b8] sm:$0xff]
  %v899 = vld [vmem:[%s3 + $0x3c0] sm:$0xff]
  %v900 = vld [vmem:[%s3 + $0x3c8] sm:$0xff]
  %v901 = vld [vmem:[%s3 + $0x3d0] sm:$0xff]
  %v902 = vld [vmem:[%s3 + $0x3d8] sm:$0xff]
  %v903 = vld [vmem:[%s3 + $0x3e0] sm:$0xff]
  %v904 = vld [vmem:[%s3 + $0x3e8] sm:$0xff]
  %v905 = vld [vmem:[%s3 + $0x3f0] sm:$0xff]
  %v906 = vld [vmem:[%s3 + $0x3f8] sm:$0xff]
  %v907 = vld [vmem:[%s4] sm:$0xf]
  %v909 = vlaneseq
  %v910 = vshrl.u32 %v909, 7
  %v911 = vsub.s32 0, %v910
  %v912 = vrot.slane %v907, %v911
  %v913 = vlaneseq
  %v914 = vshrl.u32 %v913, 7
  %v915 = vsub.s32 1, %v914
  %v916 = vrot.slane %v907, %v915
  %v917 = vlaneseq
  %v918 = vshrl.u32 %v917, 7
  %v919 = vsub.s32 2, %v918
  %v920 = vrot.slane %v907, %v919
  %v921 = vlaneseq
  %v922 = vshrl.u32 %v921, 7
  %v923 = vsub.s32 3, %v922
  %v924 = vrot.slane %v907, %v923
  %v1057 = vunpack.c.l.b16 %v779
  %v1058 = vunpack.c.h.b16 %v779
  %v1059 = vunpack.c.l.b16 %v780
  %v1060 = vunpack.c.h.b16 %v780
  %v1061 = vunpack.c.l.b16 %v781
  %v1062 = vunpack.c.h.b16 %v781
  %v1063 = vunpack.c.l.b16 %v782
  %v1064 = vunpack.c.h.b16 %v782
  %v1065 = vunpack.c.l.b16 %v783
  %v1066 = vunpack.c.h.b16 %v783
  %v1067 = vunpack.c.l.b16 %v784
  %v1068 = vunpack.c.h.b16 %v784
  %v1069 = vunpack.c.l.b16 %v785
  %v1070 = vunpack.c.h.b16 %v785
  %v1071 = vunpack.c.l.b16 %v786
  %v1072 = vunpack.c.h.b16 %v786
  %v1073 = vunpack.c.l.b16 %v787
  %v1074 = vunpack.c.h.b16 %v787
  %v1075 = vunpack.c.l.b16 %v788
  %v1076 = vunpack.c.h.b16 %v788
  %v1077 = vunpack.c.l.b16 %v789
  %v1078 = vunpack.c.h.b16 %v789
  %v1079 = vunpack.c.l.b16 %v790
  %v1080 = vunpack.c.h.b16 %v790
  %v1081 = vunpack.c.l.b16 %v791
  %v1082 = vunpack.c.h.b16 %v791
  %v1083 = vunpack.c.l.b16 %v792
  %v1084 = vunpack.c.h.b16 %v792
  %v1085 = vunpack.c.l.b16 %v793
  %v1086 = vunpack.c.h.b16 %v793
  %v1087 = vunpack.c.l.b16 %v794
  %v1088 = vunpack.c.h.b16 %v794
  %v1089 = vunpack.c.l.b16 %v795
  %v1090 = vunpack.c.h.b16 %v795
  %v1091 = vunpack.c.l.b16 %v796
  %v1092 = vunpack.c.h.b16 %v796
  %v1093 = vunpack.c.l.b16 %v797
  %v1094 = vunpack.c.h.b16 %v797
  %v1095 = vunpack.c.l.b16 %v798
  %v1096 = vunpack.c.h.b16 %v798
  %v1097 = vunpack.c.l.b16 %v799
  %v1098 = vunpack.c.h.b16 %v799
  %v1099 = vunpack.c.l.b16 %v800
  %v1100 = vunpack.c.h.b16 %v800
  %v1101 = vunpack.c.l.b16 %v801
  %v1102 = vunpack.c.h.b16 %v801
  %v1103 = vunpack.c.l.b16 %v802
  %v1104 = vunpack.c.h.b16 %v802
  %v1105 = vunpack.c.l.b16 %v803
  %v1106 = vunpack.c.h.b16 %v803
  %v1107 = vunpack.c.l.b16 %v804
  %v1108 = vunpack.c.h.b16 %v804
  %v1109 = vunpack.c.l.b16 %v805
  %v1110 = vunpack.c.h.b16 %v805
  %v1111 = vunpack.c.l.b16 %v806
  %v1112 = vunpack.c.h.b16 %v806
  %v1113 = vunpack.c.l.b16 %v807
  %v1114 = vunpack.c.h.b16 %v807
  %v1115 = vunpack.c.l.b16 %v808
  %v1116 = vunpack.c.h.b16 %v808
  %v1117 = vunpack.c.l.b16 %v809
  %v1118 = vunpack.c.h.b16 %v809
  %v1119 = vunpack.c.l.b16 %v810
  %v1120 = vunpack.c.h.b16 %v810
  %v1121 = vunpack.c.l.b16 %v811
  %v1122 = vunpack.c.h.b16 %v811
  %v1123 = vunpack.c.l.b16 %v812
  %v1124 = vunpack.c.h.b16 %v812
  %v1125 = vunpack.c.l.b16 %v813
  %v1126 = vunpack.c.h.b16 %v813
  %v1127 = vunpack.c.l.b16 %v814
  %v1128 = vunpack.c.h.b16 %v814
  %v1129 = vunpack.c.l.b16 %v815
  %v1130 = vunpack.c.h.b16 %v815
  %v1131 = vunpack.c.l.b16 %v816
  %v1132 = vunpack.c.h.b16 %v816
  %v1133 = vunpack.c.l.b16 %v817
  %v1134 = vunpack.c.h.b16 %v817
  %v1135 = vunpack.c.l.b16 %v818
  %v1136 = vunpack.c.h.b16 %v818
  %v1137 = vunpack.c.l.b16 %v819
  %v1138 = vunpack.c.h.b16 %v819
  %v1139 = vunpack.c.l.b16 %v820
  %v1140 = vunpack.c.h.b16 %v820
  %v1141 = vunpack.c.l.b16 %v821
  %v1142 = vunpack.c.h.b16 %v821
  %v1143 = vunpack.c.l.b16 %v822
  %v1144 = vunpack.c.h.b16 %v822
  %v1145 = vunpack.c.l.b16 %v823
  %v1146 = vunpack.c.h.b16 %v823
  %v1147 = vunpack.c.l.b16 %v824
  %v1148 = vunpack.c.h.b16 %v824
  %v1149 = vunpack.c.l.b16 %v825
  %v1150 = vunpack.c.h.b16 %v825
  %v1151 = vunpack.c.l.b16 %v826
  %v1152 = vunpack.c.h.b16 %v826
  %v1153 = vunpack.c.l.b16 %v827
  %v1154 = vunpack.c.h.b16 %v827
  %v1155 = vunpack.c.l.b16 %v828
  %v1156 = vunpack.c.h.b16 %v828
  %v1157 = vunpack.c.l.b16 %v829
  %v1158 = vunpack.c.h.b16 %v829
  %v1159 = vunpack.c.l.b16 %v830
  %v1160 = vunpack.c.h.b16 %v830
  %v1161 = vunpack.c.l.b16 %v831
  %v1162 = vunpack.c.h.b16 %v831
  %v1163 = vunpack.c.l.b16 %v832
  %v1164 = vunpack.c.h.b16 %v832
  %v1165 = vunpack.c.l.b16 %v833
  %v1166 = vunpack.c.h.b16 %v833
  %v1167 = vunpack.c.l.b16 %v834
  %v1168 = vunpack.c.h.b16 %v834
  %v1169 = vunpack.c.l.b16 %v835
  %v1170 = vunpack.c.h.b16 %v835
  %v1171 = vunpack.c.l.b16 %v836
  %v1172 = vunpack.c.h.b16 %v836
  %v1173 = vunpack.c.l.b16 %v837
  %v1174 = vunpack.c.h.b16 %v837
  %v1175 = vunpack.c.l.b16 %v838
  %v1176 = vunpack.c.h.b16 %v838
  %v1177 = vunpack.c.l.b16 %v839
  %v1178 = vunpack.c.h.b16 %v839
  %v1179 = vunpack.c.l.b16 %v840
  %v1180 = vunpack.c.h.b16 %v840
  %v1181 = vunpack.c.l.b16 %v841
  %v1182 = vunpack.c.h.b16 %v841
  %v1183 = vunpack.c.l.b16 %v842
  %v1184 = vunpack.c.h.b16 %v842
  %v1185 = vunpack.c.l.b16 %v843
  %v1186 = vunpack.c.h.b16 %v843
  %v1187 = vunpack.c.l.b16 %v844
  %v1188 = vunpack.c.h.b16 %v844
  %v1189 = vunpack.c.l.b16 %v845
  %v1190 = vunpack.c.h.b16 %v845
  %v1191 = vunpack.c.l.b16 %v846
  %v1192 = vunpack.c.h.b16 %v846
  %v1193 = vunpack.c.l.b16 %v847
  %v1194 = vunpack.c.h.b16 %v847
  %v1195 = vunpack.c.l.b16 %v848
  %v1196 = vunpack.c.h.b16 %v848
  %v1197 = vunpack.c.l.b16 %v849
  %v1198 = vunpack.c.h.b16 %v849
  %v1199 = vunpack.c.l.b16 %v850
  %v1200 = vunpack.c.h.b16 %v850
  %v1201 = vunpack.c.l.b16 %v851
  %v1202 = vunpack.c.h.b16 %v851
  %v1203 = vunpack.c.l.b16 %v852
  %v1204 = vunpack.c.h.b16 %v852
  %v1205 = vunpack.c.l.b16 %v853
  %v1206 = vunpack.c.h.b16 %v853
  %v1207 = vunpack.c.l.b16 %v854
  %v1208 = vunpack.c.h.b16 %v854
  %v1209 = vunpack.c.l.b16 %v855
  %v1210 = vunpack.c.h.b16 %v855
  %v1211 = vunpack.c.l.b16 %v856
  %v1212 = vunpack.c.h.b16 %v856
  %v1213 = vunpack.c.l.b16 %v857
  %v1214 = vunpack.c.h.b16 %v857
  %v1215 = vunpack.c.l.b16 %v858
  %v1216 = vunpack.c.h.b16 %v858
  %v1217 = vunpack.c.l.b16 %v859
  %v1218 = vunpack.c.h.b16 %v859
  %v1219 = vunpack.c.l.b16 %v860
  %v1220 = vunpack.c.h.b16 %v860
  %v1221 = vunpack.c.l.b16 %v861
  %v1222 = vunpack.c.h.b16 %v861
  %v1223 = vunpack.c.l.b16 %v862
  %v1224 = vunpack.c.h.b16 %v862
  %v1225 = vunpack.c.l.b16 %v863
  %v1226 = vunpack.c.h.b16 %v863
  %v1227 = vunpack.c.l.b16 %v864
  %v1228 = vunpack.c.h.b16 %v864
  %v1229 = vunpack.c.l.b16 %v865
  %v1230 = vunpack.c.h.b16 %v865
  %v1231 = vunpack.c.l.b16 %v866
  %v1232 = vunpack.c.h.b16 %v866
  %v1233 = vunpack.c.l.b16 %v867
  %v1234 = vunpack.c.h.b16 %v867
  %v1235 = vunpack.c.l.b16 %v868
  %v1236 = vunpack.c.h.b16 %v868
  %v1237 = vunpack.c.l.b16 %v869
  %v1238 = vunpack.c.h.b16 %v869
  %v1239 = vunpack.c.l.b16 %v870
  %v1240 = vunpack.c.h.b16 %v870
  %v1241 = vunpack.c.l.b16 %v871
  %v1242 = vunpack.c.h.b16 %v871
  %v1243 = vunpack.c.l.b16 %v872
  %v1244 = vunpack.c.h.b16 %v872
  %v1245 = vunpack.c.l.b16 %v873
  %v1246 = vunpack.c.h.b16 %v873
  %v1247 = vunpack.c.l.b16 %v874
  %v1248 = vunpack.c.h.b16 %v874
  %v1249 = vunpack.c.l.b16 %v875
  %v1250 = vunpack.c.h.b16 %v875
  %v1251 = vunpack.c.l.b16 %v876
  %v1252 = vunpack.c.h.b16 %v876
  %v1253 = vunpack.c.l.b16 %v877
  %v1254 = vunpack.c.h.b16 %v877
  %v1255 = vunpack.c.l.b16 %v878
  %v1256 = vunpack.c.h.b16 %v878
  %v1257 = vunpack.c.l.b16 %v879
  %v1258 = vunpack.c.h.b16 %v879
  %v1259 = vunpack.c.l.b16 %v880
  %v1260 = vunpack.c.h.b16 %v880
  %v1261 = vunpack.c.l.b16 %v881
  %v1262 = vunpack.c.h.b16 %v881
  %v1263 = vunpack.c.l.b16 %v882
  %v1264 = vunpack.c.h.b16 %v882
  %v1265 = vunpack.c.l.b16 %v883
  %v1266 = vunpack.c.h.b16 %v883
  %v1267 = vunpack.c.l.b16 %v884
  %v1268 = vunpack.c.h.b16 %v884
  %v1269 = vunpack.c.l.b16 %v885
  %v1270 = vunpack.c.h.b16 %v885
  %v1271 = vunpack.c.l.b16 %v886
  %v1272 = vunpack.c.h.b16 %v886
  %v1273 = vunpack.c.l.b16 %v887
  %v1274 = vunpack.c.h.b16 %v887
  %v1275 = vunpack.c.l.b16 %v888
  %v1276 = vunpack.c.h.b16 %v888
  %v1277 = vunpack.c.l.b16 %v889
  %v1278 = vunpack.c.h.b16 %v889
  %v1279 = vunpack.c.l.b16 %v890
  %v1280 = vunpack.c.h.b16 %v890
  %v1281 = vunpack.c.l.b16 %v891
  %v1282 = vunpack.c.h.b16 %v891
  %v1283 = vunpack.c.l.b16 %v892
  %v1284 = vunpack.c.h.b16 %v892
  %v1285 = vunpack.c.l.b16 %v893
  %v1286 = vunpack.c.h.b16 %v893
  %v1287 = vunpack.c.l.b16 %v894
  %v1288 = vunpack.c.h.b16 %v894
  %v1289 = vunpack.c.l.b16 %v895
  %v1290 = vunpack.c.h.b16 %v895
  %v1291 = vunpack.c.l.b16 %v896
  %v1292 = vunpack.c.h.b16 %v896
  %v1293 = vunpack.c.l.b16 %v897
  %v1294 = vunpack.c.h.b16 %v897
  %v1295 = vunpack.c.l.b16 %v898
  %v1296 = vunpack.c.h.b16 %v898
  %v1297 = vunpack.c.l.b16 %v899
  %v1298 = vunpack.c.h.b16 %v899
  %v1299 = vunpack.c.l.b16 %v900
  %v1300 = vunpack.c.h.b16 %v900
  %v1301 = vunpack.c.l.b16 %v901
  %v1302 = vunpack.c.h.b16 %v901
  %v1303 = vunpack.c.l.b16 %v902
  %v1304 = vunpack.c.h.b16 %v902
  %v1305 = vunpack.c.l.b16 %v903
  %v1306 = vunpack.c.h.b16 %v903
  %v1307 = vunpack.c.l.b16 %v904
  %v1308 = vunpack.c.h.b16 %v904
  %v1309 = vunpack.c.l.b16 %v905
  %v1310 = vunpack.c.h.b16 %v905
  %v1311 = vunpack.c.l.b16 %v906
  %v1312 = vunpack.c.h.b16 %v906
  %v1313 = vpack.c.b16 %v1061, %v1057
  %v1314 = vpack.c.b16 %v1062, %v1058
  %v1315 = vpack.c.b16 %v1063, %v1059
  %v1316 = vpack.c.b16 %v1064, %v1060
  %v1317 = vpack.c.b16 %v1069, %v1065
  %v1318 = vpack.c.b16 %v1070, %v1066
  %v1319 = vpack.c.b16 %v1071, %v1067
  %v1320 = vpack.c.b16 %v1072, %v1068
  %v1321 = vpack.c.b16 %v1077, %v1073
  %v1322 = vpack.c.b16 %v1078, %v1074
  %v1323 = vpack.c.b16 %v1079, %v1075
  %v1324 = vpack.c.b16 %v1080, %v1076
  %v1325 = vpack.c.b16 %v1085, %v1081
  %v1326 = vpack.c.b16 %v1086, %v1082
  %v1327 = vpack.c.b16 %v1087, %v1083
  %v1328 = vpack.c.b16 %v1088, %v1084
  %v1329 = vpack.c.b16 %v1093, %v1089
  %v1330 = vpack.c.b16 %v1094, %v1090
  %v1331 = vpack.c.b16 %v1095, %v1091
  %v1332 = vpack.c.b16 %v1096, %v1092
  %v1333 = vpack.c.b16 %v1101, %v1097
  %v1334 = vpack.c.b16 %v1102, %v1098
  %v1335 = vpack.c.b16 %v1103, %v1099
  %v1336 = vpack.c.b16 %v1104, %v1100
  %v1337 = vpack.c.b16 %v1109, %v1105
  %v1338 = vpack.c.b16 %v1110, %v1106
  %v1339 = vpack.c.b16 %v1111, %v1107
  %v1340 = vpack.c.b16 %v1112, %v1108
  %v1341 = vpack.c.b16 %v1117, %v1113
  %v1342 = vpack.c.b16 %v1118, %v1114
  %v1343 = vpack.c.b16 %v1119, %v1115
  %v1344 = vpack.c.b16 %v1120, %v1116
  %v1345 = vpack.c.b16 %v1125, %v1121
  %v1346 = vpack.c.b16 %v1126, %v1122
  %v1347 = vpack.c.b16 %v1127, %v1123
  %v1348 = vpack.c.b16 %v1128, %v1124
  %v1349 = vpack.c.b16 %v1133, %v1129
  %v1350 = vpack.c.b16 %v1134, %v1130
  %v1351 = vpack.c.b16 %v1135, %v1131
  %v1352 = vpack.c.b16 %v1136, %v1132
  %v1353 = vpack.c.b16 %v1141, %v1137
  %v1354 = vpack.c.b16 %v1142, %v1138
  %v1355 = vpack.c.b16 %v1143, %v1139
  %v1356 = vpack.c.b16 %v1144, %v1140
  %v1357 = vpack.c.b16 %v1149, %v1145
  %v1358 = vpack.c.b16 %v1150, %v1146
  %v1359 = vpack.c.b16 %v1151, %v1147
  %v1360 = vpack.c.b16 %v1152, %v1148
  %v1361 = vpack.c.b16 %v1157, %v1153
  %v1362 = vpack.c.b16 %v1158, %v1154
  %v1363 = vpack.c.b16 %v1159, %v1155
  %v1364 = vpack.c.b16 %v1160, %v1156
  %v1365 = vpack.c.b16 %v1165, %v1161
  %v1366 = vpack.c.b16 %v1166, %v1162
  %v1367 = vpack.c.b16 %v1167, %v1163
  %v1368 = vpack.c.b16 %v1168, %v1164
  %v1369 = vpack.c.b16 %v1173, %v1169
  %v1370 = vpack.c.b16 %v1174, %v1170
  %v1371 = vpack.c.b16 %v1175, %v1171
  %v1372 = vpack.c.b16 %v1176, %v1172
  %v1373 = vpack.c.b16 %v1181, %v1177
  %v1374 = vpack.c.b16 %v1182, %v1178
  %v1375 = vpack.c.b16 %v1183, %v1179
  %v1376 = vpack.c.b16 %v1184, %v1180
  %v1377 = vpack.c.b16 %v1189, %v1185
  %v1378 = vpack.c.b16 %v1190, %v1186
  %v1379 = vpack.c.b16 %v1191, %v1187
  %v1380 = vpack.c.b16 %v1192, %v1188
  %v1381 = vpack.c.b16 %v1197, %v1193
  %v1382 = vpack.c.b16 %v1198, %v1194
  %v1383 = vpack.c.b16 %v1199, %v1195
  %v1384 = vpack.c.b16 %v1200, %v1196
  %v1385 = vpack.c.b16 %v1205, %v1201
  %v1386 = vpack.c.b16 %v1206, %v1202
  %v1387 = vpack.c.b16 %v1207, %v1203
  %v1388 = vpack.c.b16 %v1208, %v1204
  %v1389 = vpack.c.b16 %v1213, %v1209
  %v1390 = vpack.c.b16 %v1214, %v1210
  %v1391 = vpack.c.b16 %v1215, %v1211
  %v1392 = vpack.c.b16 %v1216, %v1212
  %v1393 = vpack.c.b16 %v1221, %v1217
  %v1394 = vpack.c.b16 %v1222, %v1218
  %v1395 = vpack.c.b16 %v1223, %v1219
  %v1396 = vpack.c.b16 %v1224, %v1220
  %v1397 = vpack.c.b16 %v1229, %v1225
  %v1398 = vpack.c.b16 %v1230, %v1226
  %v1399 = vpack.c.b16 %v1231, %v1227
  %v1400 = vpack.c.b16 %v1232, %v1228
  %v1401 = vpack.c.b16 %v1237, %v1233
  %v1402 = vpack.c.b16 %v1238, %v1234
  %v1403 = vpack.c.b16 %v1239, %v1235
  %v1404 = vpack.c.b16 %v1240, %v1236
  %v1405 = vpack.c.b16 %v1245, %v1241
  %v1406 = vpack.c.b16 %v1246, %v1242
  %v1407 = vpack.c.b16 %v1247, %v1243
  %v1408 = vpack.c.b16 %v1248, %v1244
  %v1409 = vpack.c.b16 %v1253, %v1249
  %v1410 = vpack.c.b16 %v1254, %v1250
  %v1411 = vpack.c.b16 %v1255, %v1251
  %v1412 = vpack.c.b16 %v1256, %v1252
  %v1413 = vpack.c.b16 %v1261, %v1257
  %v1414 = vpack.c.b16 %v1262, %v1258
  %v1415 = vpack.c.b16 %v1263, %v1259
  %v1416 = vpack.c.b16 %v1264, %v1260
  %v1417 = vpack.c.b16 %v1269, %v1265
  %v1418 = vpack.c.b16 %v1270, %v1266
  %v1419 = vpack.c.b16 %v1271, %v1267
  %v1420 = vpack.c.b16 %v1272, %v1268
  %v1421 = vpack.c.b16 %v1277, %v1273
  %v1422 = vpack.c.b16 %v1278, %v1274
  %v1423 = vpack.c.b16 %v1279, %v1275
  %v1424 = vpack.c.b16 %v1280, %v1276
  %v1425 = vpack.c.b16 %v1285, %v1281
  %v1426 = vpack.c.b16 %v1286, %v1282
  %v1427 = vpack.c.b16 %v1287, %v1283
  %v1428 = vpack.c.b16 %v1288, %v1284
  %v1429 = vpack.c.b16 %v1293, %v1289
  %v1430 = vpack.c.b16 %v1294, %v1290
  %v1431 = vpack.c.b16 %v1295, %v1291
  %v1432 = vpack.c.b16 %v1296, %v1292
  %v1433 = vpack.c.b16 %v1301, %v1297
  %v1434 = vpack.c.b16 %v1302, %v1298
  %v1435 = vpack.c.b16 %v1303, %v1299
  %v1436 = vpack.c.b16 %v1304, %v1300
  %v1437 = vpack.c.b16 %v1309, %v1305
  %v1438 = vpack.c.b16 %v1310, %v1306
  %v1439 = vpack.c.b16 %v1311, %v1307
  %v1440 = vpack.c.b16 %v1312, %v1308
  %1569 = vmatprep.subr.bf16.mxu0 %v1314
  %1570 = vmatpush1.bf16.msra.mxu0 %v1313
  %1571 = vmatprep.subr.bf16.mxu0 %v1318
  %1572 = vmatpush1.bf16.msra.mxu0 %v1317
  %1573 = vmatprep.subr.bf16.mxu0 %v1322
  %1574 = vmatpush1.bf16.msra.mxu0 %v1321
  %1575 = vmatprep.subr.bf16.mxu0 %v1326
  %1576 = vmatpush1.bf16.msra.mxu0 %v1325
  %1577 = vmatprep.subr.bf16.mxu0 %v1330
  %1578 = vmatpush1.bf16.msra.mxu0 %v1329
  %1579 = vmatprep.subr.bf16.mxu0 %v1334
  %1580 = vmatpush1.bf16.msra.mxu0 %v1333
  %1581 = vmatprep.subr.bf16.mxu0 %v1338
  %1582 = vmatpush1.bf16.msra.mxu0 %v1337
  %1583 = vmatprep.subr.bf16.mxu0 %v1342
  %1584 = vmatpush1.bf16.msra.mxu0 %v1341
  %1585 = vmatprep.subr.bf16.mxu0 %v1346
  %1586 = vmatpush1.bf16.msra.mxu0 %v1345
  %1587 = vmatprep.subr.bf16.mxu0 %v1350
  %1588 = vmatpush1.bf16.msra.mxu0 %v1349
  %1589 = vmatprep.subr.bf16.mxu0 %v1354
  %1590 = vmatpush1.bf16.msra.mxu0 %v1353
  %1591 = vmatprep.subr.bf16.mxu0 %v1358
  %1592 = vmatpush1.bf16.msra.mxu0 %v1357
  %1593 = vmatprep.subr.bf16.mxu0 %v1362
  %1594 = vmatpush1.bf16.msra.mxu0 %v1361
  %1595 = vmatprep.subr.bf16.mxu0 %v1366
  %1596 = vmatpush1.bf16.msra.mxu0 %v1365
  %1597 = vmatprep.subr.bf16.mxu0 %v1370
  %1598 = vmatpush1.bf16.msra.mxu0 %v1369
  %1599 = vmatprep.subr.bf16.mxu0 %v1374
  %1600 = vmatpush1.bf16.msra.mxu0 %v1373
  %1601 = vmatprep.mubr.bf16.mxu0 %v716
  %1602 = vmatmul.mubr.bf16.gmra.mrb[0].mxu0 %v715
  %v1603 = vpop.f32.mrb[0].mxu0
  %v1604 = vadd.f32 %v912, %v1603
  %v1605 = vpop.f32.mrb[0].mxu0
  %v1606 = vadd.f32 %v916, %v1605
  %v1607 = vpop.f32.mrb[0].mxu0
  %v1608 = vadd.f32 %v912, %v1607
  %v1609 = vpop.f32.mrb[0].mxu0
  %v1610 = vadd.f32 %v916, %v1609
  %1611 = vmatprep.mubr.bf16.mxu0 %v720
  %1612 = vmatmul.mubr.bf16.gmra.mrb[0].mxu0 %v719
  %v1613 = vpop.f32.mrb[0].mxu0
  %v1614 = vadd.f32 %v912, %v1613
  %v1615 = vpop.f32.mrb[0].mxu0
  %v1616 = vadd.f32 %v916, %v1615
  %v1617 = vpop.f32.mrb[0].mxu0
  %v1618 = vadd.f32 %v912, %v1617
  %v1619 = vpop.f32.mrb[0].mxu0
  %v1620 = vadd.f32 %v916, %v1619
  %1621 = vmatprep.mubr.bf16.mxu0 %v724
  %1622 = vmatmul.mubr.bf16.gmra.mrb[0].mxu0 %v723
  %v1623 = vpop.f32.mrb[0].mxu0
  %v1624 = vadd.f32 %v912, %v1623
  %v1625 = vpop.f32.mrb[0].mxu0
  %v1626 = vadd.f32 %v916, %v1625
  %v1627 = vpop.f32.mrb[0].mxu0
  %v1628 = vadd.f32 %v912, %v1627
  %v1629 = vpop.f32.mrb[0].mxu0
  %v1630 = vadd.f32 %v916, %v1629
  %1631 = vmatprep.mubr.bf16.mxu0 %v728
  %1632 = vmatmul.mubr.bf16.gmra.mrb[0].mxu0 %v727
  %v1633 = vpop.f32.mrb[0].mxu0
  %v1634 = vadd.f32 %v912, %v1633
  %v1635 = vpop.f32.mrb[0].mxu0
  %v1636 = vadd.f32 %v916, %v1635
  %v1637 = vpop.f32.mrb[0].mxu0
  %v1638 = vadd.f32 %v912, %v1637
  %v1639 = vpop.f32.mrb[0].mxu0
  %v1640 = vadd.f32 %v916, %v1639
  %1641 = vmatprep.mubr.bf16.mxu0 %v732
  %1642 = vmatmul.mubr.bf16.gmra.mrb[0].mxu0 %v731
  %v1643 = vpop.f32.mrb[0].mxu0
  %v1644 = vadd.f32 %v912, %v1643
  %v1645 = vpop.f32.mrb[0].mxu0
  %v1646 = vadd.f32 %v916, %v1645
  %v1647 = vpop.f32.mrb[0].mxu0
  %v1648 = vadd.f32 %v912, %v1647
  %v1649 = vpop.f32.mrb[0].mxu0
  %v1650 = vadd.f32 %v916, %v1649
  %1651 = vmatprep.mubr.bf16.mxu0 %v736
  %1652 = vmatmul.mubr.bf16.gmra.mrb[0].mxu0 %v735
  %v1653 = vpop.f32.mrb[0].mxu0
  %v1654 = vadd.f32 %v912, %v1653
  %v1655 = vpop.f32.mrb[0].mxu0
  %v1656 = vadd.f32 %v916, %v1655
  %v1657 = vpop.f32.mrb[0].mxu0
  %v1658 = vadd.f32 %v912, %v1657
  %v1659 = vpop.f32.mrb[0].mxu0
  %v1660 = vadd.f32 %v916, %v1659
  %1661 = vmatprep.mubr.bf16.mxu0 %v740
  %1662 = vmatmul.mubr.bf16.gmra.mrb[0].mxu0 %v739
  %v1663 = vpop.f32.mrb[0].mxu0
  %v1664 = vadd.f32 %v912, %v1663
  %v1665 = vpop.f32.mrb[0].mxu0
  %v1666 = vadd.f32 %v916, %v1665
  %v1667 = vpop.f32.mrb[0].mxu0
  %v1668 = vadd.f32 %v912, %v1667
  %v1669 = vpop.f32.mrb[0].mxu0
  %v1670 = vadd.f32 %v916, %v1669
  %1671 = vmatprep.mubr.bf16.mxu0 %v744
  %1672 = vmatmul.mubr.bf16.gmra.mrb[0].mxu0 %v743
  %v1673 = vpop.f32.mrb[0].mxu0
  %v1674 = vadd.f32 %v912, %v1673
  %v1675 = vpop.f32.mrb[0].mxu0
  %v1676 = vadd.f32 %v916, %v1675
  %v1677 = vpop.f32.mrb[0].mxu0
  %v1678 = vadd.f32 %v912, %v1677
  %v1679 = vpop.f32.mrb[0].mxu0
  %v1680 = vadd.f32 %v916, %v1679
  %1681 = vmatprep.mubr.bf16.mxu0 %v748
  %1682 = vmatmul.mubr.bf16.gmra.mrb[0].mxu0 %v747
  %v1683 = vpop.f32.mrb[0].mxu0
  %v1684 = vadd.f32 %v912, %v1683
  %v1685 = vpop.f32.mrb[0].mxu0
  %v1686 = vadd.f32 %v916, %v1685
  %v1687 = vpop.f32.mrb[0].mxu0
  %v1688 = vadd.f32 %v912, %v1687
  %v1689 = vpop.f32.mrb[0].mxu0
  %v1690 = vadd.f32 %v916, %v1689
  %1691 = vmatprep.mubr.bf16.mxu0 %v752
  %1692 = vmatmul.mubr.bf16.gmra.mrb[0].mxu0 %v751
  %v1693 = vpop.f32.mrb[0].mxu0
  %v1694 = vadd.f32 %v912, %v1693
  %v1695 = vpop.f32.mrb[0].mxu0
  %v1696 = vadd.f32 %v916, %v1695
  %v1697 = vpop.f32.mrb[0].mxu0
  %v1698 = vadd.f32 %v912, %v1697
  %v1699 = vpop.f32.mrb[0].mxu0
  %v1700 = vadd.f32 %v916, %v1699
  %1701 = vmatprep.mubr.bf16.mxu0 %v756
  %1702 = vmatmul.mubr.bf16.gmra.mrb[0].mxu0 %v755
  %v1703 = vpop.f32.mrb[0].mxu0
  %v1704 = vadd.f32 %v912, %v1703
  %v1705 = vpop.f32.mrb[0].mxu0
  %v1706 = vadd.f32 %v916, %v1705
  %v1707 = vpop.f32.mrb[0].mxu0
  %v1708 = vadd.f32 %v912, %v1707
  %v1709 = vpop.f32.mrb[0].mxu0
  %v1710 = vadd.f32 %v916, %v1709
  %1711 = vmatprep.mubr.bf16.mxu0 %v760
  %1712 = vmatmul.mubr.bf16.gmra.mrb[0].mxu0 %v759
  %v1713 = vpop.f32.mrb[0].mxu0
  %v1714 = vadd.f32 %v912, %v1713
  %v1715 = vpop.f32.mrb[0].mxu0
  %v1716 = vadd.f32 %v916, %v1715
  %v1717 = vpop.f32.mrb[0].mxu0
  %v1718 = vadd.f32 %v912, %v1717
  %v1719 = vpop.f32.mrb[0].mxu0
  %v1720 = vadd.f32 %v916, %v1719
  %1721 = vmatprep.mubr.bf16.mxu0 %v764
  %1722 = vmatmul.mubr.bf16.gmra.mrb[0].mxu0 %v763
  %v1723 = vpop.f32.mrb[0].mxu0
  %v1724 = vadd.f32 %v912, %v1723
  %v1725 = vpop.f32.mrb[0].mxu0
  %v1726 = vadd.f32 %v916, %v1725
  %v1727 = vpop.f32.mrb[0].mxu0
  %v1728 = vadd.f32 %v912, %v1727
  %v1729 = vpop.f32.mrb[0].mxu0
  %v1730 = vadd.f32 %v916, %v1729
  %1731 = vmatprep.mubr.bf16.mxu0 %v768
  %1732 = vmatmul.mubr.bf16.gmra.mrb[0].mxu0 %v767
  %v1733 = vpop.f32.mrb[0].mxu0
  %v1734 = vadd.f32 %v912, %v1733
  %v1735 = vpop.f32.mrb[0].mxu0
  %v1736 = vadd.f32 %v916, %v1735
  %v1737 = vpop.f32.mrb[0].mxu0
  %v1738 = vadd.f32 %v912, %v1737
  %v1739 = vpop.f32.mrb[0].mxu0
  %v1740 = vadd.f32 %v916, %v1739
  %1741 = vmatprep.mubr.bf16.mxu0 %v772
  %1742 = vmatmul.mubr.bf16.gmra.mrb[0].mxu0 %v771
  %v1743 = vpop.f32.mrb[0].mxu0
  %v1744 = vadd.f32 %v912, %v1743
  %v1745 = vpop.f32.mrb[0].mxu0
  %v1746 = vadd.f32 %v916, %v1745
  %v1747 = vpop.f32.mrb[0].mxu0
  %v1748 = vadd.f32 %v912, %v1747
  %v1749 = vpop.f32.mrb[0].mxu0
  %v1750 = vadd.f32 %v916, %v1749
  %1751 = vmatprep.mubr.bf16.mxu0 %v776
  %1752 = vmatmul.mubr.bf16.gmra.mrb[0].mxu0 %v775
  %v1753 = vpop.f32.mrb[0].mxu0
  %v1754 = vadd.f32 %v912, %v1753
  %v1755 = vpop.f32.mrb[0].mxu0
  %v1756 = vadd.f32 %v916, %v1755
  %v1757 = vpop.f32.mrb[0].mxu0
  %v1758 = vadd.f32 %v912, %v1757
  %v1759 = vpop.f32.mrb[0].mxu0
  %v1760 = vadd.f32 %v916, %v1759
  %1761 = vdwg.mxu0
  %1762 = vmatprep.subr.bf16.mxu0 %v1378
  %1763 = vmatpush1.bf16.msra.mxu0 %v1377
  %1764 = vmatprep.subr.bf16.mxu0 %v1382
  %1765 = vmatpush1.bf16.msra.mxu0 %v1381
  %1766 = vmatprep.subr.bf16.mxu0 %v1386
  %1767 = vmatpush1.bf16.msra.mxu0 %v1385
  %1768 = vmatprep.subr.bf16.mxu0 %v1390
  %1769 = vmatpush1.bf16.msra.mxu0 %v1389
  %1770 = vmatprep.subr.bf16.mxu0 %v1394
  %1771 = vmatpush1.bf16.msra.mxu0 %v1393
  %1772 = vmatprep.subr.bf16.mxu0 %v1398
  %1773 = vmatpush1.bf16.msra.mxu0 %v1397
  %1774 = vmatprep.subr.bf16.mxu0 %v1402
  %1775 = vmatpush1.bf16.msra.mxu0 %v1401
  %1776 = vmatprep.subr.bf16.mxu0 %v1406
  %1777 = vmatpush1.bf16.msra.mxu0 %v1405
  %1778 = vmatprep.subr.bf16.mxu0 %v1410
  %1779 = vmatpush1.bf16.msra.mxu0 %v1409
  %1780 = vmatprep.subr.bf16.mxu0 %v1414
  %1781 = vmatpush1.bf16.msra.mxu0 %v1413
  %1782 = vmatprep.subr.bf16.mxu0 %v1418
  %1783 = vmatpush1.bf16.msra.mxu0 %v1417
  %1784 = vmatprep.subr.bf16.mxu0 %v1422
  %1785 = vmatpush1.bf16.msra.mxu0 %v1421
  %1786 = vmatprep.subr.bf16.mxu0 %v1426
  %1787 = vmatpush1.bf16.msra.mxu0 %v1425
  %1788 = vmatprep.subr.bf16.mxu0 %v1430
  %1789 = vmatpush1.bf16.msra.mxu0 %v1429
  %1790 = vmatprep.subr.bf16.mxu0 %v1434
  %1791 = vmatpush1.bf16.msra.mxu0 %v1433
  %1792 = vmatprep.subr.bf16.mxu0 %v1438
  %1793 = vmatpush1.bf16.msra.mxu0 %v1437
  %1794 = vmatprep.mubr.bf16.mxu0 %v718
  %1795 = vmatmul.mubr.bf16.gmra.mrb[0].mxu0 %v717
  %v1796 = vpop.f32.mrb[0].mxu0
  %v1797 = vadd.f32 %v1604, %v1796
  %v1798 = vpop.f32.mrb[0].mxu0
  %v1799 = vadd.f32 %v1606, %v1798
  %v1800 = vpop.f32.mrb[0].mxu0
  %v1801 = vadd.f32 %v1608, %v1800
  %v1802 = vpop.f32.mrb[0].mxu0
  %v1803 = vadd.f32 %v1610, %v1802
  %1804 = vmatprep.mubr.bf16.mxu0 %v722
  %1805 = vmatmul.mubr.bf16.gmra.mrb[0].mxu0 %v721
  %v1806 = vpop.f32.mrb[0].mxu0
  %v1807 = vadd.f32 %v1614, %v1806
  %v1808 = vpop.f32.mrb[0].mxu0
  %v1809 = vadd.f32 %v1616, %v1808
  %v1810 = vpop.f32.mrb[0].mxu0
  %v1811 = vadd.f32 %v1618, %v1810
  %v1812 = vpop.f32.mrb[0].mxu0
  %v1813 = vadd.f32 %v1620, %v1812
  %1814 = vmatprep.mubr.bf16.mxu0 %v726
  %1815 = vmatmul.mubr.bf16.gmra.mrb[0].mxu0 %v725
  %v1816 = vpop.f32.mrb[0].mxu0
  %v1817 = vadd.f32 %v1624, %v1816
  %v1818 = vpop.f32.mrb[0].mxu0
  %v1819 = vadd.f32 %v1626, %v1818
  %v1820 = vpop.f32.mrb[0].mxu0
  %v1821 = vadd.f32 %v1628, %v1820
  %v1822 = vpop.f32.mrb[0].mxu0
  %v1823 = vadd.f32 %v1630, %v1822
  %1824 = vmatprep.mubr.bf16.mxu0 %v730
  %1825 = vmatmul.mubr.bf16.gmra.mrb[0].mxu0 %v729
  %v1826 = vpop.f32.mrb[0].mxu0
  %v1827 = vadd.f32 %v1634, %v1826
  %v1828 = vpop.f32.mrb[0].mxu0
  %v1829 = vadd.f32 %v1636, %v1828
  %v1830 = vpop.f32.mrb[0].mxu0
  %v1831 = vadd.f32 %v1638, %v1830
  %v1832 = vpop.f32.mrb[0].mxu0
  %v1833 = vadd.f32 %v1640, %v1832
  %1834 = vmatprep.mubr.bf16.mxu0 %v734
  %1835 = vmatmul.mubr.bf16.gmra.mrb[0].mxu0 %v733
  %v1836 = vpop.f32.mrb[0].mxu0
  %v1837 = vadd.f32 %v1644, %v1836
  %v1838 = vpop.f32.mrb[0].mxu0
  %v1839 = vadd.f32 %v1646, %v1838
  %v1840 = vpop.f32.mrb[0].mxu0
  %v1841 = vadd.f32 %v1648, %v1840
  %v1842 = vpop.f32.mrb[0].mxu0
  %v1843 = vadd.f32 %v1650, %v1842
  %1844 = vmatprep.mubr.bf16.mxu0 %v738
  %1845 = vmatmul.mubr.bf16.gmra.mrb[0].mxu0 %v737
  %v1846 = vpop.f32.mrb[0].mxu0
  %v1847 = vadd.f32 %v1654, %v1846
  %v1848 = vpop.f32.mrb[0].mxu0
  %v1849 = vadd.f32 %v1656, %v1848
  %v1850 = vpop.f32.mrb[0].mxu0
  %v1851 = vadd.f32 %v1658, %v1850
  %v1852 = vpop.f32.mrb[0].mxu0
  %v1853 = vadd.f32 %v1660, %v1852
  %1854 = vmatprep.mubr.bf16.mxu0 %v742
  %1855 = vmatmul.mubr.bf16.gmra.mrb[0].mxu0 %v741
  %v1856 = vpop.f32.mrb[0].mxu0
  %v1857 = vadd.f32 %v1664, %v1856
  %v1858 = vpop.f32.mrb[0].mxu0
  %v1859 = vadd.f32 %v1666, %v1858
  %v1860 = vpop.f32.mrb[0].mxu0
  %v1861 = vadd.f32 %v1668, %v1860
  %v1862 = vpop.f32.mrb[0].mxu0
  %v1863 = vadd.f32 %v1670, %v1862
  %1864 = vmatprep.mubr.bf16.mxu0 %v746
  %1865 = vmatmul.mubr.bf16.gmra.mrb[0].mxu0 %v745
  %v1866 = vpop.f32.mrb[0].mxu0
  %v1867 = vadd.f32 %v1674, %v1866
  %v1868 = vpop.f32.mrb[0].mxu0
  %v1869 = vadd.f32 %v1676, %v1868
  %v1870 = vpop.f32.mrb[0].mxu0
  %v1871 = vadd.f32 %v1678, %v1870
  %v1872 = vpop.f32.mrb[0].mxu0
  %v1873 = vadd.f32 %v1680, %v1872
  %1874 = vmatprep.mubr.bf16.mxu0 %v750
  %1875 = vmatmul.mubr.bf16.gmra.mrb[0].mxu0 %v749
  %v1876 = vpop.f32.mrb[0].mxu0
  %v1877 = vadd.f32 %v1684, %v1876
  %v1878 = vpop.f32.mrb[0].mxu0
  %v1879 = vadd.f32 %v1686, %v1878
  %v1880 = vpop.f32.mrb[0].mxu0
  %v1881 = vadd.f32 %v1688, %v1880
  %v1882 = vpop.f32.mrb[0].mxu0
  %v1883 = vadd.f32 %v1690, %v1882
  %1884 = vmatprep.mubr.bf16.mxu0 %v754
  %1885 = vmatmul.mubr.bf16.gmra.mrb[0].mxu0 %v753
  %v1886 = vpop.f32.mrb[0].mxu0
  %v1887 = vadd.f32 %v1694, %v1886
  %v1888 = vpop.f32.mrb[0].mxu0
  %v1889 = vadd.f32 %v1696, %v1888
  %v1890 = vpop.f32.mrb[0].mxu0
  %v1891 = vadd.f32 %v1698, %v1890
  %v1892 = vpop.f32.mrb[0].mxu0
  %v1893 = vadd.f32 %v1700, %v1892
  %1894 = vmatprep.mubr.bf16.mxu0 %v758
  %1895 = vmatmul.mubr.bf16.gmra.mrb[0].mxu0 %v757
  %v1896 = vpop.f32.mrb[0].mxu0
  %v1897 = vadd.f32 %v1704, %v1896
  %v1898 = vpop.f32.mrb[0].mxu0
  %v1899 = vadd.f32 %v1706, %v1898
  %v1900 = vpop.f32.mrb[0].mxu0
  %v1901 = vadd.f32 %v1708, %v1900
  %v1902 = vpop.f32.mrb[0].mxu0
  %v1903 = vadd.f32 %v1710, %v1902
  %1904 = vmatprep.mubr.bf16.mxu0 %v762
  %1905 = vmatmul.mubr.bf16.gmra.mrb[0].mxu0 %v761
  %v1906 = vpop.f32.mrb[0].mxu0
  %v1907 = vadd.f32 %v1714, %v1906
  %v1908 = vpop.f32.mrb[0].mxu0
  %v1909 = vadd.f32 %v1716, %v1908
  %v1910 = vpop.f32.mrb[0].mxu0
  %v1911 = vadd.f32 %v1718, %v1910
  %v1912 = vpop.f32.mrb[0].mxu0
  %v1913 = vadd.f32 %v1720, %v1912
  %1914 = vmatprep.mubr.bf16.mxu0 %v766
  %1915 = vmatmul.mubr.bf16.gmra.mrb[0].mxu0 %v765
  %v1916 = vpop.f32.mrb[0].mxu0
  %v1917 = vadd.f32 %v1724, %v1916
  %v1918 = vpop.f32.mrb[0].mxu0
  %v1919 = vadd.f32 %v1726, %v1918
  %v1920 = vpop.f32.mrb[0].mxu0
  %v1921 = vadd.f32 %v1728, %v1920
  %v1922 = vpop.f32.mrb[0].mxu0
  %v1923 = vadd.f32 %v1730, %v1922
  %1924 = vmatprep.mubr.bf16.mxu0 %v770
  %1925 = vmatmul.mubr.bf16.gmra.mrb[0].mxu0 %v769
  %v1926 = vpop.f32.mrb[0].mxu0
  %v1927 = vadd.f32 %v1734, %v1926
  %v1928 = vpop.f32.mrb[0].mxu0
  %v1929 = vadd.f32 %v1736, %v1928
  %v1930 = vpop.f32.mrb[0].mxu0
  %v1931 = vadd.f32 %v1738, %v1930
  %v1932 = vpop.f32.mrb[0].mxu0
  %v1933 = vadd.f32 %v1740, %v1932
  %1934 = vmatprep.mubr.bf16.mxu0 %v774
  %1935 = vmatmul.mubr.bf16.gmra.mrb[0].mxu0 %v773
  %v1936 = vpop.f32.mrb[0].mxu0
  %v1937 = vadd.f32 %v1744, %v1936
  %v1938 = vpop.f32.mrb[0].mxu0
  %v1939 = vadd.f32 %v1746, %v1938
  %v1940 = vpop.f32.mrb[0].mxu0
  %v1941 = vadd.f32 %v1748, %v1940
  %v1942 = vpop.f32.mrb[0].mxu0
  %v1943 = vadd.f32 %v1750, %v1942
  %1944 = vmatprep.mubr.bf16.mxu0 %v778
  %1945 = vmatmul.mubr.bf16.gmra.mrb[0].mxu0 %v777
  %v1946 = vpop.f32.mrb[0].mxu0
  %v1947 = vadd.f32 %v1754, %v1946
  %v1948 = vpop.f32.mrb[0].mxu0
  %v1949 = vadd.f32 %v1756, %v1948
  %v1950 = vpop.f32.mrb[0].mxu0
  %v1951 = vadd.f32 %v1758, %v1950
  %v1952 = vpop.f32.mrb[0].mxu0
  %v1953 = vadd.f32 %v1760, %v1952
  %1954 = vdwg.mxu0
  %1955 = vmatprep.subr.bf16.mxu0 %v1316
  %1956 = vmatpush1.bf16.msra.mxu0 %v1315
  %1957 = vmatprep.subr.bf16.mxu0 %v1320
  %1958 = vmatpush1.bf16.msra.mxu0 %v1319
  %1959 = vmatprep.subr.bf16.mxu0 %v1324
  %1960 = vmatpush1.bf16.msra.mxu0 %v1323
  %1961 = vmatprep.subr.bf16.mxu0 %v1328
  %1962 = vmatpush1.bf16.msra.mxu0 %v1327
  %1963 = vmatprep.subr.bf16.mxu0 %v1332
  %1964 = vmatpush1.bf16.msra.mxu0 %v1331
  %1965 = vmatprep.subr.bf16.mxu0 %v1336
  %1966 = vmatpush1.bf16.msra.mxu0 %v1335
  %1967 = vmatprep.subr.bf16.mxu0 %v1340
  %1968 = vmatpush1.bf16.msra.mxu0 %v1339
  %1969 = vmatprep.subr.bf16.mxu0 %v1344
  %1970 = vmatpush1.bf16.msra.mxu0 %v1343
  %1971 = vmatprep.subr.bf16.mxu0 %v1348
  %1972 = vmatpush1.bf16.msra.mxu0 %v1347
  %1973 = vmatprep.subr.bf16.mxu0 %v1352
  %1974 = vmatpush1.bf16.msra.mxu0 %v1351
  %1975 = vmatprep.subr.bf16.mxu0 %v1356
  %1976 = vmatpush1.bf16.msra.mxu0 %v1355
  %1977 = vmatprep.subr.bf16.mxu0 %v1360
  %1978 = vmatpush1.bf16.msra.mxu0 %v1359
  %1979 = vmatprep.subr.bf16.mxu0 %v1364
  %1980 = vmatpush1.bf16.msra.mxu0 %v1363
  %1981 = vmatprep.subr.bf16.mxu0 %v1368
  %1982 = vmatpush1.bf16.msra.mxu0 %v1367
  %1983 = vmatprep.subr.bf16.mxu0 %v1372
  %1984 = vmatpush1.bf16.msra.mxu0 %v1371
  %1985 = vmatprep.subr.bf16.mxu0 %v1376
  %1986 = vmatpush1.bf16.msra.mxu0 %v1375
  %1987 = vmatprep.mubr.bf16.mxu0 %v716
  %1988 = vmatmul.mubr.bf16.gmra.mrb[0].mxu0 %v715
  %v1989 = vpop.f32.mrb[0].mxu0
  %v1990 = vadd.f32 %v920, %v1989
  %v1991 = vpop.f32.mrb[0].mxu0
  %v1992 = vadd.f32 %v924, %v1991
  %v1993 = vpop.f32.mrb[0].mxu0
  %v1994 = vadd.f32 %v920, %v1993
  %v1995 = vpop.f32.mrb[0].mxu0
  %v1996 = vadd.f32 %v924, %v1995
  %1997 = vmatprep.mubr.bf16.mxu0 %v720
  %1998 = vmatmul.mubr.bf16.gmra.mrb[0].mxu0 %v719
  %v1999 = vpop.f32.mrb[0].mxu0
  %v2000 = vadd.f32 %v920, %v1999
  %v2001 = vpop.f32.mrb[0].mxu0
  %v2002 = vadd.f32 %v924, %v2001
  %v2003 = vpop.f32.mrb[0].mxu0
  %v2004 = vadd.f32 %v920, %v2003
  %v2005 = vpop.f32.mrb[0].mxu0
  %v2006 = vadd.f32 %v924, %v2005
  %2007 = vmatprep.mubr.bf16.mxu0 %v724
  %2008 = vmatmul.mubr.bf16.gmra.mrb[0].mxu0 %v723
  %v2009 = vpop.f32.mrb[0].mxu0
  %v2010 = vadd.f32 %v920, %v2009
  %v2011 = vpop.f32.mrb[0].mxu0
  %v2012 = vadd.f32 %v924, %v2011
  %v2013 = vpop.f32.mrb[0].mxu0
  %v2014 = vadd.f32 %v920, %v2013
  %v2015 = vpop.f32.mrb[0].mxu0
  %v2016 = vadd.f32 %v924, %v2015
  %2017 = vmatprep.mubr.bf16.mxu0 %v728
  %2018 = vmatmul.mubr.bf16.gmra.mrb[0].mxu0 %v727
  %v2019 = vpop.f32.mrb[0].mxu0
  %v2020 = vadd.f32 %v920, %v2019
  %v2021 = vpop.f32.mrb[0].mxu0
  %v2022 = vadd.f32 %v924, %v2021
  %v2023 = vpop.f32.mrb[0].mxu0
  %v2024 = vadd.f32 %v920, %v2023
  %v2025 = vpop.f32.mrb[0].mxu0
  %v2026 = vadd.f32 %v924, %v2025
  %2027 = vmatprep.mubr.bf16.mxu0 %v732
  %2028 = vmatmul.mubr.bf16.gmra.mrb[0].mxu0 %v731
  %v2029 = vpop.f32.mrb[0].mxu0
  %v2030 = vadd.f32 %v920, %v2029
  %v2031 = vpop.f32.mrb[0].mxu0
  %v2032 = vadd.f32 %v924, %v2031
  %v2033 = vpop.f32.mrb[0].mxu0
  %v2034 = vadd.f32 %v920, %v2033
  %v2035 = vpop.f32.mrb[0].mxu0
  %v2036 = vadd.f32 %v924, %v2035
  %2037 = vmatprep.mubr.bf16.mxu0 %v736
  %2038 = vmatmul.mubr.bf16.gmra.mrb[0].mxu0 %v735
  %v2039 = vpop.f32.mrb[0].mxu0
  %v2040 = vadd.f32 %v920, %v2039
  %v2041 = vpop.f32.mrb[0].mxu0
  %v2042 = vadd.f32 %v924, %v2041
  %v2043 = vpop.f32.mrb[0].mxu0
  %v2044 = vadd.f32 %v920, %v2043
  %v2045 = vpop.f32.mrb[0].mxu0
  %v2046 = vadd.f32 %v924, %v2045
  %2047 = vmatprep.mubr.bf16.mxu0 %v740
  %2048 = vmatmul.mubr.bf16.gmra.mrb[0].mxu0 %v739
  %v2049 = vpop.f32.mrb[0].mxu0
  %v2050 = vadd.f32 %v920, %v2049
  %v2051 = vpop.f32.mrb[0].mxu0
  %v2052 = vadd.f32 %v924, %v2051
  %v2053 = vpop.f32.mrb[0].mxu0
  %v2054 = vadd.f32 %v920, %v2053
  %v2055 = vpop.f32.mrb[0].mxu0
  %v2056 = vadd.f32 %v924, %v2055
  %2057 = vmatprep.mubr.bf16.mxu0 %v744
  %2058 = vmatmul.mubr.bf16.gmra.mrb[0].mxu0 %v743
  %v2059 = vpop.f32.mrb[0].mxu0
  %v2060 = vadd.f32 %v920, %v2059
  %v2061 = vpop.f32.mrb[0].mxu0
  %v2062 = vadd.f32 %v924, %v2061
  %v2063 = vpop.f32.mrb[0].mxu0
  %v2064 = vadd.f32 %v920, %v2063
  %v2065 = vpop.f32.mrb[0].mxu0
  %v2066 = vadd.f32 %v924, %v2065
  %2067 = vmatprep.mubr.bf16.mxu0 %v748
  %2068 = vmatmul.mubr.bf16.gmra.mrb[0].mxu0 %v747
  %v2069 = vpop.f32.mrb[0].mxu0
  %v2070 = vadd.f32 %v920, %v2069
  %v2071 = vpop.f32.mrb[0].mxu0
  %v2072 = vadd.f32 %v924, %v2071
  %v2073 = vpop.f32.mrb[0].mxu0
  %v2074 = vadd.f32 %v920, %v2073
  %v2075 = vpop.f32.mrb[0].mxu0
  %v2076 = vadd.f32 %v924, %v2075
  %2077 = vmatprep.mubr.bf16.mxu0 %v752
  %2078 = vmatmul.mubr.bf16.gmra.mrb[0].mxu0 %v751
  %v2079 = vpop.f32.mrb[0].mxu0
  %v2080 = vadd.f32 %v920, %v2079
  %v2081 = vpop.f32.mrb[0].mxu0
  %v2082 = vadd.f32 %v924, %v2081
  %v2083 = vpop.f32.mrb[0].mxu0
  %v2084 = vadd.f32 %v920, %v2083
  %v2085 = vpop.f32.mrb[0].mxu0
  %v2086 = vadd.f32 %v924, %v2085
  %2087 = vmatprep.mubr.bf16.mxu0 %v756
  %2088 = vmatmul.mubr.bf16.gmra.mrb[0].mxu0 %v755
  %v2089 = vpop.f32.mrb[0].mxu0
  %v2090 = vadd.f32 %v920, %v2089
  %v2091 = vpop.f32.mrb[0].mxu0
  %v2092 = vadd.f32 %v924, %v2091
  %v2093 = vpop.f32.mrb[0].mxu0
  %v2094 = vadd.f32 %v920, %v2093
  %v2095 = vpop.f32.mrb[0].mxu0
  %v2096 = vadd.f32 %v924, %v2095
  %2097 = vmatprep.mubr.bf16.mxu0 %v760
  %2098 = vmatmul.mubr.bf16.gmra.mrb[0].mxu0 %v759
  %v2099 = vpop.f32.mrb[0].mxu0
  %v2100 = vadd.f32 %v920, %v2099
  %v2101 = vpop.f32.mrb[0].mxu0
  %v2102 = vadd.f32 %v924, %v2101
  %v2103 = vpop.f32.mrb[0].mxu0
  %v2104 = vadd.f32 %v920, %v2103
  %v2105 = vpop.f32.mrb[0].mxu0
  %v2106 = vadd.f32 %v924, %v2105
  %2107 = vmatprep.mubr.bf16.mxu0 %v764
  %2108 = vmatmul.mubr.bf16.gmra.mrb[0].mxu0 %v763
  %v2109 = vpop.f32.mrb[0].mxu0
  %v2110 = vadd.f32 %v920, %v2109
  %v2111 = vpop.f32.mrb[0].mxu0
  %v2112 = vadd.f32 %v924, %v2111
  %v2113 = vpop.f32.mrb[0].mxu0
  %v2114 = vadd.f32 %v920, %v2113
  %v2115 = vpop.f32.mrb[0].mxu0
  %v2116 = vadd.f32 %v924, %v2115
  %2117 = vmatprep.mubr.bf16.mxu0 %v768
  %2118 = vmatmul.mubr.bf16.gmra.mrb[0].mxu0 %v767
  %v2119 = vpop.f32.mrb[0].mxu0
  %v2120 = vadd.f32 %v920, %v2119
  %v2121 = vpop.f32.mrb[0].mxu0
  %v2122 = vadd.f32 %v924, %v2121
  %v2123 = vpop.f32.mrb[0].mxu0
  %v2124 = vadd.f32 %v920, %v2123
  %v2125 = vpop.f32.mrb[0].mxu0
  %v2126 = vadd.f32 %v924, %v2125
  %2127 = vmatprep.mubr.bf16.mxu0 %v772
  %2128 = vmatmul.mubr.bf16.gmra.mrb[0].mxu0 %v771
  %v2129 = vpop.f32.mrb[0].mxu0
  %v2130 = vadd.f32 %v920, %v2129
  %v2131 = vpop.f32.mrb[0].mxu0
  %v2132 = vadd.f32 %v924, %v2131
  %v2133 = vpop.f32.mrb[0].mxu0
  %v2134 = vadd.f32 %v920, %v2133
  %v2135 = vpop.f32.mrb[0].mxu0
  %v2136 = vadd.f32 %v924, %v2135
  %2137 = vmatprep.mubr.bf16.mxu0 %v776
  %2138 = vmatmul.mubr.bf16.gmra.mrb[0].mxu0 %v775
  %v2139 = vpop.f32.mrb[0].mxu0
  %v2140 = vadd.f32 %v920, %v2139
  %v2141 = vpop.f32.mrb[0].mxu0
  %v2142 = vadd.f32 %v924, %v2141
  %v2143 = vpop.f32.mrb[0].mxu0
  %v2144 = vadd.f32 %v920, %v2143
  %v2145 = vpop.f32.mrb[0].mxu0
  %v2146 = vadd.f32 %v924, %v2145
  %2147 = vdwg.mxu0
  %2148 = vmatprep.subr.bf16.mxu0 %v1380
  %2149 = vmatpush1.bf16.msra.mxu0 %v1379
  %2150 = vmatprep.subr.bf16.mxu0 %v1384
  %2151 = vmatpush1.bf16.msra.mxu0 %v1383
  %2152 = vmatprep.subr.bf16.mxu0 %v1388
  %2153 = vmatpush1.bf16.msra.mxu0 %v1387
  %2154 = vmatprep.subr.bf16.mxu0 %v1392
  %2155 = vmatpush1.bf16.msra.mxu0 %v1391
  %2156 = vmatprep.subr.bf16.mxu0 %v1396
  %2157 = vmatpush1.bf16.msra.mxu0 %v1395
  %2158 = vmatprep.subr.bf16.mxu0 %v1400
  %2159 = vmatpush1.bf16.msra.mxu0 %v1399
  %2160 = vmatprep.subr.bf16.mxu0 %v1404
  %2161 = vmatpush1.bf16.msra.mxu0 %v1403
  %2162 = vmatprep.subr.bf16.mxu0 %v1408
  %2163 = vmatpush1.bf16.msra.mxu0 %v1407
  %2164 = vmatprep.subr.bf16.mxu0 %v1412
  %2165 = vmatpush1.bf16.msra.mxu0 %v1411
  %2166 = vmatprep.subr.bf16.mxu0 %v1416
  %2167 = vmatpush1.bf16.msra.mxu0 %v1415
  %2168 = vmatprep.subr.bf16.mxu0 %v1420
  %2169 = vmatpush1.bf16.msra.mxu0 %v1419
  %2170 = vmatprep.subr.bf16.mxu0 %v1424
  %2171 = vmatpush1.bf16.msra.mxu0 %v1423
  %2172 = vmatprep.subr.bf16.mxu0 %v1428
  %2173 = vmatpush1.bf16.msra.mxu0 %v1427
  %2174 = vmatprep.subr.bf16.mxu0 %v1432
  %2175 = vmatpush1.bf16.msra.mxu0 %v1431
  %2176 = vmatprep.subr.bf16.mxu0 %v1436
  %2177 = vmatpush1.bf16.msra.mxu0 %v1435
  %2178 = vmatprep.subr.bf16.mxu0 %v1440
  %2179 = vmatpush1.bf16.msra.mxu0 %v1439
  %2180 = vmatprep.mubr.bf16.mxu0 %v718
  %2181 = vmatmul.mubr.bf16.gmra.mrb[0].mxu0 %v717
  %v2182 = vpop.f32.mrb[0].mxu0
  %v2183 = vadd.f32 %v1990, %v2182
  %v2184 = vpop.f32.mrb[0].mxu0
  %v2185 = vadd.f32 %v1992, %v2184
  %v2186 = vpop.f32.mrb[0].mxu0
  %v2187 = vadd.f32 %v1994, %v2186
  %v2188 = vpop.f32.mrb[0].mxu0
  %v2189 = vadd.f32 %v1996, %v2188
  %2190 = vmatprep.mubr.bf16.mxu0 %v722
  %2191 = vmatmul.mubr.bf16.gmra.mrb[0].mxu0 %v721
  %v2192 = vpop.f32.mrb[0].mxu0
  %v2193 = vadd.f32 %v2000, %v2192
  %v2194 = vpop.f32.mrb[0].mxu0
  %v2195 = vadd.f32 %v2002, %v2194
  %v2196 = vpop.f32.mrb[0].mxu0
  %v2197 = vadd.f32 %v2004, %v2196
  %v2198 = vpop.f32.mrb[0].mxu0
  %v2199 = vadd.f32 %v2006, %v2198
  %2200 = vmatprep.mubr.bf16.mxu0 %v726
  %2201 = vmatmul.mubr.bf16.gmra.mrb[0].mxu0 %v725
  %v2202 = vpop.f32.mrb[0].mxu0
  %v2203 = vadd.f32 %v2010, %v2202
  %v2204 = vpop.f32.mrb[0].mxu0
  %v2205 = vadd.f32 %v2012, %v2204
  %v2206 = vpop.f32.mrb[0].mxu0
  %v2207 = vadd.f32 %v2014, %v2206
  %v2208 = vpop.f32.mrb[0].mxu0
  %v2209 = vadd.f32 %v2016, %v2208
  %2210 = vmatprep.mubr.bf16.mxu0 %v730
  %2211 = vmatmul.mubr.bf16.gmra.mrb[0].mxu0 %v729
  %v2212 = vpop.f32.mrb[0].mxu0
  %v2213 = vadd.f32 %v2020, %v2212
  %v2214 = vpop.f32.mrb[0].mxu0
  %v2215 = vadd.f32 %v2022, %v2214
  %v2216 = vpop.f32.mrb[0].mxu0
  %v2217 = vadd.f32 %v2024, %v2216
  %v2218 = vpop.f32.mrb[0].mxu0
  %v2219 = vadd.f32 %v2026, %v2218
  %2220 = vmatprep.mubr.bf16.mxu0 %v734
  %2221 = vmatmul.mubr.bf16.gmra.mrb[0].mxu0 %v733
  %v2222 = vpop.f32.mrb[0].mxu0
  %v2223 = vadd.f32 %v2030, %v2222
  %v2224 = vpop.f32.mrb[0].mxu0
  %v2225 = vadd.f32 %v2032, %v2224
  %v2226 = vpop.f32.mrb[0].mxu0
  %v2227 = vadd.f32 %v2034, %v2226
  %v2228 = vpop.f32.mrb[0].mxu0
  %v2229 = vadd.f32 %v2036, %v2228
  %2230 = vmatprep.mubr.bf16.mxu0 %v738
  %2231 = vmatmul.mubr.bf16.gmra.mrb[0].mxu0 %v737
  %v2232 = vpop.f32.mrb[0].mxu0
  %v2233 = vadd.f32 %v2040, %v2232
  %v2234 = vpop.f32.mrb[0].mxu0
  %v2235 = vadd.f32 %v2042, %v2234
  %v2236 = vpop.f32.mrb[0].mxu0
  %v2237 = vadd.f32 %v2044, %v2236
  %v2238 = vpop.f32.mrb[0].mxu0
  %v2239 = vadd.f32 %v2046, %v2238
  %2240 = vmatprep.mubr.bf16.mxu0 %v742
  %2241 = vmatmul.mubr.bf16.gmra.mrb[0].mxu0 %v741
  %v2242 = vpop.f32.mrb[0].mxu0
  %v2243 = vadd.f32 %v2050, %v2242
  %v2244 = vpop.f32.mrb[0].mxu0
  %v2245 = vadd.f32 %v2052, %v2244
  %v2246 = vpop.f32.mrb[0].mxu0
  %v2247 = vadd.f32 %v2054, %v2246
  %v2248 = vpop.f32.mrb[0].mxu0
  %v2249 = vadd.f32 %v2056, %v2248
  %2250 = vmatprep.mubr.bf16.mxu0 %v746
  %2251 = vmatmul.mubr.bf16.gmra.mrb[0].mxu0 %v745
  %v2252 = vpop.f32.mrb[0].mxu0
  %v2253 = vadd.f32 %v2060, %v2252
  %v2254 = vpop.f32.mrb[0].mxu0
  %v2255 = vadd.f32 %v2062, %v2254
  %v2256 = vpop.f32.mrb[0].mxu0
  %v2257 = vadd.f32 %v2064, %v2256
  %v2258 = vpop.f32.mrb[0].mxu0
  %v2259 = vadd.f32 %v2066, %v2258
  %2260 = vmatprep.mubr.bf16.mxu0 %v750
  %2261 = vmatmul.mubr.bf16.gmra.mrb[0].mxu0 %v749
  %v2262 = vpop.f32.mrb[0].mxu0
  %v2263 = vadd.f32 %v2070, %v2262
  %v2264 = vpop.f32.mrb[0].mxu0
  %v2265 = vadd.f32 %v2072, %v2264
  %v2266 = vpop.f32.mrb[0].mxu0
  %v2267 = vadd.f32 %v2074, %v2266
  %v2268 = vpop.f32.mrb[0].mxu0
  %v2269 = vadd.f32 %v2076, %v2268
  %2270 = vmatprep.mubr.bf16.mxu0 %v754
  %2271 = vmatmul.mubr.bf16.gmra.mrb[0].mxu0 %v753
  %v2272 = vpop.f32.mrb[0].mxu0
  %v2273 = vadd.f32 %v2080, %v2272
  %v2274 = vpop.f32.mrb[0].mxu0
  %v2275 = vadd.f32 %v2082, %v2274
  %v2276 = vpop.f32.mrb[0].mxu0
  %v2277 = vadd.f32 %v2084, %v2276
  %v2278 = vpop.f32.mrb[0].mxu0
  %v2279 = vadd.f32 %v2086, %v2278
  %2280 = vmatprep.mubr.bf16.mxu0 %v758
  %2281 = vmatmul.mubr.bf16.gmra.mrb[0].mxu0 %v757
  %v2282 = vpop.f32.mrb[0].mxu0
  %v2283 = vadd.f32 %v2090, %v2282
  %v2284 = vpop.f32.mrb[0].mxu0
  %v2285 = vadd.f32 %v2092, %v2284
  %v2286 = vpop.f32.mrb[0].mxu0
  %v2287 = vadd.f32 %v2094, %v2286
  %v2288 = vpop.f32.mrb[0].mxu0
  %v2289 = vadd.f32 %v2096, %v2288
  %2290 = vmatprep.mubr.bf16.mxu0 %v762
  %2291 = vmatmul.mubr.bf16.gmra.mrb[0].mxu0 %v761
  %v2292 = vpop.f32.mrb[0].mxu0
  %v2293 = vadd.f32 %v2100, %v2292
  %v2294 = vpop.f32.mrb[0].mxu0
  %v2295 = vadd.f32 %v2102, %v2294
  %v2296 = vpop.f32.mrb[0].mxu0
  %v2297 = vadd.f32 %v2104, %v2296
  %v2298 = vpop.f32.mrb[0].mxu0
  %v2299 = vadd.f32 %v2106, %v2298
  %2300 = vmatprep.mubr.bf16.mxu0 %v766
  %2301 = vmatmul.mubr.bf16.gmra.mrb[0].mxu0 %v765
  %v2302 = vpop.f32.mrb[0].mxu0
  %v2303 = vadd.f32 %v2110, %v2302
  %v2304 = vpop.f32.mrb[0].mxu0
  %v2305 = vadd.f32 %v2112, %v2304
  %v2306 = vpop.f32.mrb[0].mxu0
  %v2307 = vadd.f32 %v2114, %v2306
  %v2308 = vpop.f32.mrb[0].mxu0
  %v2309 = vadd.f32 %v2116, %v2308
  %2310 = vmatprep.mubr.bf16.mxu0 %v770
  %2311 = vmatmul.mubr.bf16.gmra.mrb[0].mxu0 %v769
  %v2312 = vpop.f32.mrb[0].mxu0
  %v2313 = vadd.f32 %v2120, %v2312
  %v2314 = vpop.f32.mrb[0].mxu0
  %v2315 = vadd.f32 %v2122, %v2314
  %v2316 = vpop.f32.mrb[0].mxu0
  %v2317 = vadd.f32 %v2124, %v2316
  %v2318 = vpop.f32.mrb[0].mxu0
  %v2319 = vadd.f32 %v2126, %v2318
  %2320 = vmatprep.mubr.bf16.mxu0 %v774
  %2321 = vmatmul.mubr.bf16.gmra.mrb[0].mxu0 %v773
  %v2322 = vpop.f32.mrb[0].mxu0
  %v2323 = vadd.f32 %v2130, %v2322
  %v2324 = vpop.f32.mrb[0].mxu0
  %v2325 = vadd.f32 %v2132, %v2324
  %v2326 = vpop.f32.mrb[0].mxu0
  %v2327 = vadd.f32 %v2134, %v2326
  %v2328 = vpop.f32.mrb[0].mxu0
  %v2329 = vadd.f32 %v2136, %v2328
  %2330 = vmatprep.mubr.bf16.mxu0 %v778
  %2331 = vmatmul.mubr.bf16.gmra.mrb[0].mxu0 %v777
  %v2332 = vpop.f32.mrb[0].mxu0
  %v2333 = vadd.f32 %v2140, %v2332
  %v2334 = vpop.f32.mrb[0].mxu0
  %v2335 = vadd.f32 %v2142, %v2334
  %v2336 = vpop.f32.mrb[0].mxu0
  %v2337 = vadd.f32 %v2144, %v2336
  %v2338 = vpop.f32.mrb[0].mxu0
  %v2339 = vadd.f32 %v2146, %v2338
  %2340 = vdwg.mxu0
  %v2341 = vmax.f32 %v1797, 0.0
  %v2342 = vmax.f32 %v1799, 0.0
  %v2343 = vmax.f32 %v2183, 0.0
  %v2344 = vmax.f32 %v2185, 0.0
  %v2345 = vmax.f32 %v1801, 0.0
  %v2346 = vmax.f32 %v1803, 0.0
  %v2347 = vmax.f32 %v2187, 0.0
  %v2348 = vmax.f32 %v2189, 0.0
  %v2349 = vmax.f32 %v1807, 0.0
  %v2350 = vmax.f32 %v1809, 0.0
  %v2351 = vmax.f32 %v2193, 0.0
  %v2352 = vmax.f32 %v2195, 0.0
  %v2353 = vmax.f32 %v1811, 0.0
  %v2354 = vmax.f32 %v1813, 0.0
  %v2355 = vmax.f32 %v2197, 0.0
  %v2356 = vmax.f32 %v2199, 0.0
  %v2357 = vmax.f32 %v1817, 0.0
  %v2358 = vmax.f32 %v1819, 0.0
  %v2359 = vmax.f32 %v2203, 0.0
  %v2360 = vmax.f32 %v2205, 0.0
  %v2361 = vmax.f32 %v1821, 0.0
  %v2362 = vmax.f32 %v1823, 0.0
  %v2363 = vmax.f32 %v2207, 0.0
  %v2364 = vmax.f32 %v2209, 0.0
  %v2365 = vmax.f32 %v1827, 0.0
  %v2366 = vmax.f32 %v1829, 0.0
  %v2367 = vmax.f32 %v2213, 0.0
  %v2368 = vmax.f32 %v2215, 0.0
  %v2369 = vmax.f32 %v1831, 0.0
  %v2370 = vmax.f32 %v1833, 0.0
  %v2371 = vmax.f32 %v2217, 0.0
  %v2372 = vmax.f32 %v2219, 0.0
  %v2373 = vmax.f32 %v1837, 0.0
  %v2374 = vmax.f32 %v1839, 0.0
  %v2375 = vmax.f32 %v2223, 0.0
  %v2376 = vmax.f32 %v2225, 0.0
  %v2377 = vmax.f32 %v1841, 0.0
  %v2378 = vmax.f32 %v1843, 0.0
  %v2379 = vmax.f32 %v2227, 0.0
  %v2380 = vmax.f32 %v2229, 0.0
  %v2381 = vmax.f32 %v1847, 0.0
  %v2382 = vmax.f32 %v1849, 0.0
  %v2383 = vmax.f32 %v2233, 0.0
  %v2384 = vmax.f32 %v2235, 0.0
  %v2385 = vmax.f32 %v1851, 0.0
  %v2386 = vmax.f32 %v1853, 0.0
  %v2387 = vmax.f32 %v2237, 0.0
  %v2388 = vmax.f32 %v2239, 0.0
  %v2389 = vmax.f32 %v1857, 0.0
  %v2390 = vmax.f32 %v1859, 0.0
  %v2391 = vmax.f32 %v2243, 0.0
  %v2392 = vmax.f32 %v2245, 0.0
  %v2393 = vmax.f32 %v1861, 0.0
  %v2394 = vmax.f32 %v1863, 0.0
  %v2395 = vmax.f32 %v2247, 0.0
  %v2396 = vmax.f32 %v2249, 0.0
  %v2397 = vmax.f32 %v1867, 0.0
  %v2398 = vmax.f32 %v1869, 0.0
  %v2399 = vmax.f32 %v2253, 0.0
  %v2400 = vmax.f32 %v2255, 0.0
  %v2401 = vmax.f32 %v1871, 0.0
  %v2402 = vmax.f32 %v1873, 0.0
  %v2403 = vmax.f32 %v2257, 0.0
  %v2404 = vmax.f32 %v2259, 0.0
  %v2405 = vmax.f32 %v1877, 0.0
  %v2406 = vmax.f32 %v1879, 0.0
  %v2407 = vmax.f32 %v2263, 0.0
  %v2408 = vmax.f32 %v2265, 0.0
  %v2409 = vmax.f32 %v1881, 0.0
  %v2410 = vmax.f32 %v1883, 0.0
  %v2411 = vmax.f32 %v2267, 0.0
  %v2412 = vmax.f32 %v2269, 0.0
  %v2413 = vmax.f32 %v1887, 0.0
  %v2414 = vmax.f32 %v1889, 0.0
  %v2415 = vmax.f32 %v2273, 0.0
  %v2416 = vmax.f32 %v2275, 0.0
  %v2417 = vmax.f32 %v1891, 0.0
  %v2418 = vmax.f32 %v1893, 0.0
  %v2419 = vmax.f32 %v2277, 0.0
  %v2420 = vmax.f32 %v2279, 0.0
  %v2421 = vmax.f32 %v1897, 0.0
  %v2422 = vmax.f32 %v1899, 0.0
  %v2423 = vmax.f32 %v2283, 0.0
  %v2424 = vmax.f32 %v2285, 0.0
  %v2425 = vmax.f32 %v1901, 0.0
  %v2426 = vmax.f32 %v1903, 0.0
  %v2427 = vmax.f32 %v2287, 0.0
  %v2428 = vmax.f32 %v2289, 0.0
  %v2429 = vmax.f32 %v1907, 0.0
  %v2430 = vmax.f32 %v1909, 0.0
  %v2431 = vmax.f32 %v2293, 0.0
  %v2432 = vmax.f32 %v2295, 0.0
  %v2433 = vmax.f32 %v1911, 0.0
  %v2434 = vmax.f32 %v1913, 0.0
  %v2435 = vmax.f32 %v2297, 0.0
  %v2436 = vmax.f32 %v2299, 0.0
  %v2437 = vmax.f32 %v1917, 0.0
  %v2438 = vmax.f32 %v1919, 0.0
  %v2439 = vmax.f32 %v2303, 0.0
  %v2440 = vmax.f32 %v2305, 0.0
  %v2441 = vmax.f32 %v1921, 0.0
  %v2442 = vmax.f32 %v1923, 0.0
  %v2443 = vmax.f32 %v2307, 0.0
  %v2444 = vmax.f32 %v2309, 0.0
  %v2445 = vmax.f32 %v1927, 0.0
  %v2446 = vmax.f32 %v1929, 0.0
  %v2447 = vmax.f32 %v2313, 0.0
  %v2448 = vmax.f32 %v2315, 0.0
  %v2449 = vmax.f32 %v1931, 0.0
  %v2450 = vmax.f32 %v1933, 0.0
  %v2451 = vmax.f32 %v2317, 0.0
  %v2452 = vmax.f32 %v2319, 0.0
  %v2453 = vmax.f32 %v1937, 0.0
  %v2454 = vmax.f32 %v1939, 0.0
  %v2455 = vmax.f32 %v2323, 0.0
  %v2456 = vmax.f32 %v2325, 0.0
  %v2457 = vmax.f32 %v1941, 0.0
  %v2458 = vmax.f32 %v1943, 0.0
  %v2459 = vmax.f32 %v2327, 0.0
  %v2460 = vmax.f32 %v2329, 0.0
  %v2461 = vmax.f32 %v1947, 0.0
  %v2462 = vmax.f32 %v1949, 0.0
  %v2463 = vmax.f32 %v2333, 0.0
  %v2464 = vmax.f32 %v2335, 0.0
  %v2465 = vmax.f32 %v1951, 0.0
  %v2466 = vmax.f32 %v1953, 0.0
  %v2467 = vmax.f32 %v2337, 0.0
  %v2468 = vmax.f32 %v2339, 0.0
  %v2469 = vpack.c.bf16 %v2345, %v2341
  %v2470 = vpack.c.bf16 %v2346, %v2342
  %v2471 = vpack.c.bf16 %v2347, %v2343
  %v2472 = vpack.c.bf16 %v2348, %v2344
  %v2473 = vpack.c.bf16 %v2353, %v2349
  %v2474 = vpack.c.bf16 %v2354, %v2350
  %v2475 = vpack.c.bf16 %v2355, %v2351
  %v2476 = vpack.c.bf16 %v2356, %v2352
  %v2477 = vpack.c.bf16 %v2361, %v2357
  %v2478 = vpack.c.bf16 %v2362, %v2358
  %v2479 = vpack.c.bf16 %v2363, %v2359
  %v2480 = vpack.c.bf16 %v2364, %v2360
  %v2481 = vpack.c.bf16 %v2369, %v2365
  %v2482 = vpack.c.bf16 %v2370, %v2366
  %v2483 = vpack.c.bf16 %v2371, %v2367
  %v2484 = vpack.c.bf16 %v2372, %v2368
  %v2485 = vpack.c.bf16 %v2377, %v2373
  %v2486 = vpack.c.bf16 %v2378, %v2374
  %v2487 = vpack.c.bf16 %v2379, %v2375
  %v2488 = vpack.c.bf16 %v2380, %v2376
  %v2489 = vpack.c.bf16 %v2385, %v2381
  %v2490 = vpack.c.bf16 %v2386, %v2382
  %v2491 = vpack.c.bf16 %v2387, %v2383
  %v2492 = vpack.c.bf16 %v2388, %v2384
  %v2493 = vpack.c.bf16 %v2393, %v2389
  %v2494 = vpack.c.bf16 %v2394, %v2390
  %v2495 = vpack.c.bf16 %v2395, %v2391
  %v2496 = vpack.c.bf16 %v2396, %v2392
  %v2497 = vpack.c.bf16 %v2401, %v2397
  %v2498 = vpack.c.bf16 %v2402, %v2398
  %v2499 = vpack.c.bf16 %v2403, %v2399
  %v2500 = vpack.c.bf16 %v2404, %v2400
  %v2501 = vpack.c.bf16 %v2409, %v2405
  %v2502 = vpack.c.bf16 %v2410, %v2406
  %v2503 = vpack.c.bf16 %v2411, %v2407
  %v2504 = vpack.c.bf16 %v2412, %v2408
  %v2505 = vpack.c.bf16 %v2417, %v2413
  %v2506 = vpack.c.bf16 %v2418, %v2414
  %v2507 = vpack.c.bf16 %v2419, %v2415
  %v2508 = vpack.c.bf16 %v2420, %v2416
  %v2509 = vpack.c.bf16 %v2425, %v2421
  %v2510 = vpack.c.bf16 %v2426, %v2422
  %v2511 = vpack.c.bf16 %v2427, %v2423
  %v2512 = vpack.c.bf16 %v2428, %v2424
  %v2513 = vpack.c.bf16 %v2433, %v2429
  %v2514 = vpack.c.bf16 %v2434, %v2430
  %v2515 = vpack.c.bf16 %v2435, %v2431
  %v2516 = vpack.c.bf16 %v2436, %v2432
  %v2517 = vpack.c.bf16 %v2441, %v2437
  %v2518 = vpack.c.bf16 %v2442, %v2438
  %v2519 = vpack.c.bf16 %v2443, %v2439
  %v2520 = vpack.c.bf16 %v2444, %v2440
  %v2521 = vpack.c.bf16 %v2449, %v2445
  %v2522 = vpack.c.bf16 %v2450, %v2446
  %v2523 = vpack.c.bf16 %v2451, %v2447
  %v2524 = vpack.c.bf16 %v2452, %v2448
  %v2525 = vpack.c.bf16 %v2457, %v2453
  %v2526 = vpack.c.bf16 %v2458, %v2454
  %v2527 = vpack.c.bf16 %v2459, %v2455
  %v2528 = vpack.c.bf16 %v2460, %v2456
  %v2529 = vpack.c.bf16 %v2465, %v2461
  %v2530 = vpack.c.bf16 %v2466, %v2462
  %v2531 = vpack.c.bf16 %v2467, %v2463
  %v2532 = vpack.c.bf16 %v2468, %v2464
  %v2533 = vld [vmem:[%s5] sm:$0xff]
  %v2534 = vld [vmem:[%s5 + $0x8] sm:$0xff]
  %v2535 = vld [vmem:[%s5 + $0x10] sm:$0xff]
  %v2536 = vld [vmem:[%s5 + $0x18] sm:$0xff]
  %v2537 = vld [vmem:[%s5 + $0x20] sm:$0xff]
  %v2538 = vld [vmem:[%s5 + $0x28] sm:$0xff]
  %v2539 = vld [vmem:[%s5 + $0x30] sm:$0xff]
  %v2540 = vld [vmem:[%s5 + $0x38] sm:$0xff]
  %v2541 = vld [vmem:[%s5 + $0x40] sm:$0xff]
  %v2542 = vld [vmem:[%s5 + $0x48] sm:$0xff]
  %v2543 = vld [vmem:[%s5 + $0x50] sm:$0xff]
  %v2544 = vld [vmem:[%s5 + $0x58] sm:$0xff]
  %v2545 = vld [vmem:[%s5 + $0x60] sm:$0xff]
  %v2546 = vld [vmem:[%s5 + $0x68] sm:$0xff]
  %v2547 = vld [vmem:[%s5 + $0x70] sm:$0xff]
  %v2548 = vld [vmem:[%s5 + $0x78] sm:$0xff]
  %v2549 = vld [vmem:[%s5 + $0x80] sm:$0xff]
  %v2550 = vld [vmem:[%s5 + $0x88] sm:$0xff]
  %v2551 = vld [vmem:[%s5 + $0x90] sm:$0xff]
  %v2552 = vld [vmem:[%s5 + $0x98] sm:$0xff]
  %v2553 = vld [vmem:[%s5 + $0xa0] sm:$0xff]
  %v2554 = vld [vmem:[%s5 + $0xa8] sm:$0xff]
  %v2555 = vld [vmem:[%s5 + $0xb0] sm:$0xff]
  %v2556 = vld [vmem:[%s5 + $0xb8] sm:$0xff]
  %v2557 = vld [vmem:[%s5 + $0xc0] sm:$0xff]
  %v2558 = vld [vmem:[%s5 + $0xc8] sm:$0xff]
  %v2559 = vld [vmem:[%s5 + $0xd0] sm:$0xff]
  %v2560 = vld [vmem:[%s5 + $0xd8] sm:$0xff]
  %v2561 = vld [vmem:[%s5 + $0xe0] sm:$0xff]
  %v2562 = vld [vmem:[%s5 + $0xe8] sm:$0xff]
  %v2563 = vld [vmem:[%s5 + $0xf0] sm:$0xff]
  %v2564 = vld [vmem:[%s5 + $0xf8] sm:$0xff]
  %v2565 = vld [vmem:[%s5 + $0x100] sm:$0xff]
  %v2566 = vld [vmem:[%s5 + $0x108] sm:$0xff]
  %v2567 = vld [vmem:[%s5 + $0x110] sm:$0xff]
  %v2568 = vld [vmem:[%s5 + $0x118] sm:$0xff]
  %v2569 = vld [vmem:[%s5 + $0x120] sm:$0xff]
  %v2570 = vld [vmem:[%s5 + $0x128] sm:$0xff]
  %v2571 = vld [vmem:[%s5 + $0x130] sm:$0xff]
  %v2572 = vld [vmem:[%s5 + $0x138] sm:$0xff]
  %v2573 = vld [vmem:[%s5 + $0x140] sm:$0xff]
  %v2574 = vld [vmem:[%s5 + $0x148] sm:$0xff]
  %v2575 = vld [vmem:[%s5 + $0x150] sm:$0xff]
  %v2576 = vld [vmem:[%s5 + $0x158] sm:$0xff]
  %v2577 = vld [vmem:[%s5 + $0x160] sm:$0xff]
  %v2578 = vld [vmem:[%s5 + $0x168] sm:$0xff]
  %v2579 = vld [vmem:[%s5 + $0x170] sm:$0xff]
  %v2580 = vld [vmem:[%s5 + $0x178] sm:$0xff]
  %v2581 = vld [vmem:[%s5 + $0x180] sm:$0xff]
  %v2582 = vld [vmem:[%s5 + $0x188] sm:$0xff]
  %v2583 = vld [vmem:[%s5 + $0x190] sm:$0xff]
  %v2584 = vld [vmem:[%s5 + $0x198] sm:$0xff]
  %v2585 = vld [vmem:[%s5 + $0x1a0] sm:$0xff]
  %v2586 = vld [vmem:[%s5 + $0x1a8] sm:$0xff]
  %v2587 = vld [vmem:[%s5 + $0x1b0] sm:$0xff]
  %v2588 = vld [vmem:[%s5 + $0x1b8] sm:$0xff]
  %v2589 = vld [vmem:[%s5 + $0x1c0] sm:$0xff]
  %v2590 = vld [vmem:[%s5 + $0x1c8] sm:$0xff]
  %v2591 = vld [vmem:[%s5 + $0x1d0] sm:$0xff]
  %v2592 = vld [vmem:[%s5 + $0x1d8] sm:$0xff]
  %v2593 = vld [vmem:[%s5 + $0x1e0] sm:$0xff]
  %v2594 = vld [vmem:[%s5 + $0x1e8] sm:$0xff]
  %v2595 = vld [vmem:[%s5 + $0x1f0] sm:$0xff]
  %v2596 = vld [vmem:[%s5 + $0x1f8] sm:$0xff]
  %v2597 = vld [vmem:[%s5 + $0x200] sm:$0xff]
  %v2598 = vld [vmem:[%s5 + $0x208] sm:$0xff]
  %v2599 = vld [vmem:[%s5 + $0x210] sm:$0xff]
  %v2600 = vld [vmem:[%s5 + $0x218] sm:$0xff]
  %v2601 = vld [vmem:[%s5 + $0x220] sm:$0xff]
  %v2602 = vld [vmem:[%s5 + $0x228] sm:$0xff]
  %v2603 = vld [vmem:[%s5 + $0x230] sm:$0xff]
  %v2604 = vld [vmem:[%s5 + $0x238] sm:$0xff]
  %v2605 = vld [vmem:[%s5 + $0x240] sm:$0xff]
  %v2606 = vld [vmem:[%s5 + $0x248] sm:$0xff]
  %v2607 = vld [vmem:[%s5 + $0x250] sm:$0xff]
  %v2608 = vld [vmem:[%s5 + $0x258] sm:$0xff]
  %v2609 = vld [vmem:[%s5 + $0x260] sm:$0xff]
  %v2610 = vld [vmem:[%s5 + $0x268] sm:$0xff]
  %v2611 = vld [vmem:[%s5 + $0x270] sm:$0xff]
  %v2612 = vld [vmem:[%s5 + $0x278] sm:$0xff]
  %v2613 = vld [vmem:[%s5 + $0x280] sm:$0xff]
  %v2614 = vld [vmem:[%s5 + $0x288] sm:$0xff]
  %v2615 = vld [vmem:[%s5 + $0x290] sm:$0xff]
  %v2616 = vld [vmem:[%s5 + $0x298] sm:$0xff]
  %v2617 = vld [vmem:[%s5 + $0x2a0] sm:$0xff]
  %v2618 = vld [vmem:[%s5 + $0x2a8] sm:$0xff]
  %v2619 = vld [vmem:[%s5 + $0x2b0] sm:$0xff]
  %v2620 = vld [vmem:[%s5 + $0x2b8] sm:$0xff]
  %v2621 = vld [vmem:[%s5 + $0x2c0] sm:$0xff]
  %v2622 = vld [vmem:[%s5 + $0x2c8] sm:$0xff]
  %v2623 = vld [vmem:[%s5 + $0x2d0] sm:$0xff]
  %v2624 = vld [vmem:[%s5 + $0x2d8] sm:$0xff]
  %v2625 = vld [vmem:[%s5 + $0x2e0] sm:$0xff]
  %v2626 = vld [vmem:[%s5 + $0x2e8] sm:$0xff]
  %v2627 = vld [vmem:[%s5 + $0x2f0] sm:$0xff]
  %v2628 = vld [vmem:[%s5 + $0x2f8] sm:$0xff]
  %v2629 = vld [vmem:[%s5 + $0x300] sm:$0xff]
  %v2630 = vld [vmem:[%s5 + $0x308] sm:$0xff]
  %v2631 = vld [vmem:[%s5 + $0x310] sm:$0xff]
  %v2632 = vld [vmem:[%s5 + $0x318] sm:$0xff]
  %v2633 = vld [vmem:[%s5 + $0x320] sm:$0xff]
  %v2634 = vld [vmem:[%s5 + $0x328] sm:$0xff]
  %v2635 = vld [vmem:[%s5 + $0x330] sm:$0xff]
  %v2636 = vld [vmem:[%s5 + $0x338] sm:$0xff]
  %v2637 = vld [vmem:[%s5 + $0x340] sm:$0xff]
  %v2638 = vld [vmem:[%s5 + $0x348] sm:$0xff]
  %v2639 = vld [vmem:[%s5 + $0x350] sm:$0xff]
  %v2640 = vld [vmem:[%s5 + $0x358] sm:$0xff]
  %v2641 = vld [vmem:[%s5 + $0x360] sm:$0xff]
  %v2642 = vld [vmem:[%s5 + $0x368] sm:$0xff]
  %v2643 = vld [vmem:[%s5 + $0x370] sm:$0xff]
  %v2644 = vld [vmem:[%s5 + $0x378] sm:$0xff]
  %v2645 = vld [vmem:[%s5 + $0x380] sm:$0xff]
  %v2646 = vld [vmem:[%s5 + $0x388] sm:$0xff]
  %v2647 = vld [vmem:[%s5 + $0x390] sm:$0xff]
  %v2648 = vld [vmem:[%s5 + $0x398] sm:$0xff]
  %v2649 = vld [vmem:[%s5 + $0x3a0] sm:$0xff]
  %v2650 = vld [vmem:[%s5 + $0x3a8] sm:$0xff]
  %v2651 = vld [vmem:[%s5 + $0x3b0] sm:$0xff]
  %v2652 = vld [vmem:[%s5 + $0x3b8] sm:$0xff]
  %v2653 = vld [vmem:[%s5 + $0x3c0] sm:$0xff]
  %v2654 = vld [vmem:[%s5 + $0x3c8] sm:$0xff]
  %v2655 = vld [vmem:[%s5 + $0x3d0] sm:$0xff]
  %v2656 = vld [vmem:[%s5 + $0x3d8] sm:$0xff]
  %v2657 = vld [vmem:[%s5 + $0x3e0] sm:$0xff]
  %v2658 = vld [vmem:[%s5 + $0x3e8] sm:$0xff]
  %v2659 = vld [vmem:[%s5 + $0x3f0] sm:$0xff]
  %v2660 = vld [vmem:[%s5 + $0x3f8] sm:$0xff]
  %v2661 = vld [vmem:[%s6] sm:$0xf]
  %v2663 = vlaneseq
  %v2664 = vshrl.u32 %v2663, 7
  %v2665 = vsub.s32 0, %v2664
  %v2666 = vrot.slane %v2661, %v2665
  %v2667 = vlaneseq
  %v2668 = vshrl.u32 %v2667, 7
  %v2669 = vsub.s32 1, %v2668
  %v2670 = vrot.slane %v2661, %v2669
  %v2671 = vlaneseq
  %v2672 = vshrl.u32 %v2671, 7
  %v2673 = vsub.s32 2, %v2672
  %v2674 = vrot.slane %v2661, %v2673
  %v2675 = vlaneseq
  %v2676 = vshrl.u32 %v2675, 7
  %v2677 = vsub.s32 3, %v2676
  %v2678 = vrot.slane %v2661, %v2677
  %v2811 = vunpack.c.l.b16 %v2533
  %v2812 = vunpack.c.h.b16 %v2533
  %v2813 = vunpack.c.l.b16 %v2534
  %v2814 = vunpack.c.h.b16 %v2534
  %v2815 = vunpack.c.l.b16 %v2535
  %v2816 = vunpack.c.h.b16 %v2535
  %v2817 = vunpack.c.l.b16 %v2536
  %v2818 = vunpack.c.h.b16 %v2536
  %v2819 = vunpack.c.l.b16 %v2537
  %v2820 = vunpack.c.h.b16 %v2537
  %v2821 = vunpack.c.l.b16 %v2538
  %v2822 = vunpack.c.h.b16 %v2538
  %v2823 = vunpack.c.l.b16 %v2539
  %v2824 = vunpack.c.h.b16 %v2539
  %v2825 = vunpack.c.l.b16 %v2540
  %v2826 = vunpack.c.h.b16 %v2540
  %v2827 = vunpack.c.l.b16 %v2541
  %v2828 = vunpack.c.h.b16 %v2541
  %v2829 = vunpack.c.l.b16 %v2542
  %v2830 = vunpack.c.h.b16 %v2542
  %v2831 = vunpack.c.l.b16 %v2543
  %v2832 = vunpack.c.h.b16 %v2543
  %v2833 = vunpack.c.l.b16 %v2544
  %v2834 = vunpack.c.h.b16 %v2544
  %v2835 = vunpack.c.l.b16 %v2545
  %v2836 = vunpack.c.h.b16 %v2545
  %v2837 = vunpack.c.l.b16 %v2546
  %v2838 = vunpack.c.h.b16 %v2546
  %v2839 = vunpack.c.l.b16 %v2547
  %v2840 = vunpack.c.h.b16 %v2547
  %v2841 = vunpack.c.l.b16 %v2548
  %v2842 = vunpack.c.h.b16 %v2548
  %v2843 = vunpack.c.l.b16 %v2549
  %v2844 = vunpack.c.h.b16 %v2549
  %v2845 = vunpack.c.l.b16 %v2550
  %v2846 = vunpack.c.h.b16 %v2550
  %v2847 = vunpack.c.l.b16 %v2551
  %v2848 = vunpack.c.h.b16 %v2551
  %v2849 = vunpack.c.l.b16 %v2552
  %v2850 = vunpack.c.h.b16 %v2552
  %v2851 = vunpack.c.l.b16 %v2553
  %v2852 = vunpack.c.h.b16 %v2553
  %v2853 = vunpack.c.l.b16 %v2554
  %v2854 = vunpack.c.h.b16 %v2554
  %v2855 = vunpack.c.l.b16 %v2555
  %v2856 = vunpack.c.h.b16 %v2555
  %v2857 = vunpack.c.l.b16 %v2556
  %v2858 = vunpack.c.h.b16 %v2556
  %v2859 = vunpack.c.l.b16 %v2557
  %v2860 = vunpack.c.h.b16 %v2557
  %v2861 = vunpack.c.l.b16 %v2558
  %v2862 = vunpack.c.h.b16 %v2558
  %v2863 = vunpack.c.l.b16 %v2559
  %v2864 = vunpack.c.h.b16 %v2559
  %v2865 = vunpack.c.l.b16 %v2560
  %v2866 = vunpack.c.h.b16 %v2560
  %v2867 = vunpack.c.l.b16 %v2561
  %v2868 = vunpack.c.h.b16 %v2561
  %v2869 = vunpack.c.l.b16 %v2562
  %v2870 = vunpack.c.h.b16 %v2562
  %v2871 = vunpack.c.l.b16 %v2563
  %v2872 = vunpack.c.h.b16 %v2563
  %v2873 = vunpack.c.l.b16 %v2564
  %v2874 = vunpack.c.h.b16 %v2564
  %v2875 = vunpack.c.l.b16 %v2565
  %v2876 = vunpack.c.h.b16 %v2565
  %v2877 = vunpack.c.l.b16 %v2566
  %v2878 = vunpack.c.h.b16 %v2566
  %v2879 = vunpack.c.l.b16 %v2567
  %v2880 = vunpack.c.h.b16 %v2567
  %v2881 = vunpack.c.l.b16 %v2568
  %v2882 = vunpack.c.h.b16 %v2568
  %v2883 = vunpack.c.l.b16 %v2569
  %v2884 = vunpack.c.h.b16 %v2569
  %v2885 = vunpack.c.l.b16 %v2570
  %v2886 = vunpack.c.h.b16 %v2570
  %v2887 = vunpack.c.l.b16 %v2571
  %v2888 = vunpack.c.h.b16 %v2571
  %v2889 = vunpack.c.l.b16 %v2572
  %v2890 = vunpack.c.h.b16 %v2572
  %v2891 = vunpack.c.l.b16 %v2573
  %v2892 = vunpack.c.h.b16 %v2573
  %v2893 = vunpack.c.l.b16 %v2574
  %v2894 = vunpack.c.h.b16 %v2574
  %v2895 = vunpack.c.l.b16 %v2575
  %v2896 = vunpack.c.h.b16 %v2575
  %v2897 = vunpack.c.l.b16 %v2576
  %v2898 = vunpack.c.h.b16 %v2576
  %v2899 = vunpack.c.l.b16 %v2577
  %v2900 = vunpack.c.h.b16 %v2577
  %v2901 = vunpack.c.l.b16 %v2578
  %v2902 = vunpack.c.h.b16 %v2578
  %v2903 = vunpack.c.l.b16 %v2579
  %v2904 = vunpack.c.h.b16 %v2579
  %v2905 = vunpack.c.l.b16 %v2580
  %v2906 = vunpack.c.h.b16 %v2580
  %v2907 = vunpack.c.l.b16 %v2581
  %v2908 = vunpack.c.h.b16 %v2581
  %v2909 = vunpack.c.l.b16 %v2582
  %v2910 = vunpack.c.h.b16 %v2582
  %v2911 = vunpack.c.l.b16 %v2583
  %v2912 = vunpack.c.h.b16 %v2583
  %v2913 = vunpack.c.l.b16 %v2584
  %v2914 = vunpack.c.h.b16 %v2584
  %v2915 = vunpack.c.l.b16 %v2585
  %v2916 = vunpack.c.h.b16 %v2585
  %v2917 = vunpack.c.l.b16 %v2586
  %v2918 = vunpack.c.h.b16 %v2586
  %v2919 = vunpack.c.l.b16 %v2587
  %v2920 = vunpack.c.h.b16 %v2587
  %v2921 = vunpack.c.l.b16 %v2588
  %v2922 = vunpack.c.h.b16 %v2588
  %v2923 = vunpack.c.l.b16 %v2589
  %v2924 = vunpack.c.h.b16 %v2589
  %v2925 = vunpack.c.l.b16 %v2590
  %v2926 = vunpack.c.h.b16 %v2590
  %v2927 = vunpack.c.l.b16 %v2591
  %v2928 = vunpack.c.h.b16 %v2591
  %v2929 = vunpack.c.l.b16 %v2592
  %v2930 = vunpack.c.h.b16 %v2592
  %v2931 = vunpack.c.l.b16 %v2593
  %v2932 = vunpack.c.h.b16 %v2593
  %v2933 = vunpack.c.l.b16 %v2594
  %v2934 = vunpack.c.h.b16 %v2594
  %v2935 = vunpack.c.l.b16 %v2595
  %v2936 = vunpack.c.h.b16 %v2595
  %v2937 = vunpack.c.l.b16 %v2596
  %v2938 = vunpack.c.h.b16 %v2596
  %v2939 = vunpack.c.l.b16 %v2597
  %v2940 = vunpack.c.h.b16 %v2597
  %v2941 = vunpack.c.l.b16 %v2598
  %v2942 = vunpack.c.h.b16 %v2598
  %v2943 = vunpack.c.l.b16 %v2599
  %v2944 = vunpack.c.h.b16 %v2599
  %v2945 = vunpack.c.l.b16 %v2600
  %v2946 = vunpack.c.h.b16 %v2600
  %v2947 = vunpack.c.l.b16 %v2601
  %v2948 = vunpack.c.h.b16 %v2601
  %v2949 = vunpack.c.l.b16 %v2602
  %v2950 = vunpack.c.h.b16 %v2602
  %v2951 = vunpack.c.l.b16 %v2603
  %v2952 = vunpack.c.h.b16 %v2603
  %v2953 = vunpack.c.l.b16 %v2604
  %v2954 = vunpack.c.h.b16 %v2604
  %v2955 = vunpack.c.l.b16 %v2605
  %v2956 = vunpack.c.h.b16 %v2605
  %v2957 = vunpack.c.l.b16 %v2606
  %v2958 = vunpack.c.h.b16 %v2606
  %v2959 = vunpack.c.l.b16 %v2607
  %v2960 = vunpack.c.h.b16 %v2607
  %v2961 = vunpack.c.l.b16 %v2608
  %v2962 = vunpack.c.h.b16 %v2608
  %v2963 = vunpack.c.l.b16 %v2609
  %v2964 = vunpack.c.h.b16 %v2609
  %v2965 = vunpack.c.l.b16 %v2610
  %v2966 = vunpack.c.h.b16 %v2610
  %v2967 = vunpack.c.l.b16 %v2611
  %v2968 = vunpack.c.h.b16 %v2611
  %v2969 = vunpack.c.l.b16 %v2612
  %v2970 = vunpack.c.h.b16 %v2612
  %v2971 = vunpack.c.l.b16 %v2613
  %v2972 = vunpack.c.h.b16 %v2613
  %v2973 = vunpack.c.l.b16 %v2614
  %v2974 = vunpack.c.h.b16 %v2614
  %v2975 = vunpack.c.l.b16 %v2615
  %v2976 = vunpack.c.h.b16 %v2615
  %v2977 = vunpack.c.l.b16 %v2616
  %v2978 = vunpack.c.h.b16 %v2616
  %v2979 = vunpack.c.l.b16 %v2617
  %v2980 = vunpack.c.h.b16 %v2617
  %v2981 = vunpack.c.l.b16 %v2618
  %v2982 = vunpack.c.h.b16 %v2618
  %v2983 = vunpack.c.l.b16 %v2619
  %v2984 = vunpack.c.h.b16 %v2619
  %v2985 = vunpack.c.l.b16 %v2620
  %v2986 = vunpack.c.h.b16 %v2620
  %v2987 = vunpack.c.l.b16 %v2621
  %v2988 = vunpack.c.h.b16 %v2621
  %v2989 = vunpack.c.l.b16 %v2622
  %v2990 = vunpack.c.h.b16 %v2622
  %v2991 = vunpack.c.l.b16 %v2623
  %v2992 = vunpack.c.h.b16 %v2623
  %v2993 = vunpack.c.l.b16 %v2624
  %v2994 = vunpack.c.h.b16 %v2624
  %v2995 = vunpack.c.l.b16 %v2625
  %v2996 = vunpack.c.h.b16 %v2625
  %v2997 = vunpack.c.l.b16 %v2626
  %v2998 = vunpack.c.h.b16 %v2626
  %v2999 = vunpack.c.l.b16 %v2627
  %v3000 = vunpack.c.h.b16 %v2627
  %v3001 = vunpack.c.l.b16 %v2628
  %v3002 = vunpack.c.h.b16 %v2628
  %v3003 = vunpack.c.l.b16 %v2629
  %v3004 = vunpack.c.h.b16 %v2629
  %v3005 = vunpack.c.l.b16 %v2630
  %v3006 = vunpack.c.h.b16 %v2630
  %v3007 = vunpack.c.l.b16 %v2631
  %v3008 = vunpack.c.h.b16 %v2631
  %v3009 = vunpack.c.l.b16 %v2632
  %v3010 = vunpack.c.h.b16 %v2632
  %v3011 = vunpack.c.l.b16 %v2633
  %v3012 = vunpack.c.h.b16 %v2633
  %v3013 = vunpack.c.l.b16 %v2634
  %v3014 = vunpack.c.h.b16 %v2634
  %v3015 = vunpack.c.l.b16 %v2635
  %v3016 = vunpack.c.h.b16 %v2635
  %v3017 = vunpack.c.l.b16 %v2636
  %v3018 = vunpack.c.h.b16 %v2636
  %v3019 = vunpack.c.l.b16 %v2637
  %v3020 = vunpack.c.h.b16 %v2637
  %v3021 = vunpack.c.l.b16 %v2638
  %v3022 = vunpack.c.h.b16 %v2638
  %v3023 = vunpack.c.l.b16 %v2639
  %v3024 = vunpack.c.h.b16 %v2639
  %v3025 = vunpack.c.l.b16 %v2640
  %v3026 = vunpack.c.h.b16 %v2640
  %v3027 = vunpack.c.l.b16 %v2641
  %v3028 = vunpack.c.h.b16 %v2641
  %v3029 = vunpack.c.l.b16 %v2642
  %v3030 = vunpack.c.h.b16 %v2642
  %v3031 = vunpack.c.l.b16 %v2643
  %v3032 = vunpack.c.h.b16 %v2643
  %v3033 = vunpack.c.l.b16 %v2644
  %v3034 = vunpack.c.h.b16 %v2644
  %v3035 = vunpack.c.l.b16 %v2645
  %v3036 = vunpack.c.h.b16 %v2645
  %v3037 = vunpack.c.l.b16 %v2646
  %v3038 = vunpack.c.h.b16 %v2646
  %v3039 = vunpack.c.l.b16 %v2647
  %v3040 = vunpack.c.h.b16 %v2647
  %v3041 = vunpack.c.l.b16 %v2648
  %v3042 = vunpack.c.h.b16 %v2648
  %v3043 = vunpack.c.l.b16 %v2649
  %v3044 = vunpack.c.h.b16 %v2649
  %v3045 = vunpack.c.l.b16 %v2650
  %v3046 = vunpack.c.h.b16 %v2650
  %v3047 = vunpack.c.l.b16 %v2651
  %v3048 = vunpack.c.h.b16 %v2651
  %v3049 = vunpack.c.l.b16 %v2652
  %v3050 = vunpack.c.h.b16 %v2652
  %v3051 = vunpack.c.l.b16 %v2653
  %v3052 = vunpack.c.h.b16 %v2653
  %v3053 = vunpack.c.l.b16 %v2654
  %v3054 = vunpack.c.h.b16 %v2654
  %v3055 = vunpack.c.l.b16 %v2655
  %v3056 = vunpack.c.h.b16 %v2655
  %v3057 = vunpack.c.l.b16 %v2656
  %v3058 = vunpack.c.h.b16 %v2656
  %v3059 = vunpack.c.l.b16 %v2657
  %v3060 = vunpack.c.h.b16 %v2657
  %v3061 = vunpack.c.l.b16 %v2658
  %v3062 = vunpack.c.h.b16 %v2658
  %v3063 = vunpack.c.l.b16 %v2659
  %v3064 = vunpack.c.h.b16 %v2659
  %v3065 = vunpack.c.l.b16 %v2660
  %v3066 = vunpack.c.h.b16 %v2660
  %v3067 = vpack.c.b16 %v2815, %v2811
  %v3068 = vpack.c.b16 %v2816, %v2812
  %v3069 = vpack.c.b16 %v2817, %v2813
  %v3070 = vpack.c.b16 %v2818, %v2814
  %v3071 = vpack.c.b16 %v2823, %v2819
  %v3072 = vpack.c.b16 %v2824, %v2820
  %v3073 = vpack.c.b16 %v2825, %v2821
  %v3074 = vpack.c.b16 %v2826, %v2822
  %v3075 = vpack.c.b16 %v2831, %v2827
  %v3076 = vpack.c.b16 %v2832, %v2828
  %v3077 = vpack.c.b16 %v2833, %v2829
  %v3078 = vpack.c.b16 %v2834, %v2830
  %v3079 = vpack.c.b16 %v2839, %v2835
  %v3080 = vpack.c.b16 %v2840, %v2836
  %v3081 = vpack.c.b16 %v2841, %v2837
  %v3082 = vpack.c.b16 %v2842, %v2838
  %v3083 = vpack.c.b16 %v2847, %v2843
  %v3084 = vpack.c.b16 %v2848, %v2844
  %v3085 = vpack.c.b16 %v2849, %v2845
  %v3086 = vpack.c.b16 %v2850, %v2846
  %v3087 = vpack.c.b16 %v2855, %v2851
  %v3088 = vpack.c.b16 %v2856, %v2852
  %v3089 = vpack.c.b16 %v2857, %v2853
  %v3090 = vpack.c.b16 %v2858, %v2854
  %v3091 = vpack.c.b16 %v2863, %v2859
  %v3092 = vpack.c.b16 %v2864, %v2860
  %v3093 = vpack.c.b16 %v2865, %v2861
  %v3094 = vpack.c.b16 %v2866, %v2862
  %v3095 = vpack.c.b16 %v2871, %v2867
  %v3096 = vpack.c.b16 %v2872, %v2868
  %v3097 = vpack.c.b16 %v2873, %v2869
  %v3098 = vpack.c.b16 %v2874, %v2870
  %v3099 = vpack.c.b16 %v2879, %v2875
  %v3100 = vpack.c.b16 %v2880, %v2876
  %v3101 = vpack.c.b16 %v2881, %v2877
  %v3102 = vpack.c.b16 %v2882, %v2878
  %v3103 = vpack.c.b16 %v2887, %v2883
  %v3104 = vpack.c.b16 %v2888, %v2884
  %v3105 = vpack.c.b16 %v2889, %v2885
  %v3106 = vpack.c.b16 %v2890, %v2886
  %v3107 = vpack.c.b16 %v2895, %v2891
  %v3108 = vpack.c.b16 %v2896, %v2892
  %v3109 = vpack.c.b16 %v2897, %v2893
  %v3110 = vpack.c.b16 %v2898, %v2894
  %v3111 = vpack.c.b16 %v2903, %v2899
  %v3112 = vpack.c.b16 %v2904, %v2900
  %v3113 = vpack.c.b16 %v2905, %v2901
  %v3114 = vpack.c.b16 %v2906, %v2902
  %v3115 = vpack.c.b16 %v2911, %v2907
  %v3116 = vpack.c.b16 %v2912, %v2908
  %v3117 = vpack.c.b16 %v2913, %v2909
  %v3118 = vpack.c.b16 %v2914, %v2910
  %v3119 = vpack.c.b16 %v2919, %v2915
  %v3120 = vpack.c.b16 %v2920, %v2916
  %v3121 = vpack.c.b16 %v2921, %v2917
  %v3122 = vpack.c.b16 %v2922, %v2918
  %v3123 = vpack.c.b16 %v2927, %v2923
  %v3124 = vpack.c.b16 %v2928, %v2924
  %v3125 = vpack.c.b16 %v2929, %v2925
  %v3126 = vpack.c.b16 %v2930, %v2926
  %v3127 = vpack.c.b16 %v2935, %v2931
  %v3128 = vpack.c.b16 %v2936, %v2932
  %v3129 = vpack.c.b16 %v2937, %v2933
  %v3130 = vpack.c.b16 %v2938, %v2934
  %v3131 = vpack.c.b16 %v2943, %v2939
  %v3132 = vpack.c.b16 %v2944, %v2940
  %v3133 = vpack.c.b16 %v2945, %v2941
  %v3134 = vpack.c.b16 %v2946, %v2942
  %v3135 = vpack.c.b16 %v2951, %v2947
  %v3136 = vpack.c.b16 %v2952, %v2948
  %v3137 = vpack.c.b16 %v2953, %v2949
  %v3138 = vpack.c.b16 %v2954, %v2950
  %v3139 = vpack.c.b16 %v2959, %v2955
  %v3140 = vpack.c.b16 %v2960, %v2956
  %v3141 = vpack.c.b16 %v2961, %v2957
  %v3142 = vpack.c.b16 %v2962, %v2958
  %v3143 = vpack.c.b16 %v2967, %v2963
  %v3144 = vpack.c.b16 %v2968, %v2964
  %v3145 = vpack.c.b16 %v2969, %v2965
  %v3146 = vpack.c.b16 %v2970, %v2966
  %v3147 = vpack.c.b16 %v2975, %v2971
  %v3148 = vpack.c.b16 %v2976, %v2972
  %v3149 = vpack.c.b16 %v2977, %v2973
  %v3150 = vpack.c.b16 %v2978, %v2974
  %v3151 = vpack.c.b16 %v2983, %v2979
  %v3152 = vpack.c.b16 %v2984, %v2980
  %v3153 = vpack.c.b16 %v2985, %v2981
  %v3154 = vpack.c.b16 %v2986, %v2982
  %v3155 = vpack.c.b16 %v2991, %v2987
  %v3156 = vpack.c.b16 %v2992, %v2988
  %v3157 = vpack.c.b16 %v2993, %v2989
  %v3158 = vpack.c.b16 %v2994, %v2990
  %v3159 = vpack.c.b16 %v2999, %v2995
  %v3160 = vpack.c.b16 %v3000, %v2996
  %v3161 = vpack.c.b16 %v3001, %v2997
  %v3162 = vpack.c.b16 %v3002, %v2998
  %v3163 = vpack.c.b16 %v3007, %v3003
  %v3164 = vpack.c.b16 %v3008, %v3004
  %v3165 = vpack.c.b16 %v3009, %v3005
  %v3166 = vpack.c.b16 %v3010, %v3006
  %v3167 = vpack.c.b16 %v3015, %v3011
  %v3168 = vpack.c.b16 %v3016, %v3012
  %v3169 = vpack.c.b16 %v3017, %v3013
  %v3170 = vpack.c.b16 %v3018, %v3014
  %v3171 = vpack.c.b16 %v3023, %v3019
  %v3172 = vpack.c.b16 %v3024, %v3020
  %v3173 = vpack.c.b16 %v3025, %v3021
  %v3174 = vpack.c.b16 %v3026, %v3022
  %v3175 = vpack.c.b16 %v3031, %v3027
  %v3176 = vpack.c.b16 %v3032, %v3028
  %v3177 = vpack.c.b16 %v3033, %v3029
  %v3178 = vpack.c.b16 %v3034, %v3030
  %v3179 = vpack.c.b16 %v3039, %v3035
  %v3180 = vpack.c.b16 %v3040, %v3036
  %v3181 = vpack.c.b16 %v3041, %v3037
  %v3182 = vpack.c.b16 %v3042, %v3038
  %v3183 = vpack.c.b16 %v3047, %v3043
  %v3184 = vpack.c.b16 %v3048, %v3044
  %v3185 = vpack.c.b16 %v3049, %v3045
  %v3186 = vpack.c.b16 %v3050, %v3046
  %v3187 = vpack.c.b16 %v3055, %v3051
  %v3188 = vpack.c.b16 %v3056, %v3052
  %v3189 = vpack.c.b16 %v3057, %v3053
  %v3190 = vpack.c.b16 %v3058, %v3054
  %v3191 = vpack.c.b16 %v3063, %v3059
  %v3192 = vpack.c.b16 %v3064, %v3060
  %v3193 = vpack.c.b16 %v3065, %v3061
  %v3194 = vpack.c.b16 %v3066, %v3062
  %3323 = vmatprep.subr.bf16.mxu0 %v3068
  %3324 = vmatpush1.bf16.msra.mxu0 %v3067
  %3325 = vmatprep.subr.bf16.mxu0 %v3072
  %3326 = vmatpush1.bf16.msra.mxu0 %v3071
  %3327 = vmatprep.subr.bf16.mxu0 %v3076
  %3328 = vmatpush1.bf16.msra.mxu0 %v3075
  %3329 = vmatprep.subr.bf16.mxu0 %v3080
  %3330 = vmatpush1.bf16.msra.mxu0 %v3079
  %3331 = vmatprep.subr.bf16.mxu0 %v3084
  %3332 = vmatpush1.bf16.msra.mxu0 %v3083
  %3333 = vmatprep.subr.bf16.mxu0 %v3088
  %3334 = vmatpush1.bf16.msra.mxu0 %v3087
  %3335 = vmatprep.subr.bf16.mxu0 %v3092
  %3336 = vmatpush1.bf16.msra.mxu0 %v3091
  %3337 = vmatprep.subr.bf16.mxu0 %v3096
  %3338 = vmatpush1.bf16.msra.mxu0 %v3095
  %3339 = vmatprep.subr.bf16.mxu0 %v3100
  %3340 = vmatpush1.bf16.msra.mxu0 %v3099
  %3341 = vmatprep.subr.bf16.mxu0 %v3104
  %3342 = vmatpush1.bf16.msra.mxu0 %v3103
  %3343 = vmatprep.subr.bf16.mxu0 %v3108
  %3344 = vmatpush1.bf16.msra.mxu0 %v3107
  %3345 = vmatprep.subr.bf16.mxu0 %v3112
  %3346 = vmatpush1.bf16.msra.mxu0 %v3111
  %3347 = vmatprep.subr.bf16.mxu0 %v3116
  %3348 = vmatpush1.bf16.msra.mxu0 %v3115
  %3349 = vmatprep.subr.bf16.mxu0 %v3120
  %3350 = vmatpush1.bf16.msra.mxu0 %v3119
  %3351 = vmatprep.subr.bf16.mxu0 %v3124
  %3352 = vmatpush1.bf16.msra.mxu0 %v3123
  %3353 = vmatprep.subr.bf16.mxu0 %v3128
  %3354 = vmatpush1.bf16.msra.mxu0 %v3127
  %3355 = vmatprep.mubr.bf16.mxu0 %v2470
  %3356 = vmatmul.mubr.bf16.gmra.mrb[0].mxu0 %v2469
  %v3357 = vpop.f32.mrb[0].mxu0
  %v3358 = vadd.f32 %v2666, %v3357
  %v3359 = vpop.f32.mrb[0].mxu0
  %v3360 = vadd.f32 %v2670, %v3359
  %v3361 = vpop.f32.mrb[0].mxu0
  %v3362 = vadd.f32 %v2666, %v3361
  %v3363 = vpop.f32.mrb[0].mxu0
  %v3364 = vadd.f32 %v2670, %v3363
  %3365 = vmatprep.mubr.bf16.mxu0 %v2474
  %3366 = vmatmul.mubr.bf16.gmra.mrb[0].mxu0 %v2473
  %v3367 = vpop.f32.mrb[0].mxu0
  %v3368 = vadd.f32 %v2666, %v3367
  %v3369 = vpop.f32.mrb[0].mxu0
  %v3370 = vadd.f32 %v2670, %v3369
  %v3371 = vpop.f32.mrb[0].mxu0
  %v3372 = vadd.f32 %v2666, %v3371
  %v3373 = vpop.f32.mrb[0].mxu0
  %v3374 = vadd.f32 %v2670, %v3373
  %3375 = vmatprep.mubr.bf16.mxu0 %v2478
  %3376 = vmatmul.mubr.bf16.gmra.mrb[0].mxu0 %v2477
  %v3377 = vpop.f32.mrb[0].mxu0
  %v3378 = vadd.f32 %v2666, %v3377
  %v3379 = vpop.f32.mrb[0].mxu0
  %v3380 = vadd.f32 %v2670, %v3379
  %v3381 = vpop.f32.mrb[0].mxu0
  %v3382 = vadd.f32 %v2666, %v3381
  %v3383 = vpop.f32.mrb[0].mxu0
  %v3384 = vadd.f32 %v2670, %v3383
  %3385 = vmatprep.mubr.bf16.mxu0 %v2482
  %3386 = vmatmul.mubr.bf16.gmra.mrb[0].mxu0 %v2481
  %v3387 = vpop.f32.mrb[0].mxu0
  %v3388 = vadd.f32 %v2666, %v3387
  %v3389 = vpop.f32.mrb[0].mxu0
  %v3390 = vadd.f32 %v2670, %v3389
  %v3391 = vpop.f32.mrb[0].mxu0
  %v3392 = vadd.f32 %v2666, %v3391
  %v3393 = vpop.f32.mrb[0].mxu0
  %v3394 = vadd.f32 %v2670, %v3393
  %3395 = vmatprep.mubr.bf16.mxu0 %v2486
  %3396 = vmatmul.mubr.bf16.gmra.mrb[0].mxu0 %v2485
  %v3397 = vpop.f32.mrb[0].mxu0
  %v3398 = vadd.f32 %v2666, %v3397
  %v3399 = vpop.f32.mrb[0].mxu0
  %v3400 = vadd.f32 %v2670, %v3399
  %v3401 = vpop.f32.mrb[0].mxu0
  %v3402 = vadd.f32 %v2666, %v3401
  %v3403 = vpop.f32.mrb[0].mxu0
  %v3404 = vadd.f32 %v2670, %v3403
  %3405 = vmatprep.mubr.bf16.mxu0 %v2490
  %3406 = vmatmul.mubr.bf16.gmra.mrb[0].mxu0 %v2489
  %v3407 = vpop.f32.mrb[0].mxu0
  %v3408 = vadd.f32 %v2666, %v3407
  %v3409 = vpop.f32.mrb[0].mxu0
  %v3410 = vadd.f32 %v2670, %v3409
  %v3411 = vpop.f32.mrb[0].mxu0
  %v3412 = vadd.f32 %v2666, %v3411
  %v3413 = vpop.f32.mrb[0].mxu0
  %v3414 = vadd.f32 %v2670, %v3413
  %3415 = vmatprep.mubr.bf16.mxu0 %v2494
  %3416 = vmatmul.mubr.bf16.gmra.mrb[0].mxu0 %v2493
  %v3417 = vpop.f32.mrb[0].mxu0
  %v3418 = vadd.f32 %v2666, %v3417
  %v3419 = vpop.f32.mrb[0].mxu0
  %v3420 = vadd.f32 %v2670, %v3419
  %v3421 = vpop.f32.mrb[0].mxu0
  %v3422 = vadd.f32 %v2666, %v3421
  %v3423 = vpop.f32.mrb[0].mxu0
  %v3424 = vadd.f32 %v2670, %v3423
  %3425 = vmatprep.mubr.bf16.mxu0 %v2498
  %3426 = vmatmul.mubr.bf16.gmra.mrb[0].mxu0 %v2497
  %v3427 = vpop.f32.mrb[0].mxu0
  %v3428 = vadd.f32 %v2666, %v3427
  %v3429 = vpop.f32.mrb[0].mxu0
  %v3430 = vadd.f32 %v2670, %v3429
  %v3431 = vpop.f32.mrb[0].mxu0
  %v3432 = vadd.f32 %v2666, %v3431
  %v3433 = vpop.f32.mrb[0].mxu0
  %v3434 = vadd.f32 %v2670, %v3433
  %3435 = vmatprep.mubr.bf16.mxu0 %v2502
  %3436 = vmatmul.mubr.bf16.gmra.mrb[0].mxu0 %v2501
  %v3437 = vpop.f32.mrb[0].mxu0
  %v3438 = vadd.f32 %v2666, %v3437
  %v3439 = vpop.f32.mrb[0].mxu0
  %v3440 = vadd.f32 %v2670, %v3439
  %v3441 = vpop.f32.mrb[0].mxu0
  %v3442 = vadd.f32 %v2666, %v3441
  %v3443 = vpop.f32.mrb[0].mxu0
  %v3444 = vadd.f32 %v2670, %v3443
  %3445 = vmatprep.mubr.bf16.mxu0 %v2506
  %3446 = vmatmul.mubr.bf16.gmra.mrb[0].mxu0 %v2505
  %v3447 = vpop.f32.mrb[0].mxu0
  %v3448 = vadd.f32 %v2666, %v3447
  %v3449 = vpop.f32.mrb[0].mxu0
  %v3450 = vadd.f32 %v2670, %v3449
  %v3451 = vpop.f32.mrb[0].mxu0
  %v3452 = vadd.f32 %v2666, %v3451
  %v3453 = vpop.f32.mrb[0].mxu0
  %v3454 = vadd.f32 %v2670, %v3453
  %3455 = vmatprep.mubr.bf16.mxu0 %v2510
  %3456 = vmatmul.mubr.bf16.gmra.mrb[0].mxu0 %v2509
  %v3457 = vpop.f32.mrb[0].mxu0
  %v3458 = vadd.f32 %v2666, %v3457
  %v3459 = vpop.f32.mrb[0].mxu0
  %v3460 = vadd.f32 %v2670, %v3459
  %v3461 = vpop.f32.mrb[0].mxu0
  %v3462 = vadd.f32 %v2666, %v3461
  %v3463 = vpop.f32.mrb[0].mxu0
  %v3464 = vadd.f32 %v2670, %v3463
  %3465 = vmatprep.mubr.bf16.mxu0 %v2514
  %3466 = vmatmul.mubr.bf16.gmra.mrb[0].mxu0 %v2513
  %v3467 = vpop.f32.mrb[0].mxu0
  %v3468 = vadd.f32 %v2666, %v3467
  %v3469 = vpop.f32.mrb[0].mxu0
  %v3470 = vadd.f32 %v2670, %v3469
  %v3471 = vpop.f32.mrb[0].mxu0
  %v3472 = vadd.f32 %v2666, %v3471
  %v3473 = vpop.f32.mrb[0].mxu0
  %v3474 = vadd.f32 %v2670, %v3473
  %3475 = vmatprep.mubr.bf16.mxu0 %v2518
  %3476 = vmatmul.mubr.bf16.gmra.mrb[0].mxu0 %v2517
  %v3477 = vpop.f32.mrb[0].mxu0
  %v3478 = vadd.f32 %v2666, %v3477
  %v3479 = vpop.f32.mrb[0].mxu0
  %v3480 = vadd.f32 %v2670, %v3479
  %v3481 = vpop.f32.mrb[0].mxu0
  %v3482 = vadd.f32 %v2666, %v3481
  %v3483 = vpop.f32.mrb[0].mxu0
  %v3484 = vadd.f32 %v2670, %v3483
  %3485 = vmatprep.mubr.bf16.mxu0 %v2522
  %3486 = vmatmul.mubr.bf16.gmra.mrb[0].mxu0 %v2521
  %v3487 = vpop.f32.mrb[0].mxu0
  %v3488 = vadd.f32 %v2666, %v3487
  %v3489 = vpop.f32.mrb[0].mxu0
  %v3490 = vadd.f32 %v2670, %v3489
  %v3491 = vpop.f32.mrb[0].mxu0
  %v3492 = vadd.f32 %v2666, %v3491
  %v3493 = vpop.f32.mrb[0].mxu0
  %v3494 = vadd.f32 %v2670, %v3493
  %3495 = vmatprep.mubr.bf16.mxu0 %v2526
  %3496 = vmatmul.mubr.bf16.gmra.mrb[0].mxu0 %v2525
  %v3497 = vpop.f32.mrb[0].mxu0
  %v3498 = vadd.f32 %v2666, %v3497
  %v3499 = vpop.f32.mrb[0].mxu0
  %v3500 = vadd.f32 %v2670, %v3499
  %v3501 = vpop.f32.mrb[0].mxu0
  %v3502 = vadd.f32 %v2666, %v3501
  %v3503 = vpop.f32.mrb[0].mxu0
  %v3504 = vadd.f32 %v2670, %v3503
  %3505 = vmatprep.mubr.bf16.mxu0 %v2530
  %3506 = vmatmul.mubr.bf16.gmra.mrb[0].mxu0 %v2529
  %v3507 = vpop.f32.mrb[0].mxu0
  %v3508 = vadd.f32 %v2666, %v3507
  %v3509 = vpop.f32.mrb[0].mxu0
  %v3510 = vadd.f32 %v2670, %v3509
  %v3511 = vpop.f32.mrb[0].mxu0
  %v3512 = vadd.f32 %v2666, %v3511
  %v3513 = vpop.f32.mrb[0].mxu0
  %v3514 = vadd.f32 %v2670, %v3513
  %3515 = vdwg.mxu0
  %3516 = vmatprep.subr.bf16.mxu0 %v3132
  %3517 = vmatpush1.bf16.msra.mxu0 %v3131
  %3518 = vmatprep.subr.bf16.mxu0 %v3136
  %3519 = vmatpush1.bf16.msra.mxu0 %v3135
  %3520 = vmatprep.subr.bf16.mxu0 %v3140
  %3521 = vmatpush1.bf16.msra.mxu0 %v3139
  %3522 = vmatprep.subr.bf16.mxu0 %v3144
  %3523 = vmatpush1.bf16.msra.mxu0 %v3143
  %3524 = vmatprep.subr.bf16.mxu0 %v3148
  %3525 = vmatpush1.bf16.msra.mxu0 %v3147
  %3526 = vmatprep.subr.bf16.mxu0 %v3152
  %3527 = vmatpush1.bf16.msra.mxu0 %v3151
  %3528 = vmatprep.subr.bf16.mxu0 %v3156
  %3529 = vmatpush1.bf16.msra.mxu0 %v3155
  %3530 = vmatprep.subr.bf16.mxu0 %v3160
  %3531 = vmatpush1.bf16.msra.mxu0 %v3159
  %3532 = vmatprep.subr.bf16.mxu0 %v3164
  %3533 = vmatpush1.bf16.msra.mxu0 %v3163
  %3534 = vmatprep.subr.bf16.mxu0 %v3168
  %3535 = vmatpush1.bf16.msra.mxu0 %v3167
  %3536 = vmatprep.subr.bf16.mxu0 %v3172
  %3537 = vmatpush1.bf16.msra.mxu0 %v3171
  %3538 = vmatprep.subr.bf16.mxu0 %v3176
  %3539 = vmatpush1.bf16.msra.mxu0 %v3175
  %3540 = vmatprep.subr.bf16.mxu0 %v3180
  %3541 = vmatpush1.bf16.msra.mxu0 %v3179
  %3542 = vmatprep.subr.bf16.mxu0 %v3184
  %3543 = vmatpush1.bf16.msra.mxu0 %v3183
  %3544 = vmatprep.subr.bf16.mxu0 %v3188
  %3545 = vmatpush1.bf16.msra.mxu0 %v3187
  %3546 = vmatprep.subr.bf16.mxu0 %v3192
  %3547 = vmatpush1.bf16.msra.mxu0 %v3191
  %3548 = vmatprep.mubr.bf16.mxu0 %v2472
  %3549 = vmatmul.mubr.bf16.gmra.mrb[0].mxu0 %v2471
  %v3550 = vpop.f32.mrb[0].mxu0
  %v3551 = vadd.f32 %v3358, %v3550
  %v3552 = vpop.f32.mrb[0].mxu0
  %v3553 = vadd.f32 %v3360, %v3552
  %v3554 = vpop.f32.mrb[0].mxu0
  %v3555 = vadd.f32 %v3362, %v3554
  %v3556 = vpop.f32.mrb[0].mxu0
  %v3557 = vadd.f32 %v3364, %v3556
  %3558 = vmatprep.mubr.bf16.mxu0 %v2476
  %3559 = vmatmul.mubr.bf16.gmra.mrb[0].mxu0 %v2475
  %v3560 = vpop.f32.mrb[0].mxu0
  %v3561 = vadd.f32 %v3368, %v3560
  %v3562 = vpop.f32.mrb[0].mxu0
  %v3563 = vadd.f32 %v3370, %v3562
  %v3564 = vpop.f32.mrb[0].mxu0
  %v3565 = vadd.f32 %v3372, %v3564
  %v3566 = vpop.f32.mrb[0].mxu0
  %v3567 = vadd.f32 %v3374, %v3566
  %3568 = vmatprep.mubr.bf16.mxu0 %v2480
  %3569 = vmatmul.mubr.bf16.gmra.mrb[0].mxu0 %v2479
  %v3570 = vpop.f32.mrb[0].mxu0
  %v3571 = vadd.f32 %v3378, %v3570
  %v3572 = vpop.f32.mrb[0].mxu0
  %v3573 = vadd.f32 %v3380, %v3572
  %v3574 = vpop.f32.mrb[0].mxu0
  %v3575 = vadd.f32 %v3382, %v3574
  %v3576 = vpop.f32.mrb[0].mxu0
  %v3577 = vadd.f32 %v3384, %v3576
  %3578 = vmatprep.mubr.bf16.mxu0 %v2484
  %3579 = vmatmul.mubr.bf16.gmra.mrb[0].mxu0 %v2483
  %v3580 = vpop.f32.mrb[0].mxu0
  %v3581 = vadd.f32 %v3388, %v3580
  %v3582 = vpop.f32.mrb[0].mxu0
  %v3583 = vadd.f32 %v3390, %v3582
  %v3584 = vpop.f32.mrb[0].mxu0
  %v3585 = vadd.f32 %v3392, %v3584
  %v3586 = vpop.f32.mrb[0].mxu0
  %v3587 = vadd.f32 %v3394, %v3586
  %3588 = vmatprep.mubr.bf16.mxu0 %v2488
  %3589 = vmatmul.mubr.bf16.gmra.mrb[0].mxu0 %v2487
  %v3590 = vpop.f32.mrb[0].mxu0
  %v3591 = vadd.f32 %v3398, %v3590
  %v3592 = vpop.f32.mrb[0].mxu0
  %v3593 = vadd.f32 %v3400, %v3592
  %v3594 = vpop.f32.mrb[0].mxu0
  %v3595 = vadd.f32 %v3402, %v3594
  %v3596 = vpop.f32.mrb[0].mxu0
  %v3597 = vadd.f32 %v3404, %v3596
  %3598 = vmatprep.mubr.bf16.mxu0 %v2492
  %3599 = vmatmul.mubr.bf16.gmra.mrb[0].mxu0 %v2491
  %v3600 = vpop.f32.mrb[0].mxu0
  %v3601 = vadd.f32 %v3408, %v3600
  %v3602 = vpop.f32.mrb[0].mxu0
  %v3603 = vadd.f32 %v3410, %v3602
  %v3604 = vpop.f32.mrb[0].mxu0
  %v3605 = vadd.f32 %v3412, %v3604
  %v3606 = vpop.f32.mrb[0].mxu0
  %v3607 = vadd.f32 %v3414, %v3606
  %3608 = vmatprep.mubr.bf16.mxu0 %v2496
  %3609 = vmatmul.mubr.bf16.gmra.mrb[0].mxu0 %v2495
  %v3610 = vpop.f32.mrb[0].mxu0
  %v3611 = vadd.f32 %v3418, %v3610
  %v3612 = vpop.f32.mrb[0].mxu0
  %v3613 = vadd.f32 %v3420, %v3612
  %v3614 = vpop.f32.mrb[0].mxu0
  %v3615 = vadd.f32 %v3422, %v3614
  %v3616 = vpop.f32.mrb[0].mxu0
  %v3617 = vadd.f32 %v3424, %v3616
  %3618 = vmatprep.mubr.bf16.mxu0 %v2500
  %3619 = vmatmul.mubr.bf16.gmra.mrb[0].mxu0 %v2499
  %v3620 = vpop.f32.mrb[0].mxu0
  %v3621 = vadd.f32 %v3428, %v3620
  %v3622 = vpop.f32.mrb[0].mxu0
  %v3623 = vadd.f32 %v3430, %v3622
  %v3624 = vpop.f32.mrb[0].mxu0
  %v3625 = vadd.f32 %v3432, %v3624
  %v3626 = vpop.f32.mrb[0].mxu0
  %v3627 = vadd.f32 %v3434, %v3626
  %3628 = vmatprep.mubr.bf16.mxu0 %v2504
  %3629 = vmatmul.mubr.bf16.gmra.mrb[0].mxu0 %v2503
  %v3630 = vpop.f32.mrb[0].mxu0
  %v3631 = vadd.f32 %v3438, %v3630
  %v3632 = vpop.f32.mrb[0].mxu0
  %v3633 = vadd.f32 %v3440, %v3632
  %v3634 = vpop.f32.mrb[0].mxu0
  %v3635 = vadd.f32 %v3442, %v3634
  %v3636 = vpop.f32.mrb[0].mxu0
  %v3637 = vadd.f32 %v3444, %v3636
  %3638 = vmatprep.mubr.bf16.mxu0 %v2508
  %3639 = vmatmul.mubr.bf16.gmra.mrb[0].mxu0 %v2507
  %v3640 = vpop.f32.mrb[0].mxu0
  %v3641 = vadd.f32 %v3448, %v3640
  %v3642 = vpop.f32.mrb[0].mxu0
  %v3643 = vadd.f32 %v3450, %v3642
  %v3644 = vpop.f32.mrb[0].mxu0
  %v3645 = vadd.f32 %v3452, %v3644
  %v3646 = vpop.f32.mrb[0].mxu0
  %v3647 = vadd.f32 %v3454, %v3646
  %3648 = vmatprep.mubr.bf16.mxu0 %v2512
  %3649 = vmatmul.mubr.bf16.gmra.mrb[0].mxu0 %v2511
  %v3650 = vpop.f32.mrb[0].mxu0
  %v3651 = vadd.f32 %v3458, %v3650
  %v3652 = vpop.f32.mrb[0].mxu0
  %v3653 = vadd.f32 %v3460, %v3652
  %v3654 = vpop.f32.mrb[0].mxu0
  %v3655 = vadd.f32 %v3462, %v3654
  %v3656 = vpop.f32.mrb[0].mxu0
  %v3657 = vadd.f32 %v3464, %v3656
  %3658 = vmatprep.mubr.bf16.mxu0 %v2516
  %3659 = vmatmul.mubr.bf16.gmra.mrb[0].mxu0 %v2515
  %v3660 = vpop.f32.mrb[0].mxu0
  %v3661 = vadd.f32 %v3468, %v3660
  %v3662 = vpop.f32.mrb[0].mxu0
  %v3663 = vadd.f32 %v3470, %v3662
  %v3664 = vpop.f32.mrb[0].mxu0
  %v3665 = vadd.f32 %v3472, %v3664
  %v3666 = vpop.f32.mrb[0].mxu0
  %v3667 = vadd.f32 %v3474, %v3666
  %3668 = vmatprep.mubr.bf16.mxu0 %v2520
  %3669 = vmatmul.mubr.bf16.gmra.mrb[0].mxu0 %v2519
  %v3670 = vpop.f32.mrb[0].mxu0
  %v3671 = vadd.f32 %v3478, %v3670
  %v3672 = vpop.f32.mrb[0].mxu0
  %v3673 = vadd.f32 %v3480, %v3672
  %v3674 = vpop.f32.mrb[0].mxu0
  %v3675 = vadd.f32 %v3482, %v3674
  %v3676 = vpop.f32.mrb[0].mxu0
  %v3677 = vadd.f32 %v3484, %v3676
  %3678 = vmatprep.mubr.bf16.mxu0 %v2524
  %3679 = vmatmul.mubr.bf16.gmra.mrb[0].mxu0 %v2523
  %v3680 = vpop.f32.mrb[0].mxu0
  %v3681 = vadd.f32 %v3488, %v3680
  %v3682 = vpop.f32.mrb[0].mxu0
  %v3683 = vadd.f32 %v3490, %v3682
  %v3684 = vpop.f32.mrb[0].mxu0
  %v3685 = vadd.f32 %v3492, %v3684
  %v3686 = vpop.f32.mrb[0].mxu0
  %v3687 = vadd.f32 %v3494, %v3686
  %3688 = vmatprep.mubr.bf16.mxu0 %v2528
  %3689 = vmatmul.mubr.bf16.gmra.mrb[0].mxu0 %v2527
  %v3690 = vpop.f32.mrb[0].mxu0
  %v3691 = vadd.f32 %v3498, %v3690
  %v3692 = vpop.f32.mrb[0].mxu0
  %v3693 = vadd.f32 %v3500, %v3692
  %v3694 = vpop.f32.mrb[0].mxu0
  %v3695 = vadd.f32 %v3502, %v3694
  %v3696 = vpop.f32.mrb[0].mxu0
  %v3697 = vadd.f32 %v3504, %v3696
  %3698 = vmatprep.mubr.bf16.mxu0 %v2532
  %3699 = vmatmul.mubr.bf16.gmra.mrb[0].mxu0 %v2531
  %v3700 = vpop.f32.mrb[0].mxu0
  %v3701 = vadd.f32 %v3508, %v3700
  %v3702 = vpop.f32.mrb[0].mxu0
  %v3703 = vadd.f32 %v3510, %v3702
  %v3704 = vpop.f32.mrb[0].mxu0
  %v3705 = vadd.f32 %v3512, %v3704
  %v3706 = vpop.f32.mrb[0].mxu0
  %v3707 = vadd.f32 %v3514, %v3706
  %3708 = vdwg.mxu0
  %3709 = vmatprep.subr.bf16.mxu0 %v3070
  %3710 = vmatpush1.bf16.msra.mxu0 %v3069
  %3711 = vmatprep.subr.bf16.mxu0 %v3074
  %3712 = vmatpush1.bf16.msra.mxu0 %v3073
  %3713 = vmatprep.subr.bf16.mxu0 %v3078
  %3714 = vmatpush1.bf16.msra.mxu0 %v3077
  %3715 = vmatprep.subr.bf16.mxu0 %v3082
  %3716 = vmatpush1.bf16.msra.mxu0 %v3081
  %3717 = vmatprep.subr.bf16.mxu0 %v3086
  %3718 = vmatpush1.bf16.msra.mxu0 %v3085
  %3719 = vmatprep.subr.bf16.mxu0 %v3090
  %3720 = vmatpush1.bf16.msra.mxu0 %v3089
  %3721 = vmatprep.subr.bf16.mxu0 %v3094
  %3722 = vmatpush1.bf16.msra.mxu0 %v3093
  %3723 = vmatprep.subr.bf16.mxu0 %v3098
  %3724 = vmatpush1.bf16.msra.mxu0 %v3097
  %3725 = vmatprep.subr.bf16.mxu0 %v3102
  %3726 = vmatpush1.bf16.msra.mxu0 %v3101
  %3727 = vmatprep.subr.bf16.mxu0 %v3106
  %3728 = vmatpush1.bf16.msra.mxu0 %v3105
  %3729 = vmatprep.subr.bf16.mxu0 %v3110
  %3730 = vmatpush1.bf16.msra.mxu0 %v3109
  %3731 = vmatprep.subr.bf16.mxu0 %v3114
  %3732 = vmatpush1.bf16.msra.mxu0 %v3113
  %3733 = vmatprep.subr.bf16.mxu0 %v3118
  %3734 = vmatpush1.bf16.msra.mxu0 %v3117
  %3735 = vmatprep.subr.bf16.mxu0 %v3122
  %3736 = vmatpush1.bf16.msra.mxu0 %v3121
  %3737 = vmatprep.subr.bf16.mxu0 %v3126
  %3738 = vmatpush1.bf16.msra.mxu0 %v3125
  %3739 = vmatprep.subr.bf16.mxu0 %v3130
  %3740 = vmatpush1.bf16.msra.mxu0 %v3129
  %3741 = vmatprep.mubr.bf16.mxu0 %v2470
  %3742 = vmatmul.mubr.bf16.gmra.mrb[0].mxu0 %v2469
  %v3743 = vpop.f32.mrb[0].mxu0
  %v3744 = vadd.f32 %v2674, %v3743
  %v3745 = vpop.f32.mrb[0].mxu0
  %v3746 = vadd.f32 %v2678, %v3745
  %v3747 = vpop.f32.mrb[0].mxu0
  %v3748 = vadd.f32 %v2674, %v3747
  %v3749 = vpop.f32.mrb[0].mxu0
  %v3750 = vadd.f32 %v2678, %v3749
  %3751 = vmatprep.mubr.bf16.mxu0 %v2474
  %3752 = vmatmul.mubr.bf16.gmra.mrb[0].mxu0 %v2473
  %v3753 = vpop.f32.mrb[0].mxu0
  %v3754 = vadd.f32 %v2674, %v3753
  %v3755 = vpop.f32.mrb[0].mxu0
  %v3756 = vadd.f32 %v2678, %v3755
  %v3757 = vpop.f32.mrb[0].mxu0
  %v3758 = vadd.f32 %v2674, %v3757
  %v3759 = vpop.f32.mrb[0].mxu0
  %v3760 = vadd.f32 %v2678, %v3759
  %3761 = vmatprep.mubr.bf16.mxu0 %v2478
  %3762 = vmatmul.mubr.bf16.gmra.mrb[0].mxu0 %v2477
  %v3763 = vpop.f32.mrb[0].mxu0
  %v3764 = vadd.f32 %v2674, %v3763
  %v3765 = vpop.f32.mrb[0].mxu0
  %v3766 = vadd.f32 %v2678, %v3765
  %v3767 = vpop.f32.mrb[0].mxu0
  %v3768 = vadd.f32 %v2674, %v3767
  %v3769 = vpop.f32.mrb[0].mxu0
  %v3770 = vadd.f32 %v2678, %v3769
  %3771 = vmatprep.mubr.bf16.mxu0 %v2482
  %3772 = vmatmul.mubr.bf16.gmra.mrb[0].mxu0 %v2481
  %v3773 = vpop.f32.mrb[0].mxu0
  %v3774 = vadd.f32 %v2674, %v3773
  %v3775 = vpop.f32.mrb[0].mxu0
  %v3776 = vadd.f32 %v2678, %v3775
  %v3777 = vpop.f32.mrb[0].mxu0
  %v3778 = vadd.f32 %v2674, %v3777
  %v3779 = vpop.f32.mrb[0].mxu0
  %v3780 = vadd.f32 %v2678, %v3779
  %3781 = vmatprep.mubr.bf16.mxu0 %v2486
  %3782 = vmatmul.mubr.bf16.gmra.mrb[0].mxu0 %v2485
  %v3783 = vpop.f32.mrb[0].mxu0
  %v3784 = vadd.f32 %v2674, %v3783
  %v3785 = vpop.f32.mrb[0].mxu0
  %v3786 = vadd.f32 %v2678, %v3785
  %v3787 = vpop.f32.mrb[0].mxu0
  %v3788 = vadd.f32 %v2674, %v3787
  %v3789 = vpop.f32.mrb[0].mxu0
  %v3790 = vadd.f32 %v2678, %v3789
  %3791 = vmatprep.mubr.bf16.mxu0 %v2490
  %3792 = vmatmul.mubr.bf16.gmra.mrb[0].mxu0 %v2489
  %v3793 = vpop.f32.mrb[0].mxu0
  %v3794 = vadd.f32 %v2674, %v3793
  %v3795 = vpop.f32.mrb[0].mxu0
  %v3796 = vadd.f32 %v2678, %v3795
  %v3797 = vpop.f32.mrb[0].mxu0
  %v3798 = vadd.f32 %v2674, %v3797
  %v3799 = vpop.f32.mrb[0].mxu0
  %v3800 = vadd.f32 %v2678, %v3799
  %3801 = vmatprep.mubr.bf16.mxu0 %v2494
  %3802 = vmatmul.mubr.bf16.gmra.mrb[0].mxu0 %v2493
  %v3803 = vpop.f32.mrb[0].mxu0
  %v3804 = vadd.f32 %v2674, %v3803
  %v3805 = vpop.f32.mrb[0].mxu0
  %v3806 = vadd.f32 %v2678, %v3805
  %v3807 = vpop.f32.mrb[0].mxu0
  %v3808 = vadd.f32 %v2674, %v3807
  %v3809 = vpop.f32.mrb[0].mxu0
  %v3810 = vadd.f32 %v2678, %v3809
  %3811 = vmatprep.mubr.bf16.mxu0 %v2498
  %3812 = vmatmul.mubr.bf16.gmra.mrb[0].mxu0 %v2497
  %v3813 = vpop.f32.mrb[0].mxu0
  %v3814 = vadd.f32 %v2674, %v3813
  %v3815 = vpop.f32.mrb[0].mxu0
  %v3816 = vadd.f32 %v2678, %v3815
  %v3817 = vpop.f32.mrb[0].mxu0
  %v3818 = vadd.f32 %v2674, %v3817
  %v3819 = vpop.f32.mrb[0].mxu0
  %v3820 = vadd.f32 %v2678, %v3819
  %3821 = vmatprep.mubr.bf16.mxu0 %v2502
  %3822 = vmatmul.mubr.bf16.gmra.mrb[0].mxu0 %v2501
  %v3823 = vpop.f32.mrb[0].mxu0
  %v3824 = vadd.f32 %v2674, %v3823
  %v3825 = vpop.f32.mrb[0].mxu0
  %v3826 = vadd.f32 %v2678, %v3825
  %v3827 = vpop.f32.mrb[0].mxu0
  %v3828 = vadd.f32 %v2674, %v3827
  %v3829 = vpop.f32.mrb[0].mxu0
  %v3830 = vadd.f32 %v2678, %v3829
  %3831 = vmatprep.mubr.bf16.mxu0 %v2506
  %3832 = vmatmul.mubr.bf16.gmra.mrb[0].mxu0 %v2505
  %v3833 = vpop.f32.mrb[0].mxu0
  %v3834 = vadd.f32 %v2674, %v3833
  %v3835 = vpop.f32.mrb[0].mxu0
  %v3836 = vadd.f32 %v2678, %v3835
  %v3837 = vpop.f32.mrb[0].mxu0
  %v3838 = vadd.f32 %v2674, %v3837
  %v3839 = vpop.f32.mrb[0].mxu0
  %v3840 = vadd.f32 %v2678, %v3839
  %3841 = vmatprep.mubr.bf16.mxu0 %v2510
  %3842 = vmatmul.mubr.bf16.gmra.mrb[0].mxu0 %v2509
  %v3843 = vpop.f32.mrb[0].mxu0
  %v3844 = vadd.f32 %v2674, %v3843
  %v3845 = vpop.f32.mrb[0].mxu0
  %v3846 = vadd.f32 %v2678, %v3845
  %v3847 = vpop.f32.mrb[0].mxu0
  %v3848 = vadd.f32 %v2674, %v3847
  %v3849 = vpop.f32.mrb[0].mxu0
  %v3850 = vadd.f32 %v2678, %v3849
  %3851 = vmatprep.mubr.bf16.mxu0 %v2514
  %3852 = vmatmul.mubr.bf16.gmra.mrb[0].mxu0 %v2513
  %v3853 = vpop.f32.mrb[0].mxu0
  %v3854 = vadd.f32 %v2674, %v3853
  %v3855 = vpop.f32.mrb[0].mxu0
  %v3856 = vadd.f32 %v2678, %v3855
  %v3857 = vpop.f32.mrb[0].mxu0
  %v3858 = vadd.f32 %v2674, %v3857
  %v3859 = vpop.f32.mrb[0].mxu0
  %v3860 = vadd.f32 %v2678, %v3859
  %3861 = vmatprep.mubr.bf16.mxu0 %v2518
  %3862 = vmatmul.mubr.bf16.gmra.mrb[0].mxu0 %v2517
  %v3863 = vpop.f32.mrb[0].mxu0
  %v3864 = vadd.f32 %v2674, %v3863
  %v3865 = vpop.f32.mrb[0].mxu0
  %v3866 = vadd.f32 %v2678, %v3865
  %v3867 = vpop.f32.mrb[0].mxu0
  %v3868 = vadd.f32 %v2674, %v3867
  %v3869 = vpop.f32.mrb[0].mxu0
  %v3870 = vadd.f32 %v2678, %v3869
  %3871 = vmatprep.mubr.bf16.mxu0 %v2522
  %3872 = vmatmul.mubr.bf16.gmra.mrb[0].mxu0 %v2521
  %v3873 = vpop.f32.mrb[0].mxu0
  %v3874 = vadd.f32 %v2674, %v3873
  %v3875 = vpop.f32.mrb[0].mxu0
  %v3876 = vadd.f32 %v2678, %v3875
  %v3877 = vpop.f32.mrb[0].mxu0
  %v3878 = vadd.f32 %v2674, %v3877
  %v3879 = vpop.f32.mrb[0].mxu0
  %v3880 = vadd.f32 %v2678, %v3879
  %3881 = vmatprep.mubr.bf16.mxu0 %v2526
  %3882 = vmatmul.mubr.bf16.gmra.mrb[0].mxu0 %v2525
  %v3883 = vpop.f32.mrb[0].mxu0
  %v3884 = vadd.f32 %v2674, %v3883
  %v3885 = vpop.f32.mrb[0].mxu0
  %v3886 = vadd.f32 %v2678, %v3885
  %v3887 = vpop.f32.mrb[0].mxu0
  %v3888 = vadd.f32 %v2674, %v3887
  %v3889 = vpop.f32.mrb[0].mxu0
  %v3890 = vadd.f32 %v2678, %v3889
  %3891 = vmatprep.mubr.bf16.mxu0 %v2530
  %3892 = vmatmul.mubr.bf16.gmra.mrb[0].mxu0 %v2529
  %v3893 = vpop.f32.mrb[0].mxu0
  %v3894 = vadd.f32 %v2674, %v3893
  %v3895 = vpop.f32.mrb[0].mxu0
  %v3896 = vadd.f32 %v2678, %v3895
  %v3897 = vpop.f32.mrb[0].mxu0
  %v3898 = vadd.f32 %v2674, %v3897
  %v3899 = vpop.f32.mrb[0].mxu0
  %v3900 = vadd.f32 %v2678, %v3899
  %3901 = vdwg.mxu0
  %3902 = vmatprep.subr.bf16.mxu0 %v3134
  %3903 = vmatpush1.bf16.msra.mxu0 %v3133
  %3904 = vmatprep.subr.bf16.mxu0 %v3138
  %3905 = vmatpush1.bf16.msra.mxu0 %v3137
  %3906 = vmatprep.subr.bf16.mxu0 %v3142
  %3907 = vmatpush1.bf16.msra.mxu0 %v3141
  %3908 = vmatprep.subr.bf16.mxu0 %v3146
  %3909 = vmatpush1.bf16.msra.mxu0 %v3145
  %3910 = vmatprep.subr.bf16.mxu0 %v3150
  %3911 = vmatpush1.bf16.msra.mxu0 %v3149
  %3912 = vmatprep.subr.bf16.mxu0 %v3154
  %3913 = vmatpush1.bf16.msra.mxu0 %v3153
  %3914 = vmatprep.subr.bf16.mxu0 %v3158
  %3915 = vmatpush1.bf16.msra.mxu0 %v3157
  %3916 = vmatprep.subr.bf16.mxu0 %v3162
  %3917 = vmatpush1.bf16.msra.mxu0 %v3161
  %3918 = vmatprep.subr.bf16.mxu0 %v3166
  %3919 = vmatpush1.bf16.msra.mxu0 %v3165
  %3920 = vmatprep.subr.bf16.mxu0 %v3170
  %3921 = vmatpush1.bf16.msra.mxu0 %v3169
  %3922 = vmatprep.subr.bf16.mxu0 %v3174
  %3923 = vmatpush1.bf16.msra.mxu0 %v3173
  %3924 = vmatprep.subr.bf16.mxu0 %v3178
  %3925 = vmatpush1.bf16.msra.mxu0 %v3177
  %3926 = vmatprep.subr.bf16.mxu0 %v3182
  %3927 = vmatpush1.bf16.msra.mxu0 %v3181
  %3928 = vmatprep.subr.bf16.mxu0 %v3186
  %3929 = vmatpush1.bf16.msra.mxu0 %v3185
  %3930 = vmatprep.subr.bf16.mxu0 %v3190
  %3931 = vmatpush1.bf16.msra.mxu0 %v3189
  %3932 = vmatprep.subr.bf16.mxu0 %v3194
  %3933 = vmatpush1.bf16.msra.mxu0 %v3193
  %3934 = vmatprep.mubr.bf16.mxu0 %v2472
  %3935 = vmatmul.mubr.bf16.gmra.mrb[0].mxu0 %v2471
  %v3936 = vpop.f32.mrb[0].mxu0
  %v3937 = vadd.f32 %v3744, %v3936
  %v3938 = vpop.f32.mrb[0].mxu0
  %v3939 = vadd.f32 %v3746, %v3938
  %v3940 = vpop.f32.mrb[0].mxu0
  %v3941 = vadd.f32 %v3748, %v3940
  %v3942 = vpop.f32.mrb[0].mxu0
  %v3943 = vadd.f32 %v3750, %v3942
  %3944 = vmatprep.mubr.bf16.mxu0 %v2476
  %3945 = vmatmul.mubr.bf16.gmra.mrb[0].mxu0 %v2475
  %v3946 = vpop.f32.mrb[0].mxu0
  %v3947 = vadd.f32 %v3754, %v3946
  %v3948 = vpop.f32.mrb[0].mxu0
  %v3949 = vadd.f32 %v3756, %v3948
  %v3950 = vpop.f32.mrb[0].mxu0
  %v3951 = vadd.f32 %v3758, %v3950
  %v3952 = vpop.f32.mrb[0].mxu0
  %v3953 = vadd.f32 %v3760, %v3952
  %3954 = vmatprep.mubr.bf16.mxu0 %v2480
  %3955 = vmatmul.mubr.bf16.gmra.mrb[0].mxu0 %v2479
  %v3956 = vpop.f32.mrb[0].mxu0
  %v3957 = vadd.f32 %v3764, %v3956
  %v3958 = vpop.f32.mrb[0].mxu0
  %v3959 = vadd.f32 %v3766, %v3958
  %v3960 = vpop.f32.mrb[0].mxu0
  %v3961 = vadd.f32 %v3768, %v3960
  %v3962 = vpop.f32.mrb[0].mxu0
  %v3963 = vadd.f32 %v3770, %v3962
  %3964 = vmatprep.mubr.bf16.mxu0 %v2484
  %3965 = vmatmul.mubr.bf16.gmra.mrb[0].mxu0 %v2483
  %v3966 = vpop.f32.mrb[0].mxu0
  %v3967 = vadd.f32 %v3774, %v3966
  %v3968 = vpop.f32.mrb[0].mxu0
  %v3969 = vadd.f32 %v3776, %v3968
  %v3970 = vpop.f32.mrb[0].mxu0
  %v3971 = vadd.f32 %v3778, %v3970
  %v3972 = vpop.f32.mrb[0].mxu0
  %v3973 = vadd.f32 %v3780, %v3972
  %3974 = vmatprep.mubr.bf16.mxu0 %v2488
  %3975 = vmatmul.mubr.bf16.gmra.mrb[0].mxu0 %v2487
  %v3976 = vpop.f32.mrb[0].mxu0
  %v3977 = vadd.f32 %v3784, %v3976
  %v3978 = vpop.f32.mrb[0].mxu0
  %v3979 = vadd.f32 %v3786, %v3978
  %v3980 = vpop.f32.mrb[0].mxu0
  %v3981 = vadd.f32 %v3788, %v3980
  %v3982 = vpop.f32.mrb[0].mxu0
  %v3983 = vadd.f32 %v3790, %v3982
  %3984 = vmatprep.mubr.bf16.mxu0 %v2492
  %3985 = vmatmul.mubr.bf16.gmra.mrb[0].mxu0 %v2491
  %v3986 = vpop.f32.mrb[0].mxu0
  %v3987 = vadd.f32 %v3794, %v3986
  %v3988 = vpop.f32.mrb[0].mxu0
  %v3989 = vadd.f32 %v3796, %v3988
  %v3990 = vpop.f32.mrb[0].mxu0
  %v3991 = vadd.f32 %v3798, %v3990
  %v3992 = vpop.f32.mrb[0].mxu0
  %v3993 = vadd.f32 %v3800, %v3992
  %3994 = vmatprep.mubr.bf16.mxu0 %v2496
  %3995 = vmatmul.mubr.bf16.gmra.mrb[0].mxu0 %v2495
  %v3996 = vpop.f32.mrb[0].mxu0
  %v3997 = vadd.f32 %v3804, %v3996
  %v3998 = vpop.f32.mrb[0].mxu0
  %v3999 = vadd.f32 %v3806, %v3998
  %v4000 = vpop.f32.mrb[0].mxu0
  %v4001 = vadd.f32 %v3808, %v4000
  %v4002 = vpop.f32.mrb[0].mxu0
  %v4003 = vadd.f32 %v3810, %v4002
  %4004 = vmatprep.mubr.bf16.mxu0 %v2500
  %4005 = vmatmul.mubr.bf16.gmra.mrb[0].mxu0 %v2499
  %v4006 = vpop.f32.mrb[0].mxu0
  %v4007 = vadd.f32 %v3814, %v4006
  %v4008 = vpop.f32.mrb[0].mxu0
  %v4009 = vadd.f32 %v3816, %v4008
  %v4010 = vpop.f32.mrb[0].mxu0
  %v4011 = vadd.f32 %v3818, %v4010
  %v4012 = vpop.f32.mrb[0].mxu0
  %v4013 = vadd.f32 %v3820, %v4012
  %4014 = vmatprep.mubr.bf16.mxu0 %v2504
  %4015 = vmatmul.mubr.bf16.gmra.mrb[0].mxu0 %v2503
  %v4016 = vpop.f32.mrb[0].mxu0
  %v4017 = vadd.f32 %v3824, %v4016
  %v4018 = vpop.f32.mrb[0].mxu0
  %v4019 = vadd.f32 %v3826, %v4018
  %v4020 = vpop.f32.mrb[0].mxu0
  %v4021 = vadd.f32 %v3828, %v4020
  %v4022 = vpop.f32.mrb[0].mxu0
  %v4023 = vadd.f32 %v3830, %v4022
  %4024 = vmatprep.mubr.bf16.mxu0 %v2508
  %4025 = vmatmul.mubr.bf16.gmra.mrb[0].mxu0 %v2507
  %v4026 = vpop.f32.mrb[0].mxu0
  %v4027 = vadd.f32 %v3834, %v4026
  %v4028 = vpop.f32.mrb[0].mxu0
  %v4029 = vadd.f32 %v3836, %v4028
  %v4030 = vpop.f32.mrb[0].mxu0
  %v4031 = vadd.f32 %v3838, %v4030
  %v4032 = vpop.f32.mrb[0].mxu0
  %v4033 = vadd.f32 %v3840, %v4032
  %4034 = vmatprep.mubr.bf16.mxu0 %v2512
  %4035 = vmatmul.mubr.bf16.gmra.mrb[0].mxu0 %v2511
  %v4036 = vpop.f32.mrb[0].mxu0
  %v4037 = vadd.f32 %v3844, %v4036
  %v4038 = vpop.f32.mrb[0].mxu0
  %v4039 = vadd.f32 %v3846, %v4038
  %v4040 = vpop.f32.mrb[0].mxu0
  %v4041 = vadd.f32 %v3848, %v4040
  %v4042 = vpop.f32.mrb[0].mxu0
  %v4043 = vadd.f32 %v3850, %v4042
  %4044 = vmatprep.mubr.bf16.mxu0 %v2516
  %4045 = vmatmul.mubr.bf16.gmra.mrb[0].mxu0 %v2515
  %v4046 = vpop.f32.mrb[0].mxu0
  %v4047 = vadd.f32 %v3854, %v4046
  %v4048 = vpop.f32.mrb[0].mxu0
  %v4049 = vadd.f32 %v3856, %v4048
  %v4050 = vpop.f32.mrb[0].mxu0
  %v4051 = vadd.f32 %v3858, %v4050
  %v4052 = vpop.f32.mrb[0].mxu0
  %v4053 = vadd.f32 %v3860, %v4052
  %4054 = vmatprep.mubr.bf16.mxu0 %v2520
  %4055 = vmatmul.mubr.bf16.gmra.mrb[0].mxu0 %v2519
  %v4056 = vpop.f32.mrb[0].mxu0
  %v4057 = vadd.f32 %v3864, %v4056
  %v4058 = vpop.f32.mrb[0].mxu0
  %v4059 = vadd.f32 %v3866, %v4058
  %v4060 = vpop.f32.mrb[0].mxu0
  %v4061 = vadd.f32 %v3868, %v4060
  %v4062 = vpop.f32.mrb[0].mxu0
  %v4063 = vadd.f32 %v3870, %v4062
  %4064 = vmatprep.mubr.bf16.mxu0 %v2524
  %4065 = vmatmul.mubr.bf16.gmra.mrb[0].mxu0 %v2523
  %v4066 = vpop.f32.mrb[0].mxu0
  %v4067 = vadd.f32 %v3874, %v4066
  %v4068 = vpop.f32.mrb[0].mxu0
  %v4069 = vadd.f32 %v3876, %v4068
  %v4070 = vpop.f32.mrb[0].mxu0
  %v4071 = vadd.f32 %v3878, %v4070
  %v4072 = vpop.f32.mrb[0].mxu0
  %v4073 = vadd.f32 %v3880, %v4072
  %4074 = vmatprep.mubr.bf16.mxu0 %v2528
  %4075 = vmatmul.mubr.bf16.gmra.mrb[0].mxu0 %v2527
  %v4076 = vpop.f32.mrb[0].mxu0
  %v4077 = vadd.f32 %v3884, %v4076
  %v4078 = vpop.f32.mrb[0].mxu0
  %v4079 = vadd.f32 %v3886, %v4078
  %v4080 = vpop.f32.mrb[0].mxu0
  %v4081 = vadd.f32 %v3888, %v4080
  %v4082 = vpop.f32.mrb[0].mxu0
  %v4083 = vadd.f32 %v3890, %v4082
  %4084 = vmatprep.mubr.bf16.mxu0 %v2532
  %4085 = vmatmul.mubr.bf16.gmra.mrb[0].mxu0 %v2531
  %v4086 = vpop.f32.mrb[0].mxu0
  %v4087 = vadd.f32 %v3894, %v4086
  %v4088 = vpop.f32.mrb[0].mxu0
  %v4089 = vadd.f32 %v3896, %v4088
  %v4090 = vpop.f32.mrb[0].mxu0
  %v4091 = vadd.f32 %v3898, %v4090
  %v4092 = vpop.f32.mrb[0].mxu0
  %v4093 = vadd.f32 %v3900, %v4092
  %4094 = vdwg.mxu0
  %v4095 = vmax.f32 %v3551, 0.0
  %v4096 = vmax.f32 %v3553, 0.0
  %v4097 = vmax.f32 %v3937, 0.0
  %v4098 = vmax.f32 %v3939, 0.0
  %v4099 = vmax.f32 %v3555, 0.0
  %v4100 = vmax.f32 %v3557, 0.0
  %v4101 = vmax.f32 %v3941, 0.0
  %v4102 = vmax.f32 %v3943, 0.0
  %v4103 = vmax.f32 %v3561, 0.0
  %v4104 = vmax.f32 %v3563, 0.0
  %v4105 = vmax.f32 %v3947, 0.0
  %v4106 = vmax.f32 %v3949, 0.0
  %v4107 = vmax.f32 %v3565, 0.0
  %v4108 = vmax.f32 %v3567, 0.0
  %v4109 = vmax.f32 %v3951, 0.0
  %v4110 = vmax.f32 %v3953, 0.0
  %v4111 = vmax.f32 %v3571, 0.0
  %v4112 = vmax.f32 %v3573, 0.0
  %v4113 = vmax.f32 %v3957, 0.0
  %v4114 = vmax.f32 %v3959, 0.0
  %v4115 = vmax.f32 %v3575, 0.0
  %v4116 = vmax.f32 %v3577, 0.0
  %v4117 = vmax.f32 %v3961, 0.0
  %v4118 = vmax.f32 %v3963, 0.0
  %v4119 = vmax.f32 %v3581, 0.0
  %v4120 = vmax.f32 %v3583, 0.0
  %v4121 = vmax.f32 %v3967, 0.0
  %v4122 = vmax.f32 %v3969, 0.0
  %v4123 = vmax.f32 %v3585, 0.0
  %v4124 = vmax.f32 %v3587, 0.0
  %v4125 = vmax.f32 %v3971, 0.0
  %v4126 = vmax.f32 %v3973, 0.0
  %v4127 = vmax.f32 %v3591, 0.0
  %v4128 = vmax.f32 %v3593, 0.0
  %v4129 = vmax.f32 %v3977, 0.0
  %v4130 = vmax.f32 %v3979, 0.0
  %v4131 = vmax.f32 %v3595, 0.0
  %v4132 = vmax.f32 %v3597, 0.0
  %v4133 = vmax.f32 %v3981, 0.0
  %v4134 = vmax.f32 %v3983, 0.0
  %v4135 = vmax.f32 %v3601, 0.0
  %v4136 = vmax.f32 %v3603, 0.0
  %v4137 = vmax.f32 %v3987, 0.0
  %v4138 = vmax.f32 %v3989, 0.0
  %v4139 = vmax.f32 %v3605, 0.0
  %v4140 = vmax.f32 %v3607, 0.0
  %v4141 = vmax.f32 %v3991, 0.0
  %v4142 = vmax.f32 %v3993, 0.0
  %v4143 = vmax.f32 %v3611, 0.0
  %v4144 = vmax.f32 %v3613, 0.0
  %v4145 = vmax.f32 %v3997, 0.0
  %v4146 = vmax.f32 %v3999, 0.0
  %v4147 = vmax.f32 %v3615, 0.0
  %v4148 = vmax.f32 %v3617, 0.0
  %v4149 = vmax.f32 %v4001, 0.0
  %v4150 = vmax.f32 %v4003, 0.0
  %v4151 = vmax.f32 %v3621, 0.0
  %v4152 = vmax.f32 %v3623, 0.0
  %v4153 = vmax.f32 %v4007, 0.0
  %v4154 = vmax.f32 %v4009, 0.0
  %v4155 = vmax.f32 %v3625, 0.0
  %v4156 = vmax.f32 %v3627, 0.0
  %v4157 = vmax.f32 %v4011, 0.0
  %v4158 = vmax.f32 %v4013, 0.0
  %v4159 = vmax.f32 %v3631, 0.0
  %v4160 = vmax.f32 %v3633, 0.0
  %v4161 = vmax.f32 %v4017, 0.0
  %v4162 = vmax.f32 %v4019, 0.0
  %v4163 = vmax.f32 %v3635, 0.0
  %v4164 = vmax.f32 %v3637, 0.0
  %v4165 = vmax.f32 %v4021, 0.0
  %v4166 = vmax.f32 %v4023, 0.0
  %v4167 = vmax.f32 %v3641, 0.0
  %v4168 = vmax.f32 %v3643, 0.0
  %v4169 = vmax.f32 %v4027, 0.0
  %v4170 = vmax.f32 %v4029, 0.0
  %v4171 = vmax.f32 %v3645, 0.0
  %v4172 = vmax.f32 %v3647, 0.0
  %v4173 = vmax.f32 %v4031, 0.0
  %v4174 = vmax.f32 %v4033, 0.0
  %v4175 = vmax.f32 %v3651, 0.0
  %v4176 = vmax.f32 %v3653, 0.0
  %v4177 = vmax.f32 %v4037, 0.0
  %v4178 = vmax.f32 %v4039, 0.0
  %v4179 = vmax.f32 %v3655, 0.0
  %v4180 = vmax.f32 %v3657, 0.0
  %v4181 = vmax.f32 %v4041, 0.0
  %v4182 = vmax.f32 %v4043, 0.0
  %v4183 = vmax.f32 %v3661, 0.0
  %v4184 = vmax.f32 %v3663, 0.0
  %v4185 = vmax.f32 %v4047, 0.0
  %v4186 = vmax.f32 %v4049, 0.0
  %v4187 = vmax.f32 %v3665, 0.0
  %v4188 = vmax.f32 %v3667, 0.0
  %v4189 = vmax.f32 %v4051, 0.0
  %v4190 = vmax.f32 %v4053, 0.0
  %v4191 = vmax.f32 %v3671, 0.0
  %v4192 = vmax.f32 %v3673, 0.0
  %v4193 = vmax.f32 %v4057, 0.0
  %v4194 = vmax.f32 %v4059, 0.0
  %v4195 = vmax.f32 %v3675, 0.0
  %v4196 = vmax.f32 %v3677, 0.0
  %v4197 = vmax.f32 %v4061, 0.0
  %v4198 = vmax.f32 %v4063, 0.0
  %v4199 = vmax.f32 %v3681, 0.0
  %v4200 = vmax.f32 %v3683, 0.0
  %v4201 = vmax.f32 %v4067, 0.0
  %v4202 = vmax.f32 %v4069, 0.0
  %v4203 = vmax.f32 %v3685, 0.0
  %v4204 = vmax.f32 %v3687, 0.0
  %v4205 = vmax.f32 %v4071, 0.0
  %v4206 = vmax.f32 %v4073, 0.0
  %v4207 = vmax.f32 %v3691, 0.0
  %v4208 = vmax.f32 %v3693, 0.0
  %v4209 = vmax.f32 %v4077, 0.0
  %v4210 = vmax.f32 %v4079, 0.0
  %v4211 = vmax.f32 %v3695, 0.0
  %v4212 = vmax.f32 %v3697, 0.0
  %v4213 = vmax.f32 %v4081, 0.0
  %v4214 = vmax.f32 %v4083, 0.0
  %v4215 = vmax.f32 %v3701, 0.0
  %v4216 = vmax.f32 %v3703, 0.0
  %v4217 = vmax.f32 %v4087, 0.0
  %v4218 = vmax.f32 %v4089, 0.0
  %v4219 = vmax.f32 %v3705, 0.0
  %v4220 = vmax.f32 %v3707, 0.0
  %v4221 = vmax.f32 %v4091, 0.0
  %v4222 = vmax.f32 %v4093, 0.0
  %v4223 = vpack.c.bf16 %v4099, %v4095
  %v4224 = vpack.c.bf16 %v4100, %v4096
  %v4225 = vpack.c.bf16 %v4101, %v4097
  %v4226 = vpack.c.bf16 %v4102, %v4098
  %v4227 = vpack.c.bf16 %v4107, %v4103
  %v4228 = vpack.c.bf16 %v4108, %v4104
  %v4229 = vpack.c.bf16 %v4109, %v4105
  %v4230 = vpack.c.bf16 %v4110, %v4106
  %v4231 = vpack.c.bf16 %v4115, %v4111
  %v4232 = vpack.c.bf16 %v4116, %v4112
  %v4233 = vpack.c.bf16 %v4117, %v4113
  %v4234 = vpack.c.bf16 %v4118, %v4114
  %v4235 = vpack.c.bf16 %v4123, %v4119
  %v4236 = vpack.c.bf16 %v4124, %v4120
  %v4237 = vpack.c.bf16 %v4125, %v4121
  %v4238 = vpack.c.bf16 %v4126, %v4122
  %v4239 = vpack.c.bf16 %v4131, %v4127
  %v4240 = vpack.c.bf16 %v4132, %v4128
  %v4241 = vpack.c.bf16 %v4133, %v4129
  %v4242 = vpack.c.bf16 %v4134, %v4130
  %v4243 = vpack.c.bf16 %v4139, %v4135
  %v4244 = vpack.c.bf16 %v4140, %v4136
  %v4245 = vpack.c.bf16 %v4141, %v4137
  %v4246 = vpack.c.bf16 %v4142, %v4138
  %v4247 = vpack.c.bf16 %v4147, %v4143
  %v4248 = vpack.c.bf16 %v4148, %v4144
  %v4249 = vpack.c.bf16 %v4149, %v4145
  %v4250 = vpack.c.bf16 %v4150, %v4146
  %v4251 = vpack.c.bf16 %v4155, %v4151
  %v4252 = vpack.c.bf16 %v4156, %v4152
  %v4253 = vpack.c.bf16 %v4157, %v4153
  %v4254 = vpack.c.bf16 %v4158, %v4154
  %v4255 = vpack.c.bf16 %v4163, %v4159
  %v4256 = vpack.c.bf16 %v4164, %v4160
  %v4257 = vpack.c.bf16 %v4165, %v4161
  %v4258 = vpack.c.bf16 %v4166, %v4162
  %v4259 = vpack.c.bf16 %v4171, %v4167
  %v4260 = vpack.c.bf16 %v4172, %v4168
  %v4261 = vpack.c.bf16 %v4173, %v4169
  %v4262 = vpack.c.bf16 %v4174, %v4170
  %v4263 = vpack.c.bf16 %v4179, %v4175
  %v4264 = vpack.c.bf16 %v4180, %v4176
  %v4265 = vpack.c.bf16 %v4181, %v4177
  %v4266 = vpack.c.bf16 %v4182, %v4178
  %v4267 = vpack.c.bf16 %v4187, %v4183
  %v4268 = vpack.c.bf16 %v4188, %v4184
  %v4269 = vpack.c.bf16 %v4189, %v4185
  %v4270 = vpack.c.bf16 %v4190, %v4186
  %v4271 = vpack.c.bf16 %v4195, %v4191
  %v4272 = vpack.c.bf16 %v4196, %v4192
  %v4273 = vpack.c.bf16 %v4197, %v4193
  %v4274 = vpack.c.bf16 %v4198, %v4194
  %v4275 = vpack.c.bf16 %v4203, %v4199
  %v4276 = vpack.c.bf16 %v4204, %v4200
  %v4277 = vpack.c.bf16 %v4205, %v4201
  %v4278 = vpack.c.bf16 %v4206, %v4202
  %v4279 = vpack.c.bf16 %v4211, %v4207
  %v4280 = vpack.c.bf16 %v4212, %v4208
  %v4281 = vpack.c.bf16 %v4213, %v4209
  %v4282 = vpack.c.bf16 %v4214, %v4210
  %v4283 = vpack.c.bf16 %v4219, %v4215
  %v4284 = vpack.c.bf16 %v4220, %v4216
  %v4285 = vpack.c.bf16 %v4221, %v4217
  %v4286 = vpack.c.bf16 %v4222, %v4218
  %v4287 = vld [vmem:[%s7] sm:$0xf]
  %v4288 = vld [vmem:[%s7 + $0x4] sm:$0xf]
  %v4289 = vld [vmem:[%s7 + $0x8] sm:$0xf]
  %v4290 = vld [vmem:[%s7 + $0xc] sm:$0xf]
  %v4291 = vld [vmem:[%s7 + $0x10] sm:$0xf]
  %v4292 = vld [vmem:[%s7 + $0x14] sm:$0xf]
  %v4293 = vld [vmem:[%s7 + $0x18] sm:$0xf]
  %v4294 = vld [vmem:[%s7 + $0x1c] sm:$0xf]
  %v4295 = vld [vmem:[%s7 + $0x20] sm:$0xf]
  %v4296 = vld [vmem:[%s7 + $0x24] sm:$0xf]
  %v4297 = vld [vmem:[%s7 + $0x28] sm:$0xf]
  %v4298 = vld [vmem:[%s7 + $0x2c] sm:$0xf]
  %v4299 = vld [vmem:[%s7 + $0x30] sm:$0xf]
  %v4300 = vld [vmem:[%s7 + $0x34] sm:$0xf]
  %v4301 = vld [vmem:[%s7 + $0x38] sm:$0xf]
  %v4302 = vld [vmem:[%s7 + $0x3c] sm:$0xf]
  %v4303 = vld [vmem:[%s7 + $0x40] sm:$0xf]
  %v4304 = vld [vmem:[%s7 + $0x44] sm:$0xf]
  %v4305 = vld [vmem:[%s7 + $0x48] sm:$0xf]
  %v4306 = vld [vmem:[%s7 + $0x4c] sm:$0xf]
  %v4307 = vld [vmem:[%s7 + $0x50] sm:$0xf]
  %v4308 = vld [vmem:[%s7 + $0x54] sm:$0xf]
  %v4309 = vld [vmem:[%s7 + $0x58] sm:$0xf]
  %v4310 = vld [vmem:[%s7 + $0x5c] sm:$0xf]
  %v4311 = vld [vmem:[%s7 + $0x60] sm:$0xf]
  %v4312 = vld [vmem:[%s7 + $0x64] sm:$0xf]
  %v4313 = vld [vmem:[%s7 + $0x68] sm:$0xf]
  %v4314 = vld [vmem:[%s7 + $0x6c] sm:$0xf]
  %v4315 = vld [vmem:[%s7 + $0x70] sm:$0xf]
  %v4316 = vld [vmem:[%s7 + $0x74] sm:$0xf]
  %v4317 = vld [vmem:[%s7 + $0x78] sm:$0xf]
  %v4318 = vld [vmem:[%s7 + $0x7c] sm:$0xf]
  %v4319 = vld [vmem:[%s7 + $0x80] sm:$0xf]
  %v4320 = vld [vmem:[%s7 + $0x84] sm:$0xf]
  %v4321 = vld [vmem:[%s7 + $0x88] sm:$0xf]
  %v4322 = vld [vmem:[%s7 + $0x8c] sm:$0xf]
  %v4323 = vld [vmem:[%s7 + $0x90] sm:$0xf]
  %v4324 = vld [vmem:[%s7 + $0x94] sm:$0xf]
  %v4325 = vld [vmem:[%s7 + $0x98] sm:$0xf]
  %v4326 = vld [vmem:[%s7 + $0x9c] sm:$0xf]
  %v4327 = vld [vmem:[%s7 + $0xa0] sm:$0xf]
  %v4328 = vld [vmem:[%s7 + $0xa4] sm:$0xf]
  %v4329 = vld [vmem:[%s7 + $0xa8] sm:$0xf]
  %v4330 = vld [vmem:[%s7 + $0xac] sm:$0xf]
  %v4331 = vld [vmem:[%s7 + $0xb0] sm:$0xf]
  %v4332 = vld [vmem:[%s7 + $0xb4] sm:$0xf]
  %v4333 = vld [vmem:[%s7 + $0xb8] sm:$0xf]
  %v4334 = vld [vmem:[%s7 + $0xbc] sm:$0xf]
  %v4335 = vld [vmem:[%s7 + $0xc0] sm:$0xf]
  %v4336 = vld [vmem:[%s7 + $0xc4] sm:$0xf]
  %v4337 = vld [vmem:[%s7 + $0xc8] sm:$0xf]
  %v4338 = vld [vmem:[%s7 + $0xcc] sm:$0xf]
  %v4339 = vld [vmem:[%s7 + $0xd0] sm:$0xf]
  %v4340 = vld [vmem:[%s7 + $0xd4] sm:$0xf]
  %v4341 = vld [vmem:[%s7 + $0xd8] sm:$0xf]
  %v4342 = vld [vmem:[%s7 + $0xdc] sm:$0xf]
  %v4343 = vld [vmem:[%s7 + $0xe0] sm:$0xf]
  %v4344 = vld [vmem:[%s7 + $0xe4] sm:$0xf]
  %v4345 = vld [vmem:[%s7 + $0xe8] sm:$0xf]
  %v4346 = vld [vmem:[%s7 + $0xec] sm:$0xf]
  %v4347 = vld [vmem:[%s7 + $0xf0] sm:$0xf]
  %v4348 = vld [vmem:[%s7 + $0xf4] sm:$0xf]
  %v4349 = vld [vmem:[%s7 + $0xf8] sm:$0xf]
  %v4350 = vld [vmem:[%s7 + $0xfc] sm:$0xf]
  %v4351 = vld [vmem:[%s8] sm:$0x1]
  %v4353 = vlaneseq
  %v4354 = vshrl.u32 %v4353, 7
  %v4355 = vsub.s32 0, %v4354
  %v4356 = vrot.slane %v4351, %v4355
  %v4422 = vunpack.c.l.b16 %v4287
  %v4423 = vunpack.c.l.b16 %v4288
  %v4424 = vunpack.c.l.b16 %v4289
  %v4425 = vunpack.c.l.b16 %v4290
  %v4426 = vunpack.c.l.b16 %v4291
  %v4427 = vunpack.c.l.b16 %v4292
  %v4428 = vunpack.c.l.b16 %v4293
  %v4429 = vunpack.c.l.b16 %v4294
  %v4430 = vunpack.c.l.b16 %v4295
  %v4431 = vunpack.c.l.b16 %v4296
  %v4432 = vunpack.c.l.b16 %v4297
  %v4433 = vunpack.c.l.b16 %v4298
  %v4434 = vunpack.c.l.b16 %v4299
  %v4435 = vunpack.c.l.b16 %v4300
  %v4436 = vunpack.c.l.b16 %v4301
  %v4437 = vunpack.c.l.b16 %v4302
  %v4438 = vunpack.c.l.b16 %v4303
  %v4439 = vunpack.c.l.b16 %v4304
  %v4440 = vunpack.c.l.b16 %v4305
  %v4441 = vunpack.c.l.b16 %v4306
  %v4442 = vunpack.c.l.b16 %v4307
  %v4443 = vunpack.c.l.b16 %v4308
  %v4444 = vunpack.c.l.b16 %v4309
  %v4445 = vunpack.c.l.b16 %v4310
  %v4446 = vunpack.c.l.b16 %v4311
  %v4447 = vunpack.c.l.b16 %v4312
  %v4448 = vunpack.c.l.b16 %v4313
  %v4449 = vunpack.c.l.b16 %v4314
  %v4450 = vunpack.c.l.b16 %v4315
  %v4451 = vunpack.c.l.b16 %v4316
  %v4452 = vunpack.c.l.b16 %v4317
  %v4453 = vunpack.c.l.b16 %v4318
  %v4454 = vunpack.c.l.b16 %v4319
  %v4455 = vunpack.c.l.b16 %v4320
  %v4456 = vunpack.c.l.b16 %v4321
  %v4457 = vunpack.c.l.b16 %v4322
  %v4458 = vunpack.c.l.b16 %v4323
  %v4459 = vunpack.c.l.b16 %v4324
  %v4460 = vunpack.c.l.b16 %v4325
  %v4461 = vunpack.c.l.b16 %v4326
  %v4462 = vunpack.c.l.b16 %v4327
  %v4463 = vunpack.c.l.b16 %v4328
  %v4464 = vunpack.c.l.b16 %v4329
  %v4465 = vunpack.c.l.b16 %v4330
  %v4466 = vunpack.c.l.b16 %v4331
  %v4467 = vunpack.c.l.b16 %v4332
  %v4468 = vunpack.c.l.b16 %v4333
  %v4469 = vunpack.c.l.b16 %v4334
  %v4470 = vunpack.c.l.b16 %v4335
  %v4471 = vunpack.c.l.b16 %v4336
  %v4472 = vunpack.c.l.b16 %v4337
  %v4473 = vunpack.c.l.b16 %v4338
  %v4474 = vunpack.c.l.b16 %v4339
  %v4475 = vunpack.c.l.b16 %v4340
  %v4476 = vunpack.c.l.b16 %v4341
  %v4477 = vunpack.c.l.b16 %v4342
  %v4478 = vunpack.c.l.b16 %v4343
  %v4479 = vunpack.c.l.b16 %v4344
  %v4480 = vunpack.c.l.b16 %v4345
  %v4481 = vunpack.c.l.b16 %v4346
  %v4482 = vunpack.c.l.b16 %v4347
  %v4483 = vunpack.c.l.b16 %v4348
  %v4484 = vunpack.c.l.b16 %v4349
  %v4485 = vunpack.c.l.b16 %v4350
  %v4486 = vpack.c.b16 %v4423, %v4422
  %v4487 = vpack.c.b16 %v4425, %v4424
  %v4488 = vpack.c.b16 %v4427, %v4426
  %v4489 = vpack.c.b16 %v4429, %v4428
  %v4490 = vpack.c.b16 %v4431, %v4430
  %v4491 = vpack.c.b16 %v4433, %v4432
  %v4492 = vpack.c.b16 %v4435, %v4434
  %v4493 = vpack.c.b16 %v4437, %v4436
  %v4494 = vpack.c.b16 %v4439, %v4438
  %v4495 = vpack.c.b16 %v4441, %v4440
  %v4496 = vpack.c.b16 %v4443, %v4442
  %v4497 = vpack.c.b16 %v4445, %v4444
  %v4498 = vpack.c.b16 %v4447, %v4446
  %v4499 = vpack.c.b16 %v4449, %v4448
  %v4500 = vpack.c.b16 %v4451, %v4450
  %v4501 = vpack.c.b16 %v4453, %v4452
  %v4502 = vpack.c.b16 %v4455, %v4454
  %v4503 = vpack.c.b16 %v4457, %v4456
  %v4504 = vpack.c.b16 %v4459, %v4458
  %v4505 = vpack.c.b16 %v4461, %v4460
  %v4506 = vpack.c.b16 %v4463, %v4462
  %v4507 = vpack.c.b16 %v4465, %v4464
  %v4508 = vpack.c.b16 %v4467, %v4466
  %v4509 = vpack.c.b16 %v4469, %v4468
  %v4510 = vpack.c.b16 %v4471, %v4470
  %v4511 = vpack.c.b16 %v4473, %v4472
  %v4512 = vpack.c.b16 %v4475, %v4474
  %v4513 = vpack.c.b16 %v4477, %v4476
  %v4514 = vpack.c.b16 %v4479, %v4478
  %v4515 = vpack.c.b16 %v4481, %v4480
  %v4516 = vpack.c.b16 %v4483, %v4482
  %v4517 = vpack.c.b16 %v4485, %v4484
  %4550 = vmatprep.subr.bf16.mxu0 0
  %4551 = vmatpush1.bf16.msra.mxu0 %v4486
  %4552 = vmatprep.subr.bf16.mxu0 0
  %4553 = vmatpush1.bf16.msra.mxu0 %v4487
  %4554 = vmatprep.subr.bf16.mxu0 0
  %4555 = vmatpush1.bf16.msra.mxu0 %v4488
  %4556 = vmatprep.subr.bf16.mxu0 0
  %4557 = vmatpush1.bf16.msra.mxu0 %v4489
  %4558 = vmatprep.subr.bf16.mxu0 0
  %4559 = vmatpush1.bf16.msra.mxu0 %v4490
  %4560 = vmatprep.subr.bf16.mxu0 0
  %4561 = vmatpush1.bf16.msra.mxu0 %v4491
  %4562 = vmatprep.subr.bf16.mxu0 0
  %4563 = vmatpush1.bf16.msra.mxu0 %v4492
  %4564 = vmatprep.subr.bf16.mxu0 0
  %4565 = vmatpush1.bf16.msra.mxu0 %v4493
  %4566 = vmatprep.subr.bf16.mxu0 0
  %4567 = vmatpush1.bf16.msra.mxu0 %v4494
  %4568 = vmatprep.subr.bf16.mxu0 0
  %4569 = vmatpush1.bf16.msra.mxu0 %v4495
  %4570 = vmatprep.subr.bf16.mxu0 0
  %4571 = vmatpush1.bf16.msra.mxu0 %v4496
  %4572 = vmatprep.subr.bf16.mxu0 0
  %4573 = vmatpush1.bf16.msra.mxu0 %v4497
  %4574 = vmatprep.subr.bf16.mxu0 0
  %4575 = vmatpush1.bf16.msra.mxu0 %v4498
  %4576 = vmatprep.subr.bf16.mxu0 0
  %4577 = vmatpush1.bf16.msra.mxu0 %v4499
  %4578 = vmatprep.subr.bf16.mxu0 0
  %4579 = vmatpush1.bf16.msra.mxu0 %v4500
  %4580 = vmatprep.subr.bf16.mxu0 0
  %4581 = vmatpush1.bf16.msra.mxu0 %v4501
  %4582 = vmatprep.mubr.bf16.mxu0 %v4224
  %4583 = vmatmul.mubr.bf16.gmra.mrb[0].mxu0 %v4223
  %v4584 = vpop.f32.mrb[0].mxu0
  %v4585 = vadd.f32 %v4356, %v4584
  %v4586 = vpop.f32.mrb[0].mxu0
  %v4587 = vpop.f32.mrb[0].mxu0
  %v4588 = vadd.f32 %v4356, %v4587
  %v4589 = vpop.f32.mrb[0].mxu0
  %4590 = vmatprep.mubr.bf16.mxu0 %v4228
  %4591 = vmatmul.mubr.bf16.gmra.mrb[0].mxu0 %v4227
  %v4592 = vpop.f32.mrb[0].mxu0
  %v4593 = vadd.f32 %v4356, %v4592
  %v4594 = vpop.f32.mrb[0].mxu0
  %v4595 = vpop.f32.mrb[0].mxu0
  %v4596 = vadd.f32 %v4356, %v4595
  %v4597 = vpop.f32.mrb[0].mxu0
  %4598 = vmatprep.mubr.bf16.mxu0 %v4232
  %4599 = vmatmul.mubr.bf16.gmra.mrb[0].mxu0 %v4231
  %v4600 = vpop.f32.mrb[0].mxu0
  %v4601 = vadd.f32 %v4356, %v4600
  %v4602 = vpop.f32.mrb[0].mxu0
  %v4603 = vpop.f32.mrb[0].mxu0
  %v4604 = vadd.f32 %v4356, %v4603
  %v4605 = vpop.f32.mrb[0].mxu0
  %4606 = vmatprep.mubr.bf16.mxu0 %v4236
  %4607 = vmatmul.mubr.bf16.gmra.mrb[0].mxu0 %v4235
  %v4608 = vpop.f32.mrb[0].mxu0
  %v4609 = vadd.f32 %v4356, %v4608
  %v4610 = vpop.f32.mrb[0].mxu0
  %v4611 = vpop.f32.mrb[0].mxu0
  %v4612 = vadd.f32 %v4356, %v4611
  %v4613 = vpop.f32.mrb[0].mxu0
  %4614 = vmatprep.mubr.bf16.mxu0 %v4240
  %4615 = vmatmul.mubr.bf16.gmra.mrb[0].mxu0 %v4239
  %v4616 = vpop.f32.mrb[0].mxu0
  %v4617 = vadd.f32 %v4356, %v4616
  %v4618 = vpop.f32.mrb[0].mxu0
  %v4619 = vpop.f32.mrb[0].mxu0
  %v4620 = vadd.f32 %v4356, %v4619
  %v4621 = vpop.f32.mrb[0].mxu0
  %4622 = vmatprep.mubr.bf16.mxu0 %v4244
  %4623 = vmatmul.mubr.bf16.gmra.mrb[0].mxu0 %v4243
  %v4624 = vpop.f32.mrb[0].mxu0
  %v4625 = vadd.f32 %v4356, %v4624
  %v4626 = vpop.f32.mrb[0].mxu0
  %v4627 = vpop.f32.mrb[0].mxu0
  %v4628 = vadd.f32 %v4356, %v4627
  %v4629 = vpop.f32.mrb[0].mxu0
  %4630 = vmatprep.mubr.bf16.mxu0 %v4248
  %4631 = vmatmul.mubr.bf16.gmra.mrb[0].mxu0 %v4247
  %v4632 = vpop.f32.mrb[0].mxu0
  %v4633 = vadd.f32 %v4356, %v4632
  %v4634 = vpop.f32.mrb[0].mxu0
  %v4635 = vpop.f32.mrb[0].mxu0
  %v4636 = vadd.f32 %v4356, %v4635
  %v4637 = vpop.f32.mrb[0].mxu0
  %4638 = vmatprep.mubr.bf16.mxu0 %v4252
  %4639 = vmatmul.mubr.bf16.gmra.mrb[0].mxu0 %v4251
  %v4640 = vpop.f32.mrb[0].mxu0
  %v4641 = vadd.f32 %v4356, %v4640
  %v4642 = vpop.f32.mrb[0].mxu0
  %v4643 = vpop.f32.mrb[0].mxu0
  %v4644 = vadd.f32 %v4356, %v4643
  %v4645 = vpop.f32.mrb[0].mxu0
  %4646 = vmatprep.mubr.bf16.mxu0 %v4256
  %4647 = vmatmul.mubr.bf16.gmra.mrb[0].mxu0 %v4255
  %v4648 = vpop.f32.mrb[0].mxu0
  %v4649 = vadd.f32 %v4356, %v4648
  %v4650 = vpop.f32.mrb[0].mxu0
  %v4651 = vpop.f32.mrb[0].mxu0
  %v4652 = vadd.f32 %v4356, %v4651
  %v4653 = vpop.f32.mrb[0].mxu0
  %4654 = vmatprep.mubr.bf16.mxu0 %v4260
  %4655 = vmatmul.mubr.bf16.gmra.mrb[0].mxu0 %v4259
  %v4656 = vpop.f32.mrb[0].mxu0
  %v4657 = vadd.f32 %v4356, %v4656
  %v4658 = vpop.f32.mrb[0].mxu0
  %v4659 = vpop.f32.mrb[0].mxu0
  %v4660 = vadd.f32 %v4356, %v4659
  %v4661 = vpop.f32.mrb[0].mxu0
  %4662 = vmatprep.mubr.bf16.mxu0 %v4264
  %4663 = vmatmul.mubr.bf16.gmra.mrb[0].mxu0 %v4263
  %v4664 = vpop.f32.mrb[0].mxu0
  %v4665 = vadd.f32 %v4356, %v4664
  %v4666 = vpop.f32.mrb[0].mxu0
  %v4667 = vpop.f32.mrb[0].mxu0
  %v4668 = vadd.f32 %v4356, %v4667
  %v4669 = vpop.f32.mrb[0].mxu0
  %4670 = vmatprep.mubr.bf16.mxu0 %v4268
  %4671 = vmatmul.mubr.bf16.gmra.mrb[0].mxu0 %v4267
  %v4672 = vpop.f32.mrb[0].mxu0
  %v4673 = vadd.f32 %v4356, %v4672
  %v4674 = vpop.f32.mrb[0].mxu0
  %v4675 = vpop.f32.mrb[0].mxu0
  %v4676 = vadd.f32 %v4356, %v4675
  %v4677 = vpop.f32.mrb[0].mxu0
  %4678 = vmatprep.mubr.bf16.mxu0 %v4272
  %4679 = vmatmul.mubr.bf16.gmra.mrb[0].mxu0 %v4271
  %v4680 = vpop.f32.mrb[0].mxu0
  %v4681 = vadd.f32 %v4356, %v4680
  %v4682 = vpop.f32.mrb[0].mxu0
  %v4683 = vpop.f32.mrb[0].mxu0
  %v4684 = vadd.f32 %v4356, %v4683
  %v4685 = vpop.f32.mrb[0].mxu0
  %4686 = vmatprep.mubr.bf16.mxu0 %v4276
  %4687 = vmatmul.mubr.bf16.gmra.mrb[0].mxu0 %v4275
  %v4688 = vpop.f32.mrb[0].mxu0
  %v4689 = vadd.f32 %v4356, %v4688
  %v4690 = vpop.f32.mrb[0].mxu0
  %v4691 = vpop.f32.mrb[0].mxu0
  %v4692 = vadd.f32 %v4356, %v4691
  %v4693 = vpop.f32.mrb[0].mxu0
  %4694 = vmatprep.mubr.bf16.mxu0 %v4280
  %4695 = vmatmul.mubr.bf16.gmra.mrb[0].mxu0 %v4279
  %v4696 = vpop.f32.mrb[0].mxu0
  %v4697 = vadd.f32 %v4356, %v4696
  %v4698 = vpop.f32.mrb[0].mxu0
  %v4699 = vpop.f32.mrb[0].mxu0
  %v4700 = vadd.f32 %v4356, %v4699
  %v4701 = vpop.f32.mrb[0].mxu0
  %4702 = vmatprep.mubr.bf16.mxu0 %v4284
  %4703 = vmatmul.mubr.bf16.gmra.mrb[0].mxu0 %v4283
  %v4704 = vpop.f32.mrb[0].mxu0
  %v4705 = vadd.f32 %v4356, %v4704
  %v4706 = vpop.f32.mrb[0].mxu0
  %v4707 = vpop.f32.mrb[0].mxu0
  %v4708 = vadd.f32 %v4356, %v4707
  %v4709 = vpop.f32.mrb[0].mxu0
  %4710 = vdwg.mxu0
  %4711 = vmatprep.subr.bf16.mxu0 0
  %4712 = vmatpush1.bf16.msra.mxu0 %v4502
  %4713 = vmatprep.subr.bf16.mxu0 0
  %4714 = vmatpush1.bf16.msra.mxu0 %v4503
  %4715 = vmatprep.subr.bf16.mxu0 0
  %4716 = vmatpush1.bf16.msra.mxu0 %v4504
  %4717 = vmatprep.subr.bf16.mxu0 0
  %4718 = vmatpush1.bf16.msra.mxu0 %v4505
  %4719 = vmatprep.subr.bf16.mxu0 0
  %4720 = vmatpush1.bf16.msra.mxu0 %v4506
  %4721 = vmatprep.subr.bf16.mxu0 0
  %4722 = vmatpush1.bf16.msra.mxu0 %v4507
  %4723 = vmatprep.subr.bf16.mxu0 0
  %4724 = vmatpush1.bf16.msra.mxu0 %v4508
  %4725 = vmatprep.subr.bf16.mxu0 0
  %4726 = vmatpush1.bf16.msra.mxu0 %v4509
  %4727 = vmatprep.subr.bf16.mxu0 0
  %4728 = vmatpush1.bf16.msra.mxu0 %v4510
  %4729 = vmatprep.subr.bf16.mxu0 0
  %4730 = vmatpush1.bf16.msra.mxu0 %v4511
  %4731 = vmatprep.subr.bf16.mxu0 0
  %4732 = vmatpush1.bf16.msra.mxu0 %v4512
  %4733 = vmatprep.subr.bf16.mxu0 0
  %4734 = vmatpush1.bf16.msra.mxu0 %v4513
  %4735 = vmatprep.subr.bf16.mxu0 0
  %4736 = vmatpush1.bf16.msra.mxu0 %v4514
  %4737 = vmatprep.subr.bf16.mxu0 0
  %4738 = vmatpush1.bf16.msra.mxu0 %v4515
  %4739 = vmatprep.subr.bf16.mxu0 0
  %4740 = vmatpush1.bf16.msra.mxu0 %v4516
  %4741 = vmatprep.subr.bf16.mxu0 0
  %4742 = vmatpush1.bf16.msra.mxu0 %v4517
  %4743 = vmatprep.mubr.bf16.mxu0 %v4226
  %4744 = vmatmul.mubr.bf16.gmra.mrb[0].mxu0 %v4225
  %v4745 = vpop.f32.mrb[0].mxu0
  %v4746 = vadd.f32 %v4585, %v4745
  %v4747 = vpop.f32.mrb[0].mxu0
  %v4748 = vpop.f32.mrb[0].mxu0
  %v4749 = vadd.f32 %v4588, %v4748
  %v4750 = vpop.f32.mrb[0].mxu0
  %4751 = vmatprep.mubr.bf16.mxu0 %v4230
  %4752 = vmatmul.mubr.bf16.gmra.mrb[0].mxu0 %v4229
  %v4753 = vpop.f32.mrb[0].mxu0
  %v4754 = vadd.f32 %v4593, %v4753
  %v4755 = vpop.f32.mrb[0].mxu0
  %v4756 = vpop.f32.mrb[0].mxu0
  %v4757 = vadd.f32 %v4596, %v4756
  %v4758 = vpop.f32.mrb[0].mxu0
  %4759 = vmatprep.mubr.bf16.mxu0 %v4234
  %4760 = vmatmul.mubr.bf16.gmra.mrb[0].mxu0 %v4233
  %v4761 = vpop.f32.mrb[0].mxu0
  %v4762 = vadd.f32 %v4601, %v4761
  %v4763 = vpop.f32.mrb[0].mxu0
  %v4764 = vpop.f32.mrb[0].mxu0
  %v4765 = vadd.f32 %v4604, %v4764
  %v4766 = vpop.f32.mrb[0].mxu0
  %4767 = vmatprep.mubr.bf16.mxu0 %v4238
  %4768 = vmatmul.mubr.bf16.gmra.mrb[0].mxu0 %v4237
  %v4769 = vpop.f32.mrb[0].mxu0
  %v4770 = vadd.f32 %v4609, %v4769
  %v4771 = vpop.f32.mrb[0].mxu0
  %v4772 = vpop.f32.mrb[0].mxu0
  %v4773 = vadd.f32 %v4612, %v4772
  %v4774 = vpop.f32.mrb[0].mxu0
  %4775 = vmatprep.mubr.bf16.mxu0 %v4242
  %4776 = vmatmul.mubr.bf16.gmra.mrb[0].mxu0 %v4241
  %v4777 = vpop.f32.mrb[0].mxu0
  %v4778 = vadd.f32 %v4617, %v4777
  %v4779 = vpop.f32.mrb[0].mxu0
  %v4780 = vpop.f32.mrb[0].mxu0
  %v4781 = vadd.f32 %v4620, %v4780
  %v4782 = vpop.f32.mrb[0].mxu0
  %4783 = vmatprep.mubr.bf16.mxu0 %v4246
  %4784 = vmatmul.mubr.bf16.gmra.mrb[0].mxu0 %v4245
  %v4785 = vpop.f32.mrb[0].mxu0
  %v4786 = vadd.f32 %v4625, %v4785
  %v4787 = vpop.f32.mrb[0].mxu0
  %v4788 = vpop.f32.mrb[0].mxu0
  %v4789 = vadd.f32 %v4628, %v4788
  %v4790 = vpop.f32.mrb[0].mxu0
  %4791 = vmatprep.mubr.bf16.mxu0 %v4250
  %4792 = vmatmul.mubr.bf16.gmra.mrb[0].mxu0 %v4249
  %v4793 = vpop.f32.mrb[0].mxu0
  %v4794 = vadd.f32 %v4633, %v4793
  %v4795 = vpop.f32.mrb[0].mxu0
  %v4796 = vpop.f32.mrb[0].mxu0
  %v4797 = vadd.f32 %v4636, %v4796
  %v4798 = vpop.f32.mrb[0].mxu0
  %4799 = vmatprep.mubr.bf16.mxu0 %v4254
  %4800 = vmatmul.mubr.bf16.gmra.mrb[0].mxu0 %v4253
  %v4801 = vpop.f32.mrb[0].mxu0
  %v4802 = vadd.f32 %v4641, %v4801
  %v4803 = vpop.f32.mrb[0].mxu0
  %v4804 = vpop.f32.mrb[0].mxu0
  %v4805 = vadd.f32 %v4644, %v4804
  %v4806 = vpop.f32.mrb[0].mxu0
  %4807 = vmatprep.mubr.bf16.mxu0 %v4258
  %4808 = vmatmul.mubr.bf16.gmra.mrb[0].mxu0 %v4257
  %v4809 = vpop.f32.mrb[0].mxu0
  %v4810 = vadd.f32 %v4649, %v4809
  %v4811 = vpop.f32.mrb[0].mxu0
  %v4812 = vpop.f32.mrb[0].mxu0
  %v4813 = vadd.f32 %v4652, %v4812
  %v4814 = vpop.f32.mrb[0].mxu0
  %4815 = vmatprep.mubr.bf16.mxu0 %v4262
  %4816 = vmatmul.mubr.bf16.gmra.mrb[0].mxu0 %v4261
  %v4817 = vpop.f32.mrb[0].mxu0
  %v4818 = vadd.f32 %v4657, %v4817
  %v4819 = vpop.f32.mrb[0].mxu0
  %v4820 = vpop.f32.mrb[0].mxu0
  %v4821 = vadd.f32 %v4660, %v4820
  %v4822 = vpop.f32.mrb[0].mxu0
  %4823 = vmatprep.mubr.bf16.mxu0 %v4266
  %4824 = vmatmul.mubr.bf16.gmra.mrb[0].mxu0 %v4265
  %v4825 = vpop.f32.mrb[0].mxu0
  %v4826 = vadd.f32 %v4665, %v4825
  %v4827 = vpop.f32.mrb[0].mxu0
  %v4828 = vpop.f32.mrb[0].mxu0
  %v4829 = vadd.f32 %v4668, %v4828
  %v4830 = vpop.f32.mrb[0].mxu0
  %4831 = vmatprep.mubr.bf16.mxu0 %v4270
  %4832 = vmatmul.mubr.bf16.gmra.mrb[0].mxu0 %v4269
  %v4833 = vpop.f32.mrb[0].mxu0
  %v4834 = vadd.f32 %v4673, %v4833
  %v4835 = vpop.f32.mrb[0].mxu0
  %v4836 = vpop.f32.mrb[0].mxu0
  %v4837 = vadd.f32 %v4676, %v4836
  %v4838 = vpop.f32.mrb[0].mxu0
  %4839 = vmatprep.mubr.bf16.mxu0 %v4274
  %4840 = vmatmul.mubr.bf16.gmra.mrb[0].mxu0 %v4273
  %v4841 = vpop.f32.mrb[0].mxu0
  %v4842 = vadd.f32 %v4681, %v4841
  %v4843 = vpop.f32.mrb[0].mxu0
  %v4844 = vpop.f32.mrb[0].mxu0
  %v4845 = vadd.f32 %v4684, %v4844
  %v4846 = vpop.f32.mrb[0].mxu0
  %4847 = vmatprep.mubr.bf16.mxu0 %v4278
  %4848 = vmatmul.mubr.bf16.gmra.mrb[0].mxu0 %v4277
  %v4849 = vpop.f32.mrb[0].mxu0
  %v4850 = vadd.f32 %v4689, %v4849
  %v4851 = vpop.f32.mrb[0].mxu0
  %v4852 = vpop.f32.mrb[0].mxu0
  %v4853 = vadd.f32 %v4692, %v4852
  %v4854 = vpop.f32.mrb[0].mxu0
  %4855 = vmatprep.mubr.bf16.mxu0 %v4282
  %4856 = vmatmul.mubr.bf16.gmra.mrb[0].mxu0 %v4281
  %v4857 = vpop.f32.mrb[0].mxu0
  %v4858 = vadd.f32 %v4697, %v4857
  %v4859 = vpop.f32.mrb[0].mxu0
  %v4860 = vpop.f32.mrb[0].mxu0
  %v4861 = vadd.f32 %v4700, %v4860
  %v4862 = vpop.f32.mrb[0].mxu0
  %4863 = vmatprep.mubr.bf16.mxu0 %v4286
  %4864 = vmatmul.mubr.bf16.gmra.mrb[0].mxu0 %v4285
  %v4865 = vpop.f32.mrb[0].mxu0
  %v4866 = vadd.f32 %v4705, %v4865
  %v4867 = vpop.f32.mrb[0].mxu0
  %v4868 = vpop.f32.mrb[0].mxu0
  %v4869 = vadd.f32 %v4708, %v4868
  %v4870 = vpop.f32.mrb[0].mxu0
  %4871 = vdwg.mxu0
  %4872 = vst [vmem:[%s9] sm:$0xff] %v4746
  %4873 = vst [vmem:[%s9 + $0x8] sm:$0xff] %v4749
  %4874 = vst [vmem:[%s9 + $0x10] sm:$0xff] %v4754
  %4875 = vst [vmem:[%s9 + $0x18] sm:$0xff] %v4757
  %4876 = vst [vmem:[%s9 + $0x20] sm:$0xff] %v4762
  %4877 = vst [vmem:[%s9 + $0x28] sm:$0xff] %v4765
  %4878 = vst [vmem:[%s9 + $0x30] sm:$0xff] %v4770
  %4879 = vst [vmem:[%s9 + $0x38] sm:$0xff] %v4773
  %4880 = vst [vmem:[%s9 + $0x40] sm:$0xff] %v4778
  %4881 = vst [vmem:[%s9 + $0x48] sm:$0xff] %v4781
  %4882 = vst [vmem:[%s9 + $0x50] sm:$0xff] %v4786
  %4883 = vst [vmem:[%s9 + $0x58] sm:$0xff] %v4789
  %4884 = vst [vmem:[%s9 + $0x60] sm:$0xff] %v4794
  %4885 = vst [vmem:[%s9 + $0x68] sm:$0xff] %v4797
  %4886 = vst [vmem:[%s9 + $0x70] sm:$0xff] %v4802
  %4887 = vst [vmem:[%s9 + $0x78] sm:$0xff] %v4805
  %4888 = vst [vmem:[%s9 + $0x80] sm:$0xff] %v4810
  %4889 = vst [vmem:[%s9 + $0x88] sm:$0xff] %v4813
  %4890 = vst [vmem:[%s9 + $0x90] sm:$0xff] %v4818
  %4891 = vst [vmem:[%s9 + $0x98] sm:$0xff] %v4821
  %4892 = vst [vmem:[%s9 + $0xa0] sm:$0xff] %v4826
  %4893 = vst [vmem:[%s9 + $0xa8] sm:$0xff] %v4829
  %4894 = vst [vmem:[%s9 + $0xb0] sm:$0xff] %v4834
  %4895 = vst [vmem:[%s9 + $0xb8] sm:$0xff] %v4837
  %4896 = vst [vmem:[%s9 + $0xc0] sm:$0xff] %v4842
  %4897 = vst [vmem:[%s9 + $0xc8] sm:$0xff] %v4845
  %4898 = vst [vmem:[%s9 + $0xd0] sm:$0xff] %v4850
  %4899 = vst [vmem:[%s9 + $0xd8] sm:$0xff] %v4853
  %4900 = vst [vmem:[%s9 + $0xe0] sm:$0xff] %v4858
  %4901 = vst [vmem:[%s9 + $0xe8] sm:$0xff] %v4861
  %4902 = vst [vmem:[%s9 + $0xf0] sm:$0xff] %v4866
  %4903 = vst [vmem:[%s9 + $0xf8] sm:$0xff] %v4869
  // Predicated region
  $region38: #{forward_net_forward.1} parent=0 // pred_check
    _
  $region39: #{forward_net_forward.1} parent=0 // pred_check_branch
    %4905 = sbr.rel (0) target = $region41
  $region40: #{forward_net_forward.1} parent=0 // pred_region
    _
  $region41: #{forward_net_forward.1} parent=0 // pred_fallthru
    _
  // Predicated region
  $region42: #{forward_net_forward.1} parent=0 // pred_check
    _
  $region43: #{forward_net_forward.1} parent=0 // pred_check_branch
    %4907 = sbr.rel (0) target = $region45
  $region44: #{forward_net_forward.1} parent=0 // pred_region
    _
  $region45: #{forward_net_forward.1} parent=0 // pred_fallthru
    _

</llo_original>
